<compile_context>
chip_gen: v6e
topology: v6e:2x2x1
jax: 0.10.0
libtpu: 0.0.40
codegen_flags: <defaults>
</compile_context>

<pallas_src>
import functools

import jax
import jax.numpy as jnp
from jax.experimental import pallas as pl
from jax.experimental.pallas import tpu as pltpu

# Off-center taps of a 3x3 kernel, shared by wrapper (weight packing) and kernel.
_OFF_TAPS = tuple((ky, kx) for ky in range(3) for kx in range(3) if (ky, kx) != (1, 1))


def _region(d, L):
    """Static output/source ranges for an output-side shift by d (length L)."""
    lo_out, hi_out = max(0, -d), L - max(0, d)
    lo_src, hi_src = max(0, d), L - max(0, -d)
    return lo_out, hi_out, lo_src, hi_src


def _pick_k_tile(cin):
    """Cin reduction tile: full Cin if small, else a multiple of 128 (>=128)."""
    if cin <= 512:
        return cin
    for kc in (512, 256, 128):
        if cin % kc == 0:
            return kc
    return cin


def _vmem_limit_bytes():
    """~85% of the detected per-core VMEM (v5e/v6e ~110 MiB, v7x ~54 MiB)."""
    try:
        cap = int(pltpu.get_tpu_info().vmem_capacity_bytes)
    except Exception:
        cap = 64 * 1024 * 1024          # conservative fallback (v7x per-core)
    return min(int(cap * 0.85), 112 * 1024 * 1024)


def _aspp_kernel(rates, H, W, Cr,
                 x_ref, wc_ref, woff_ref, wimg_ref, bias_ref,
                 out_ref, acc_ref, img_ref):
    """Grid = (batch, branch, Cin-tile). Branch 0 = image pooling, 1 = 1x1 conv,
    2+i = dilated 3x3 conv with rate rates[i]. Each step touches only the
    current branch's Cr output channels."""
    f32 = jnp.float32
    b = pl.program_id(1)
    k = pl.program_id(2)
    nk = pl.num_programs(2)
    first_k = k == 0
    last_k = k == nk - 1
    HW = H * W
    x2d = x_ref[0]                                         # (HW, KC) bf16

    # ---- branch 0: AdaptiveAvgPool2d(1) -> 1x1 conv -> ReLU -> broadcast ----
    # Spatial sum via a ones-row matmul: bf16 inputs, f32 MXU accumulation,
    # no (HW, Cin) f32 temporary (review item).
    @pl.when(b == 0)
    def _():
        @pl.when(first_k)
        def _():
            img_ref[...] = jnp.zeros_like(img_ref)

        ones = jnp.ones((1, HW), dtype=x2d.dtype)
        ssum = jnp.dot(ones, x2d, preferred_element_type=f32)        # (1, KC)
        img_ref[...] += jnp.dot(ssum.astype(x2d.dtype), wimg_ref[...],
                                preferred_element_type=f32)          # (1, Cr)

        @pl.when(last_k)
        def _():
            img = jnp.maximum(img_ref[...] * (1.0 / HW) + bias_ref[0], 0.0)
            out_ref[0] = jnp.broadcast_to(
                img.reshape(1, 1, Cr), (H, W, Cr)).astype(out_ref.dtype)

    # ---- branches >= 1: center tap (== the full 1x1 conv when b == 1) ----
    @pl.when(b >= 1)
    def _():
        zc = jnp.dot(x2d, wc_ref[0], preferred_element_type=f32)     # (HW, Cr)
        zc = zc.reshape(H, W, Cr)

        @pl.when(first_k)
        def _():
            acc_ref[...] = zc

        @pl.when(jnp.logical_not(first_k))
        def _():
            acc_ref[...] = acc_ref[...] + zc

    # ---- dilated branches: off-center taps, statically specialized per rate ----
    for i, r in enumerate(rates):
        live = [(t, (ky - 1) * r, (kx - 1) * r)
                for t, (ky, kx) in enumerate(_OFF_TAPS)
                if abs((ky - 1) * r) < H and abs((kx - 1) * r) < W]
        if not live:                       # all taps read only the zero padding
            continue

        @pl.when(b == 2 + i)
        def _(live=tuple(live)):
            for t, dy, dx in live:
                h0o, h1o, h0s, h1s = _region(dy, H)
                w0o, w1o, w0s, w1s = _region(dx, W)
                if W % 8 == 0:
                    # Row-restricted matmul (sublane-aligned start): skip rows
                    # that only hit zero padding.
                    lhs = x2d[h0s * W:h1s * W, :]
                    z = jnp.dot(lhs, woff_ref[0, t], preferred_element_type=f32)
                    z = z.reshape(h1s - h0s, W, Cr)[:, w0s:w1s, :]
                else:
                    z = jnp.dot(x2d, woff_ref[0, t], preferred_element_type=f32)
                    z = z.reshape(H, W, Cr)[h0s:h1s, w0s:w1s, :]
                acc_ref[h0o:h1o, w0o:w1o, :] = (
                    acc_ref[h0o:h1o, w0o:w1o, :] + z)

    # ---- finalize conv branches: + bias -> ReLU -> bf16 store (once per branch) ----
    @pl.when(jnp.logical_and(b >= 1, last_k))
    def _():
        y = jnp.maximum(acc_ref[...] + bias_ref[...], 0.0)           # (H, W, Cr)
        out_ref[0] = y.astype(out_ref.dtype)


def pack_aspp_params(w1, w3, scale, bias, rates=(6, 12, 18)):
    """Fold the BN scale into the conv weights and pack per-branch tables.
    Call ONCE at module init (review item: no per-call weight reshuffling)."""
    nr = len(rates)
    Cr = w1.shape[-1]
    bf16 = jnp.bfloat16
    w3s = w3 * scale[2:2 + nr][:, None, None, None, :]               # (nr,3,3,Cin,Cr)
    wimg = (w1[0] * scale[0][None, :]).astype(bf16)                  # (Cin, Cr)
    # Center weights per branch: row 0 = plain 1x1, rows 1.. = dilated centers.
    wc = jnp.stack([w1[1] * scale[1][None, :]]
                   + [w3s[i, 1, 1] for i in range(nr)], axis=0).astype(bf16)
    # Off-center taps per rate: (nr, 8, Cin, Cr).
    woff = jnp.stack(
        [jnp.stack([w3s[i, ky, kx] for (ky, kx) in _OFF_TAPS], axis=0)
         for i in range(nr)], axis=0).astype(bf16)
    bias_p = bias.astype(jnp.float32).reshape(2 + nr, 1, Cr)         # [img|1x1|rates]
    return wimg, wc, woff, bias_p


def aspp_forward(x, params, rates=(6, 12, 18), k_tile=None,
                 out_dtype=jnp.bfloat16):
    wimg, wc, woff, bias_p = params
    N, H, W, Cin = x.shape
    Cr = wimg.shape[-1]
    nr = len(rates)
    nb = 2 + nr
    assert Cr % 128 == 0, "reduction_dim must be a multiple of 128 (lane width)"
    kc = _pick_k_tile(Cin) if k_tile is None else k_tile
    assert Cin % kc == 0
    nk = Cin // kc
    HW = H * W

    # One-time bf16 repack: the kernel re-reads x once per branch (nb times),
    # so a single 4B->2B cast is cheaper than streaming f32 nb times; if the
    # producing layer already emits bf16 NHWC this op disappears.
    x2 = x.reshape(N, HW, Cin).astype(jnp.bfloat16)

    kernel = functools.partial(_aspp_kernel, tuple(rates), H, W, Cr)
    return pl.pallas_call(
        kernel,
        out_shape=jax.ShapeDtypeStruct((N, H, W, nb * Cr), out_dtype),
        grid_spec=pltpu.PrefetchScalarGridSpec(
            num_scalar_prefetch=0,
            grid=(N, nb, nk),
            in_specs=[
                # x: full spatial plane, one Cin tile.
                pl.BlockSpec((1, HW, kc), lambda n, b, k: (n, 0, k)),
                # center weights: branch-selected row, Cin tile.
                pl.BlockSpec((1, kc, Cr),
                             lambda n, b, k: (jnp.maximum(b - 1, 0), k, 0)),
                # off-center taps: rate-selected row, Cin tile.
                pl.BlockSpec((1, 8, kc, Cr),
                             lambda n, b, k: (jnp.minimum(jnp.maximum(b - 2, 0),
                                                          nr - 1), 0, k, 0)),
                # image-pool weights: Cin tile.
                pl.BlockSpec((kc, Cr), lambda n, b, k: (k, 0)),
                # per-branch bias row.
                pl.BlockSpec((1, 1, Cr), lambda n, b, k: (b, 0, 0)),
            ],
            # Disjoint Cr-wide channel block per branch -> branch axis is
            # safely "parallel" (v7x dual-TensorCore even at N == 1).
            out_specs=pl.BlockSpec((1, H, W, Cr), lambda n, b, k: (n, 0, 0, b)),
            scratch_shapes=[pltpu.VMEM((H, W, Cr), jnp.float32),   # conv acc
                            pltpu.VMEM((1, Cr), jnp.float32)],     # img-pool acc
        ),
        compiler_params=pltpu.CompilerParams(
            dimension_semantics=("parallel", "parallel", "arbitrary"),
            vmem_limit_bytes=_vmem_limit_bytes()),
    )(x2, wc, woff, wimg, bias_p)


def aspp_reference(x, w1, w3, scale, bias, rates=(6, 12, 18)):
    """Pure-JAX f32 reference of the PyTorch forward (NHWC)."""
    prec = jax.lax.Precision.HIGHEST
    N, H, W, Cin = x.shape
    Cr = w1.shape[-1]
    m = jnp.mean(x, axis=(1, 2))                                     # (N, Cin)
    img = jnp.maximum(jnp.dot(m, w1[0], precision=prec) * scale[0] + bias[0], 0.0)
    img = jnp.broadcast_to(img[:, None, None, :], (N, H, W, Cr))
    outs = [img]
    y = jnp.maximum(
        jnp.einsum('nhwc,cd->nhwd', x, w1[1], precision=prec) * scale[1] + bias[1], 0.0)
    outs.append(y)
    for b, r in enumerate(rates):
        conv = jax.lax.conv_general_dilated(
            x, w3[b], window_strides=(1, 1),
            padding=((r, r), (r, r)), rhs_dilation=(r, r),
            dimension_numbers=('NHWC', 'HWIO', 'NHWC'),
            precision=prec)
        outs.append(jnp.maximum(conv * scale[2 + b] + bias[2 + b], 0.0))
    return jnp.concatenate(outs, axis=-1)


if __name__ == "__main__":
    N, H, W = 2, 16, 16
    Cin, Cr = 32, 128          # in_dim=32, reduction_dim=128 (small synthetic sizes)
    rates = (6, 12, 18)

    key = jax.random.PRNGKey(0)
    kx_, k1, k3, kg, kb, km, kv = jax.random.split(key, 7)
    x = jax.random.normal(kx_, (N, H, W, Cin), jnp.float32)
    w1 = jax.random.normal(k1, (2, Cin, Cr), jnp.float32) / jnp.sqrt(float(Cin))
    w3 = jax.random.normal(k3, (len(rates), 3, 3, Cin, Cr), jnp.float32) / jnp.sqrt(9.0 * Cin)

    # BatchNorm (eval mode) parameters, folded into per-channel affine scale/bias.
    eps = 1e-5
    gamma = 0.5 + jax.random.uniform(kg, (5, Cr), jnp.float32)
    beta = 0.1 * jax.random.normal(kb, (5, Cr), jnp.float32)
    rmean = 0.1 * jax.random.normal(km, (5, Cr), jnp.float32)
    rvar = 0.5 + jax.random.uniform(kv, (5, Cr), jnp.float32)
    scale = gamma * jax.lax.rsqrt(rvar + eps)
    bias = beta - rmean * scale

    params = pack_aspp_params(w1, w3, scale, bias, rates)   # once, at "init"
    out = aspp_forward(x, params, rates)
    out = jax.block_until_ready(out)

    ref = aspp_reference(x, w1, w3, scale, bias, rates)
    assert out.shape == (N, H, W, 5 * Cr), out.shape
    max_err = float(jnp.max(jnp.abs(out.astype(jnp.float32) - ref)))
    # bf16 matmul inputs AND bf16 output vs. an f32 HIGHEST reference
    # -> ~1 output ulp on |y| up to ~10 plus bf16 input quantization.
    assert max_err < 8e-2, f"max abs error {max_err}"
    print("KERNEL_OK")
</pallas_src>

<mosaic_0001>
module attributes {stable_mosaic.version = 11 : i64} {
  func.func @_aspp_kernel(%arg0: i32, %arg1: i32, %arg2: i32, %arg3: memref<1x256x32xbf16, #tpu.memory_space<vmem>>, %arg4: memref<1x32x128xbf16, #tpu.memory_space<vmem>>, %arg5: memref<1x8x32x128xbf16, #tpu.memory_space<vmem>>, %arg6: memref<32x128xbf16, #tpu.memory_space<vmem>>, %arg7: memref<1x1x128xf32, #tpu.memory_space<vmem>>, %arg8: memref<1x16x16x128xbf16, #tpu.memory_space<vmem>>, %arg9: memref<16x16x128xf32, #tpu.memory_space<vmem>>, %arg10: memref<1x128xf32, #tpu.memory_space<vmem>>) attributes {dimension_semantics = [#tpu.dimension_semantics<parallel>, #tpu.dimension_semantics<parallel>, #tpu.dimension_semantics<arbitrary>], iteration_bounds = array<i64: 2, 5, 1>, scalar_prefetch = 0 : i64, scratch_operands = 2 : i64, tpu.core_type = #tpu.core_type<tc>, window_params = [{transform_indices = @transform_0, window_bounds = array<i64: 1, 256, 32>}, {transform_indices = @transform_1, window_bounds = array<i64: 1, 32, 128>}, {transform_indices = @transform_2, window_bounds = array<i64: 1, 8, 32, 128>}, {transform_indices = @transform_3, window_bounds = array<i64: 32, 128>}, {transform_indices = @transform_4, window_bounds = array<i64: 1, 1, 128>}, {transform_indices = @transform_5, window_bounds = array<i64: 1, 16, 16, 128>}]} {
    %c0_i32 = arith.constant 0 : i32
    %0 = arith.cmpi eq, %arg2, %c0_i32 : i32
    %c0_i32_0 = arith.constant 0 : i32
    %1 = arith.cmpi eq, %arg2, %c0_i32_0 : i32
    %c0 = arith.constant 0 : index
    %c0_1 = arith.constant 0 : index
    %c0_2 = arith.constant 0 : index
    %2 = vector.load %arg3[%c0, %c0_1, %c0_2] : memref<1x256x32xbf16, #tpu.memory_space<vmem>>, vector<1x256x32xbf16>
    %3 = vector.shape_cast %2 : vector<1x256x32xbf16> to vector<256x32xbf16>
    %c0_i32_3 = arith.constant 0 : i32
    %4 = arith.cmpi eq, %arg1, %c0_i32_3 : i32
    %5 = arith.extui %4 : i1 to i32
    %c0_i32_4 = arith.constant 0 : i32
    %6 = arith.cmpi ne, %5, %c0_i32_4 : i32
    scf.if %6 {
      %20 = arith.extui %0 : i1 to i32
      %c0_i32_10 = arith.constant 0 : i32
      %21 = arith.cmpi ne, %20, %c0_i32_10 : i32
      scf.if %21 {
        %cst_20 = arith.constant 0.000000e+00 : f32
        %32 = vector.broadcast %cst_20 : f32 to vector<1x128xf32>
        %c0_21 = arith.constant 0 : index
        %c0_22 = arith.constant 0 : index
        %33 = vector.load %arg10[%c0_21, %c0_22] : memref<1x128xf32, #tpu.memory_space<vmem>>, vector<1x128xf32>
        tpu.vector_store %arg10[%c0_21, %c0_22], %32 {strides = array<i32>} : memref<1x128xf32, #tpu.memory_space<vmem>>, vector<1x128xf32>,
      } else {
      }
      %cst = arith.constant 1.000000e+00 : bf16
      %22 = vector.broadcast %cst : bf16 to vector<1x256xbf16>
      %cst_11 = arith.constant dense<0.000000e+00> : vector<1x32xf32>
      %23 = tpu.matmul %22, %3, %cst_11 {dimension_numbers = #tpu.dot_dimension_numbers<[1], [0], [0], [1], [0, 0, 1, 1], [], []>} : vector<1x256xbf16>, vector<256x32xbf16>, vector<1x32xf32> -> vector<1x32xf32>
      %c0_12 = arith.constant 0 : index
      %c0_13 = arith.constant 0 : index
      %24 = vector.load %arg10[%c0_12, %c0_13] : memref<1x128xf32, #tpu.memory_space<vmem>>, vector<1x128xf32>
      %25 = arith.truncf %23 : vector<1x32xf32> to vector<1x32xbf16>
      %c0_14 = arith.constant 0 : index
      %c0_15 = arith.constant 0 : index
      %26 = vector.load %arg6[%c0_14, %c0_15] : memref<32x128xbf16, #tpu.memory_space<vmem>>, vector<32x128xbf16>
      %cst_16 = arith.constant dense<0.000000e+00> : vector<1x128xf32>
      %27 = tpu.matmul %25, %26, %cst_16 {dimension_numbers = #tpu.dot_dimension_numbers<[1], [0], [0], [1], [0, 0, 1, 1], [], []>} : vector<1x32xbf16>, vector<32x128xbf16>, vector<1x128xf32> -> vector<1x128xf32>
      %28 = arith.addf %24, %27 : vector<1x128xf32>
      %c0_17 = arith.constant 0 : index
      %c0_18 = arith.constant 0 : index
      %29 = vector.load %arg10[%c0_17, %c0_18] : memref<1x128xf32, #tpu.memory_space<vmem>>, vector<1x128xf32>
      tpu.vector_store %arg10[%c0_17, %c0_18], %28 {strides = array<i32>} : memref<1x128xf32, #tpu.memory_space<vmem>>, vector<1x128xf32>,
      %30 = arith.extui %1 : i1 to i32
      %c0_i32_19 = arith.constant 0 : i32
      %31 = arith.cmpi ne, %30, %c0_i32_19 : i32
      scf.if %31 {
        %c0_20 = arith.constant 0 : index
        %c0_21 = arith.constant 0 : index
        %32 = vector.load %arg10[%c0_20, %c0_21] : memref<1x128xf32, #tpu.memory_space<vmem>>, vector<1x128xf32>
        %cst_22 = arith.constant 3.906250e-03 : f32
        %33 = vector.broadcast %cst_22 : f32 to vector<1x128xf32>
        %34 = arith.mulf %32, %33 : vector<1x128xf32>
        %c0_23 = arith.constant 0 : index
        %c0_24 = arith.constant 0 : index
        %c0_25 = arith.constant 0 : index
        %35 = vector.load %arg7[%c0_23, %c0_24, %c0_25] : memref<1x1x128xf32, #tpu.memory_space<vmem>>, vector<1x1x128xf32>
        %36 = vector.shape_cast %35 : vector<1x1x128xf32> to vector<1x128xf32>
        %37 = arith.addf %34, %36 : vector<1x128xf32>
        %cst_26 = arith.constant 0.000000e+00 : f32
        %38 = vector.broadcast %cst_26 : f32 to vector<1x128xf32>
        %39 = arith.maximumf %37, %38 : vector<1x128xf32>
        %40 = vector.shape_cast %39 : vector<1x128xf32> to vector<1x1x128xf32>
        %41 = vector.shape_cast %40 : vector<1x1x128xf32> to vector<1x1x128xf32>
        %42 = vector.broadcast %41 : vector<1x1x128xf32> to vector<16x16x128xf32>
        %43 = arith.truncf %42 : vector<16x16x128xf32> to vector<16x16x128xbf16>
        %c0_27 = arith.constant 0 : index
        %c0_28 = arith.constant 0 : index
        %c0_29 = arith.constant 0 : index
        %c0_30 = arith.constant 0 : index
        %44 = vector.load %arg8[%c0_27, %c0_28, %c0_29, %c0_30] : memref<1x16x16x128xbf16, #tpu.memory_space<vmem>>, vector<1x16x16x128xbf16>
        %45 = vector.shape_cast %44 : vector<1x16x16x128xbf16> to vector<16x16x128xbf16>
        %46 = vector.shape_cast %43 : vector<16x16x128xbf16> to vector<1x16x16x128xbf16>
        tpu.vector_store %arg8[%c0_27, %c0_28, %c0_29, %c0_30], %46 {strides = array<i32>} : memref<1x16x16x128xbf16, #tpu.memory_space<vmem>>, vector<1x16x16x128xbf16>,
      } else {
      }
    } else {
    }
    %c1_i32 = arith.constant 1 : i32
    %7 = arith.cmpi sge, %arg1, %c1_i32 : i32
    %8 = arith.extui %7 : i1 to i32
    %c0_i32_5 = arith.constant 0 : i32
    %9 = arith.cmpi ne, %8, %c0_i32_5 : i32
    scf.if %9 {
      %c0_10 = arith.constant 0 : index
      %c0_11 = arith.constant 0 : index
      %c0_12 = arith.constant 0 : index
      %20 = vector.load %arg4[%c0_10, %c0_11, %c0_12] : memref<1x32x128xbf16, #tpu.memory_space<vmem>>, vector<1x32x128xbf16>
      %21 = vector.shape_cast %20 : vector<1x32x128xbf16> to vector<32x128xbf16>
      %cst = arith.constant dense<0.000000e+00> : vector<256x128xf32>
      %22 = tpu.matmul %3, %21, %cst {dimension_numbers = #tpu.dot_dimension_numbers<[1], [0], [0], [1], [0, 0, 1, 1], [], []>} : vector<256x32xbf16>, vector<32x128xbf16>, vector<256x128xf32> -> vector<256x128xf32>
      %23 = vector.shape_cast %22 : vector<256x128xf32> to vector<16x16x128xf32>
      %24 = arith.extui %0 : i1 to i32
      %c0_i32_13 = arith.constant 0 : i32
      %25 = arith.cmpi ne, %24, %c0_i32_13 : i32
      scf.if %25 {
        %c0_15 = arith.constant 0 : index
        %c0_16 = arith.constant 0 : index
        %c0_17 = arith.constant 0 : index
        %29 = vector.load %arg9[%c0_15, %c0_16, %c0_17] : memref<16x16x128xf32, #tpu.memory_space<vmem>>, vector<16x16x128xf32>
        tpu.vector_store %arg9[%c0_15, %c0_16, %c0_17], %23 {strides = array<i32>} : memref<16x16x128xf32, #tpu.memory_space<vmem>>, vector<16x16x128xf32>,
      } else {
      }
      %true = arith.constant true
      %26 = arith.xori %0, %true : i1
      %27 = arith.extui %26 : i1 to i32
      %c0_i32_14 = arith.constant 0 : i32
      %28 = arith.cmpi ne, %27, %c0_i32_14 : i32
      scf.if %28 {
        %c0_15 = arith.constant 0 : index
        %c0_16 = arith.constant 0 : index
        %c0_17 = arith.constant 0 : index
        %29 = vector.load %arg9[%c0_15, %c0_16, %c0_17] : memref<16x16x128xf32, #tpu.memory_space<vmem>>, vector<16x16x128xf32>
        %30 = arith.addf %29, %23 : vector<16x16x128xf32>
        %c0_18 = arith.constant 0 : index
        %c0_19 = arith.constant 0 : index
        %c0_20 = arith.constant 0 : index
        %31 = vector.load %arg9[%c0_18, %c0_19, %c0_20] : memref<16x16x128xf32, #tpu.memory_space<vmem>>, vector<16x16x128xf32>
        tpu.vector_store %arg9[%c0_18, %c0_19, %c0_20], %30 {strides = array<i32>} : memref<16x16x128xf32, #tpu.memory_space<vmem>>, vector<16x16x128xf32>,
      } else {
      }
    } else {
    }
    %c2_i32 = arith.constant 2 : i32
    %10 = arith.cmpi eq, %arg1, %c2_i32 : i32
    %11 = arith.extui %10 : i1 to i32
    %c0_i32_6 = arith.constant 0 : i32
    %12 = arith.cmpi ne, %11, %c0_i32_6 : i32
    scf.if %12 {
      %20 = vector.extract_strided_slice %3 {offsets = [0, 0], sizes = [160, 32], strides = [1, 1]} : vector<256x32xbf16> to vector<160x32xbf16>
      %c0_10 = arith.constant 0 : index
      %c0_11 = arith.constant 0 : index
      %c0_12 = arith.constant 0 : index
      %c0_13 = arith.constant 0 : index
      %21 = vector.load %arg5[%c0_10, %c0_11, %c0_12, %c0_13] : memref<1x8x32x128xbf16, #tpu.memory_space<vmem>>, vector<1x1x32x128xbf16>
      %22 = vector.shape_cast %21 : vector<1x1x32x128xbf16> to vector<32x128xbf16>
      %cst = arith.constant dense<0.000000e+00> : vector<160x128xf32>
      %23 = tpu.matmul %20, %22, %cst {dimension_numbers = #tpu.dot_dimension_numbers<[1], [0], [0], [1], [0, 0, 1, 1], [], []>} : vector<160x32xbf16>, vector<32x128xbf16>, vector<160x128xf32> -> vector<160x128xf32>
      %24 = vector.shape_cast %23 : vector<160x128xf32> to vector<10x16x128xf32>
      %25 = vector.extract_strided_slice %24 {offsets = [0, 0, 0], sizes = [10, 10, 128], strides = [1, 1, 1]} : vector<10x16x128xf32> to vector<10x10x128xf32>
      %c6 = arith.constant 6 : index
      %c6_14 = arith.constant 6 : index
      %c0_15 = arith.constant 0 : index
      %26 = vector.load %arg9[%c6, %c6_14, %c0_15] : memref<16x16x128xf32, #tpu.memory_space<vmem>>, vector<10x10x128xf32>
      %27 = arith.addf %26, %25 : vector<10x10x128xf32>
      %c6_16 = arith.constant 6 : index
      %c6_17 = arith.constant 6 : index
      %c0_18 = arith.constant 0 : index
      %28 = vector.load %arg9[%c6_16, %c6_17, %c0_18] : memref<16x16x128xf32, #tpu.memory_space<vmem>>, vector<10x10x128xf32>
      tpu.vector_store %arg9[%c6_16, %c6_17, %c0_18], %27 {strides = array<i32>} : memref<16x16x128xf32, #tpu.memory_space<vmem>>, vector<10x10x128xf32>,
      %29 = vector.extract_strided_slice %3 {offsets = [0, 0], sizes = [160, 32], strides = [1, 1]} : vector<256x32xbf16> to vector<160x32xbf16>
      %c0_19 = arith.constant 0 : index
      %c1 = arith.constant 1 : index
      %c0_20 = arith.constant 0 : index
      %c0_21 = arith.constant 0 : index
      %30 = vector.load %arg5[%c0_19, %c1, %c0_20, %c0_21] : memref<1x8x32x128xbf16, #tpu.memory_space<vmem>>, vector<1x1x32x128xbf16>
      %31 = vector.shape_cast %30 : vector<1x1x32x128xbf16> to vector<32x128xbf16>
      %cst_22 = arith.constant dense<0.000000e+00> : vector<160x128xf32>
      %32 = tpu.matmul %29, %31, %cst_22 {dimension_numbers = #tpu.dot_dimension_numbers<[1], [0], [0], [1], [0, 0, 1, 1], [], []>} : vector<160x32xbf16>, vector<32x128xbf16>, vector<160x128xf32> -> vector<160x128xf32>
      %33 = vector.shape_cast %32 : vector<160x128xf32> to vector<10x16x128xf32>
      %c6_23 = arith.constant 6 : index
      %c0_24 = arith.constant 0 : index
      %c0_25 = arith.constant 0 : index
      %34 = vector.load %arg9[%c6_23, %c0_24, %c0_25] : memref<16x16x128xf32, #tpu.memory_space<vmem>>, vector<10x16x128xf32>
      %35 = arith.addf %34, %33 : vector<10x16x128xf32>
      %c6_26 = arith.constant 6 : index
      %c0_27 = arith.constant 0 : index
      %c0_28 = arith.constant 0 : index
      %36 = vector.load %arg9[%c6_26, %c0_27, %c0_28] : memref<16x16x128xf32, #tpu.memory_space<vmem>>, vector<10x16x128xf32>
      tpu.vector_store %arg9[%c6_26, %c0_27, %c0_28], %35 {strides = array<i32>} : memref<16x16x128xf32, #tpu.memory_space<vmem>>, vector<10x16x128xf32>,
      %37 = vector.extract_strided_slice %3 {offsets = [0, 0], sizes = [160, 32], strides = [1, 1]} : vector<256x32xbf16> to vector<160x32xbf16>
      %c0_29 = arith.constant 0 : index
      %c2 = arith.constant 2 : index
      %c0_30 = arith.constant 0 : index
      %c0_31 = arith.constant 0 : index
      %38 = vector.load %arg5[%c0_29, %c2, %c0_30, %c0_31] : memref<1x8x32x128xbf16, #tpu.memory_space<vmem>>, vector<1x1x32x128xbf16>
      %39 = vector.shape_cast %38 : vector<1x1x32x128xbf16> to vector<32x128xbf16>
      %cst_32 = arith.constant dense<0.000000e+00> : vector<160x128xf32>
      %40 = tpu.matmul %37, %39, %cst_32 {dimension_numbers = #tpu.dot_dimension_numbers<[1], [0], [0], [1], [0, 0, 1, 1], [], []>} : vector<160x32xbf16>, vector<32x128xbf16>, vector<160x128xf32> -> vector<160x128xf32>
      %41 = vector.shape_cast %40 : vector<160x128xf32> to vector<10x16x128xf32>
      %42 = vector.extract_strided_slice %41 {offsets = [0, 6, 0], sizes = [10, 10, 128], strides = [1, 1, 1]} : vector<10x16x128xf32> to vector<10x10x128xf32>
      %c6_33 = arith.constant 6 : index
      %c0_34 = arith.constant 0 : index
      %c0_35 = arith.constant 0 : index
      %43 = vector.load %arg9[%c6_33, %c0_34, %c0_35] : memref<16x16x128xf32, #tpu.memory_space<vmem>>, vector<10x10x128xf32>
      %44 = arith.addf %43, %42 : vector<10x10x128xf32>
      %c6_36 = arith.constant 6 : index
      %c0_37 = arith.constant 0 : index
      %c0_38 = arith.constant 0 : index
      %45 = vector.load %arg9[%c6_36, %c0_37, %c0_38] : memref<16x16x128xf32, #tpu.memory_space<vmem>>, vector<10x10x128xf32>
      tpu.vector_store %arg9[%c6_36, %c0_37, %c0_38], %44 {strides = array<i32>} : memref<16x16x128xf32, #tpu.memory_space<vmem>>, vector<10x10x128xf32>,
      %c0_39 = arith.constant 0 : index
      %c3 = arith.constant 3 : index
      %c0_40 = arith.constant 0 : index
      %c0_41 = arith.constant 0 : index
      %46 = vector.load %arg5[%c0_39, %c3, %c0_40, %c0_41] : memref<1x8x32x128xbf16, #tpu.memory_space<vmem>>, vector<1x1x32x128xbf16>
      %47 = vector.shape_cast %46 : vector<1x1x32x128xbf16> to vector<32x128xbf16>
      %cst_42 = arith.constant dense<0.000000e+00> : vector<256x128xf32>
      %48 = tpu.matmul %3, %47, %cst_42 {dimension_numbers = #tpu.dot_dimension_numbers<[1], [0], [0], [1], [0, 0, 1, 1], [], []>} : vector<256x32xbf16>, vector<32x128xbf16>, vector<256x128xf32> -> vector<256x128xf32>
      %49 = vector.shape_cast %48 : vector<256x128xf32> to vector<16x16x128xf32>
      %50 = vector.extract_strided_slice %49 {offsets = [0, 0, 0], sizes = [16, 10, 128], strides = [1, 1, 1]} : vector<16x16x128xf32> to vector<16x10x128xf32>
      %c0_43 = arith.constant 0 : index
      %c6_44 = arith.constant 6 : index
      %c0_45 = arith.constant 0 : index
      %51 = vector.load %arg9[%c0_43, %c6_44, %c0_45] : memref<16x16x128xf32, #tpu.memory_space<vmem>>, vector<16x10x128xf32>
      %52 = arith.addf %51, %50 : vector<16x10x128xf32>
      %c0_46 = arith.constant 0 : index
      %c6_47 = arith.constant 6 : index
      %c0_48 = arith.constant 0 : index
      %53 = vector.load %arg9[%c0_46, %c6_47, %c0_48] : memref<16x16x128xf32, #tpu.memory_space<vmem>>, vector<16x10x128xf32>
      tpu.vector_store %arg9[%c0_46, %c6_47, %c0_48], %52 {strides = array<i32>} : memref<16x16x128xf32, #tpu.memory_space<vmem>>, vector<16x10x128xf32>,
      %c0_49 = arith.constant 0 : index
      %c4 = arith.constant 4 : index
      %c0_50 = arith.constant 0 : index
      %c0_51 = arith.constant 0 : index
      %54 = vector.load %arg5[%c0_49, %c4, %c0_50, %c0_51] : memref<1x8x32x128xbf16, #tpu.memory_space<vmem>>, vector<1x1x32x128xbf16>
      %55 = vector.shape_cast %54 : vector<1x1x32x128xbf16> to vector<32x128xbf16>
      %cst_52 = arith.constant dense<0.000000e+00> : vector<256x128xf32>
      %56 = tpu.matmul %3, %55, %cst_52 {dimension_numbers = #tpu.dot_dimension_numbers<[1], [0], [0], [1], [0, 0, 1, 1], [], []>} : vector<256x32xbf16>, vector<32x128xbf16>, vector<256x128xf32> -> vector<256x128xf32>
      %57 = vector.shape_cast %56 : vector<256x128xf32> to vector<16x16x128xf32>
      %58 = vector.extract_strided_slice %57 {offsets = [0, 6, 0], sizes = [16, 10, 128], strides = [1, 1, 1]} : vector<16x16x128xf32> to vector<16x10x128xf32>
      %c0_53 = arith.constant 0 : index
      %c0_54 = arith.constant 0 : index
      %c0_55 = arith.constant 0 : index
      %59 = vector.load %arg9[%c0_53, %c0_54, %c0_55] : memref<16x16x128xf32, #tpu.memory_space<vmem>>, vector<16x10x128xf32>
      %60 = arith.addf %59, %58 : vector<16x10x128xf32>
      %c0_56 = arith.constant 0 : index
      %c0_57 = arith.constant 0 : index
      %c0_58 = arith.constant 0 : index
      %61 = vector.load %arg9[%c0_56, %c0_57, %c0_58] : memref<16x16x128xf32, #tpu.memory_space<vmem>>, vector<16x10x128xf32>
      tpu.vector_store %arg9[%c0_56, %c0_57, %c0_58], %60 {strides = array<i32>} : memref<16x16x128xf32, #tpu.memory_space<vmem>>, vector<16x10x128xf32>,
      %62 = vector.extract_strided_slice %3 {offsets = [96, 0], sizes = [160, 32], strides = [1, 1]} : vector<256x32xbf16> to vector<160x32xbf16>
      %c0_59 = arith.constant 0 : index
      %c5 = arith.constant 5 : index
      %c0_60 = arith.constant 0 : index
      %c0_61 = arith.constant 0 : index
      %63 = vector.load %arg5[%c0_59, %c5, %c0_60, %c0_61] : memref<1x8x32x128xbf16, #tpu.memory_space<vmem>>, vector<1x1x32x128xbf16>
      %64 = vector.shape_cast %63 : vector<1x1x32x128xbf16> to vector<32x128xbf16>
      %cst_62 = arith.constant dense<0.000000e+00> : vector<160x128xf32>
      %65 = tpu.matmul %62, %64, %cst_62 {dimension_numbers = #tpu.dot_dimension_numbers<[1], [0], [0], [1], [0, 0, 1, 1], [], []>} : vector<160x32xbf16>, vector<32x128xbf16>, vector<160x128xf32> -> vector<160x128xf32>
      %66 = vector.shape_cast %65 : vector<160x128xf32> to vector<10x16x128xf32>
      %67 = vector.extract_strided_slice %66 {offsets = [0, 0, 0], sizes = [10, 10, 128], strides = [1, 1, 1]} : vector<10x16x128xf32> to vector<10x10x128xf32>
      %c0_63 = arith.constant 0 : index
      %c6_64 = arith.constant 6 : index
      %c0_65 = arith.constant 0 : index
      %68 = vector.load %arg9[%c0_63, %c6_64, %c0_65] : memref<16x16x128xf32, #tpu.memory_space<vmem>>, vector<10x10x128xf32>
      %69 = arith.addf %68, %67 : vector<10x10x128xf32>
      %c0_66 = arith.constant 0 : index
      %c6_67 = arith.constant 6 : index
      %c0_68 = arith.constant 0 : index
      %70 = vector.load %arg9[%c0_66, %c6_67, %c0_68] : memref<16x16x128xf32, #tpu.memory_space<vmem>>, vector<10x10x128xf32>
      tpu.vector_store %arg9[%c0_66, %c6_67, %c0_68], %69 {strides = array<i32>} : memref<16x16x128xf32, #tpu.memory_space<vmem>>, vector<10x10x128xf32>,
      %71 = vector.extract_strided_slice %3 {offsets = [96, 0], sizes = [160, 32], strides = [1, 1]} : vector<256x32xbf16> to vector<160x32xbf16>
      %c0_69 = arith.constant 0 : index
      %c6_70 = arith.constant 6 : index
      %c0_71 = arith.constant 0 : index
      %c0_72 = arith.constant 0 : index
      %72 = vector.load %arg5[%c0_69, %c6_70, %c0_71, %c0_72] : memref<1x8x32x128xbf16, #tpu.memory_space<vmem>>, vector<1x1x32x128xbf16>
      %73 = vector.shape_cast %72 : vector<1x1x32x128xbf16> to vector<32x128xbf16>
      %cst_73 = arith.constant dense<0.000000e+00> : vector<160x128xf32>
      %74 = tpu.matmul %71, %73, %cst_73 {dimension_numbers = #tpu.dot_dimension_numbers<[1], [0], [0], [1], [0, 0, 1, 1], [], []>} : vector<160x32xbf16>, vector<32x128xbf16>, vector<160x128xf32> -> vector<160x128xf32>
      %75 = vector.shape_cast %74 : vector<160x128xf32> to vector<10x16x128xf32>
      %c0_74 = arith.constant 0 : index
      %c0_75 = arith.constant 0 : index
      %c0_76 = arith.constant 0 : index
      %76 = vector.load %arg9[%c0_74, %c0_75, %c0_76] : memref<16x16x128xf32, #tpu.memory_space<vmem>>, vector<10x16x128xf32>
      %77 = arith.addf %76, %75 : vector<10x16x128xf32>
      %c0_77 = arith.constant 0 : index
      %c0_78 = arith.constant 0 : index
      %c0_79 = arith.constant 0 : index
      %78 = vector.load %arg9[%c0_77, %c0_78, %c0_79] : memref<16x16x128xf32, #tpu.memory_space<vmem>>, vector<10x16x128xf32>
      tpu.vector_store %arg9[%c0_77, %c0_78, %c0_79], %77 {strides = array<i32>} : memref<16x16x128xf32, #tpu.memory_space<vmem>>, vector<10x16x128xf32>,
      %79 = vector.extract_strided_slice %3 {offsets = [96, 0], sizes = [160, 32], strides = [1, 1]} : vector<256x32xbf16> to vector<160x32xbf16>
      %c0_80 = arith.constant 0 : index
      %c7 = arith.constant 7 : index
      %c0_81 = arith.constant 0 : index
      %c0_82 = arith.constant 0 : index
      %80 = vector.load %arg5[%c0_80, %c7, %c0_81, %c0_82] : memref<1x8x32x128xbf16, #tpu.memory_space<vmem>>, vector<1x1x32x128xbf16>
      %81 = vector.shape_cast %80 : vector<1x1x32x128xbf16> to vector<32x128xbf16>
      %cst_83 = arith.constant dense<0.000000e+00> : vector<160x128xf32>
      %82 = tpu.matmul %79, %81, %cst_83 {dimension_numbers = #tpu.dot_dimension_numbers<[1], [0], [0], [1], [0, 0, 1, 1], [], []>} : vector<160x32xbf16>, vector<32x128xbf16>, vector<160x128xf32> -> vector<160x128xf32>
      %83 = vector.shape_cast %82 : vector<160x128xf32> to vector<10x16x128xf32>
      %84 = vector.extract_strided_slice %83 {offsets = [0, 6, 0], sizes = [10, 10, 128], strides = [1, 1, 1]} : vector<10x16x128xf32> to vector<10x10x128xf32>
      %c0_84 = arith.constant 0 : index
      %c0_85 = arith.constant 0 : index
      %c0_86 = arith.constant 0 : index
      %85 = vector.load %arg9[%c0_84, %c0_85, %c0_86] : memref<16x16x128xf32, #tpu.memory_space<vmem>>, vector<10x10x128xf32>
      %86 = arith.addf %85, %84 : vector<10x10x128xf32>
      %c0_87 = arith.constant 0 : index
      %c0_88 = arith.constant 0 : index
      %c0_89 = arith.constant 0 : index
      %87 = vector.load %arg9[%c0_87, %c0_88, %c0_89] : memref<16x16x128xf32, #tpu.memory_space<vmem>>, vector<10x10x128xf32>
      tpu.vector_store %arg9[%c0_87, %c0_88, %c0_89], %86 {strides = array<i32>} : memref<16x16x128xf32, #tpu.memory_space<vmem>>, vector<10x10x128xf32>,
    } else {
    }
    %c3_i32 = arith.constant 3 : i32
    %13 = arith.cmpi eq, %arg1, %c3_i32 : i32
    %14 = arith.extui %13 : i1 to i32
    %c0_i32_7 = arith.constant 0 : i32
    %15 = arith.cmpi ne, %14, %c0_i32_7 : i32
    scf.if %15 {
      %20 = vector.extract_strided_slice %3 {offsets = [0, 0], sizes = [64, 32], strides = [1, 1]} : vector<256x32xbf16> to vector<64x32xbf16>
      %c0_10 = arith.constant 0 : index
      %c0_11 = arith.constant 0 : index
      %c0_12 = arith.constant 0 : index
      %c0_13 = arith.constant 0 : index
      %21 = vector.load %arg5[%c0_10, %c0_11, %c0_12, %c0_13] : memref<1x8x32x128xbf16, #tpu.memory_space<vmem>>, vector<1x1x32x128xbf16>
      %22 = vector.shape_cast %21 : vector<1x1x32x128xbf16> to vector<32x128xbf16>
      %cst = arith.constant dense<0.000000e+00> : vector<64x128xf32>
      %23 = tpu.matmul %20, %22, %cst {dimension_numbers = #tpu.dot_dimension_numbers<[1], [0], [0], [1], [0, 0, 1, 1], [], []>} : vector<64x32xbf16>, vector<32x128xbf16>, vector<64x128xf32> -> vector<64x128xf32>
      %24 = vector.shape_cast %23 : vector<64x128xf32> to vector<4x16x128xf32>
      %25 = vector.extract_strided_slice %24 {offsets = [0, 0, 0], sizes = [4, 4, 128], strides = [1, 1, 1]} : vector<4x16x128xf32> to vector<4x4x128xf32>
      %c12 = arith.constant 12 : index
      %c12_14 = arith.constant 12 : index
      %c0_15 = arith.constant 0 : index
      %26 = vector.load %arg9[%c12, %c12_14, %c0_15] : memref<16x16x128xf32, #tpu.memory_space<vmem>>, vector<4x4x128xf32>
      %27 = arith.addf %26, %25 : vector<4x4x128xf32>
      %c12_16 = arith.constant 12 : index
      %c12_17 = arith.constant 12 : index
      %c0_18 = arith.constant 0 : index
      %28 = vector.load %arg9[%c12_16, %c12_17, %c0_18] : memref<16x16x128xf32, #tpu.memory_space<vmem>>, vector<4x4x128xf32>
      tpu.vector_store %arg9[%c12_16, %c12_17, %c0_18], %27 {strides = array<i32>} : memref<16x16x128xf32, #tpu.memory_space<vmem>>, vector<4x4x128xf32>,
      %29 = vector.extract_strided_slice %3 {offsets = [0, 0], sizes = [64, 32], strides = [1, 1]} : vector<256x32xbf16> to vector<64x32xbf16>
      %c0_19 = arith.constant 0 : index
      %c1 = arith.constant 1 : index
      %c0_20 = arith.constant 0 : index
      %c0_21 = arith.constant 0 : index
      %30 = vector.load %arg5[%c0_19, %c1, %c0_20, %c0_21] : memref<1x8x32x128xbf16, #tpu.memory_space<vmem>>, vector<1x1x32x128xbf16>
      %31 = vector.shape_cast %30 : vector<1x1x32x128xbf16> to vector<32x128xbf16>
      %cst_22 = arith.constant dense<0.000000e+00> : vector<64x128xf32>
      %32 = tpu.matmul %29, %31, %cst_22 {dimension_numbers = #tpu.dot_dimension_numbers<[1], [0], [0], [1], [0, 0, 1, 1], [], []>} : vector<64x32xbf16>, vector<32x128xbf16>, vector<64x128xf32> -> vector<64x128xf32>
      %33 = vector.shape_cast %32 : vector<64x128xf32> to vector<4x16x128xf32>
      %c12_23 = arith.constant 12 : index
      %c0_24 = arith.constant 0 : index
      %c0_25 = arith.constant 0 : index
      %34 = vector.load %arg9[%c12_23, %c0_24, %c0_25] : memref<16x16x128xf32, #tpu.memory_space<vmem>>, vector<4x16x128xf32>
      %35 = arith.addf %34, %33 : vector<4x16x128xf32>
      %c12_26 = arith.constant 12 : index
      %c0_27 = arith.constant 0 : index
      %c0_28 = arith.constant 0 : index
      %36 = vector.load %arg9[%c12_26, %c0_27, %c0_28] : memref<16x16x128xf32, #tpu.memory_space<vmem>>, vector<4x16x128xf32>
      tpu.vector_store %arg9[%c12_26, %c0_27, %c0_28], %35 {strides = array<i32>} : memref<16x16x128xf32, #tpu.memory_space<vmem>>, vector<4x16x128xf32>,
      %37 = vector.extract_strided_slice %3 {offsets = [0, 0], sizes = [64, 32], strides = [1, 1]} : vector<256x32xbf16> to vector<64x32xbf16>
      %c0_29 = arith.constant 0 : index
      %c2 = arith.constant 2 : index
      %c0_30 = arith.constant 0 : index
      %c0_31 = arith.constant 0 : index
      %38 = vector.load %arg5[%c0_29, %c2, %c0_30, %c0_31] : memref<1x8x32x128xbf16, #tpu.memory_space<vmem>>, vector<1x1x32x128xbf16>
      %39 = vector.shape_cast %38 : vector<1x1x32x128xbf16> to vector<32x128xbf16>
      %cst_32 = arith.constant dense<0.000000e+00> : vector<64x128xf32>
      %40 = tpu.matmul %37, %39, %cst_32 {dimension_numbers = #tpu.dot_dimension_numbers<[1], [0], [0], [1], [0, 0, 1, 1], [], []>} : vector<64x32xbf16>, vector<32x128xbf16>, vector<64x128xf32> -> vector<64x128xf32>
      %41 = vector.shape_cast %40 : vector<64x128xf32> to vector<4x16x128xf32>
      %42 = vector.extract_strided_slice %41 {offsets = [0, 12, 0], sizes = [4, 4, 128], strides = [1, 1, 1]} : vector<4x16x128xf32> to vector<4x4x128xf32>
      %c12_33 = arith.constant 12 : index
      %c0_34 = arith.constant 0 : index
      %c0_35 = arith.constant 0 : index
      %43 = vector.load %arg9[%c12_33, %c0_34, %c0_35] : memref<16x16x128xf32, #tpu.memory_space<vmem>>, vector<4x4x128xf32>
      %44 = arith.addf %43, %42 : vector<4x4x128xf32>
      %c12_36 = arith.constant 12 : index
      %c0_37 = arith.constant 0 : index
      %c0_38 = arith.constant 0 : index
      %45 = vector.load %arg9[%c12_36, %c0_37, %c0_38] : memref<16x16x128xf32, #tpu.memory_space<vmem>>, vector<4x4x128xf32>
      tpu.vector_store %arg9[%c12_36, %c0_37, %c0_38], %44 {strides = array<i32>} : memref<16x16x128xf32, #tpu.memory_space<vmem>>, vector<4x4x128xf32>,
      %c0_39 = arith.constant 0 : index
      %c3 = arith.constant 3 : index
      %c0_40 = arith.constant 0 : index
      %c0_41 = arith.constant 0 : index
      %46 = vector.load %arg5[%c0_39, %c3, %c0_40, %c0_41] : memref<1x8x32x128xbf16, #tpu.memory_space<vmem>>, vector<1x1x32x128xbf16>
      %47 = vector.shape_cast %46 : vector<1x1x32x128xbf16> to vector<32x128xbf16>
      %cst_42 = arith.constant dense<0.000000e+00> : vector<256x128xf32>
      %48 = tpu.matmul %3, %47, %cst_42 {dimension_numbers = #tpu.dot_dimension_numbers<[1], [0], [0], [1], [0, 0, 1, 1], [], []>} : vector<256x32xbf16>, vector<32x128xbf16>, vector<256x128xf32> -> vector<256x128xf32>
      %49 = vector.shape_cast %48 : vector<256x128xf32> to vector<16x16x128xf32>
      %50 = vector.extract_strided_slice %49 {offsets = [0, 0, 0], sizes = [16, 4, 128], strides = [1, 1, 1]} : vector<16x16x128xf32> to vector<16x4x128xf32>
      %c0_43 = arith.constant 0 : index
      %c12_44 = arith.constant 12 : index
      %c0_45 = arith.constant 0 : index
      %51 = vector.load %arg9[%c0_43, %c12_44, %c0_45] : memref<16x16x128xf32, #tpu.memory_space<vmem>>, vector<16x4x128xf32>
      %52 = arith.addf %51, %50 : vector<16x4x128xf32>
      %c0_46 = arith.constant 0 : index
      %c12_47 = arith.constant 12 : index
      %c0_48 = arith.constant 0 : index
      %53 = vector.load %arg9[%c0_46, %c12_47, %c0_48] : memref<16x16x128xf32, #tpu.memory_space<vmem>>, vector<16x4x128xf32>
      tpu.vector_store %arg9[%c0_46, %c12_47, %c0_48], %52 {strides = array<i32>} : memref<16x16x128xf32, #tpu.memory_space<vmem>>, vector<16x4x128xf32>,
      %c0_49 = arith.constant 0 : index
      %c4 = arith.constant 4 : index
      %c0_50 = arith.constant 0 : index
      %c0_51 = arith.constant 0 : index
      %54 = vector.load %arg5[%c0_49, %c4, %c0_50, %c0_51] : memref<1x8x32x128xbf16, #tpu.memory_space<vmem>>, vector<1x1x32x128xbf16>
      %55 = vector.shape_cast %54 : vector<1x1x32x128xbf16> to vector<32x128xbf16>
      %cst_52 = arith.constant dense<0.000000e+00> : vector<256x128xf32>
      %56 = tpu.matmul %3, %55, %cst_52 {dimension_numbers = #tpu.dot_dimension_numbers<[1], [0], [0], [1], [0, 0, 1, 1], [], []>} : vector<256x32xbf16>, vector<32x128xbf16>, vector<256x128xf32> -> vector<256x128xf32>
      %57 = vector.shape_cast %56 : vector<256x128xf32> to vector<16x16x128xf32>
      %58 = vector.extract_strided_slice %57 {offsets = [0, 12, 0], sizes = [16, 4, 128], strides = [1, 1, 1]} : vector<16x16x128xf32> to vector<16x4x128xf32>
      %c0_53 = arith.constant 0 : index
      %c0_54 = arith.constant 0 : index
      %c0_55 = arith.constant 0 : index
      %59 = vector.load %arg9[%c0_53, %c0_54, %c0_55] : memref<16x16x128xf32, #tpu.memory_space<vmem>>, vector<16x4x128xf32>
      %60 = arith.addf %59, %58 : vector<16x4x128xf32>
      %c0_56 = arith.constant 0 : index
      %c0_57 = arith.constant 0 : index
      %c0_58 = arith.constant 0 : index
      %61 = vector.load %arg9[%c0_56, %c0_57, %c0_58] : memref<16x16x128xf32, #tpu.memory_space<vmem>>, vector<16x4x128xf32>
      tpu.vector_store %arg9[%c0_56, %c0_57, %c0_58], %60 {strides = array<i32>} : memref<16x16x128xf32, #tpu.memory_space<vmem>>, vector<16x4x128xf32>,
      %62 = vector.extract_strided_slice %3 {offsets = [192, 0], sizes = [64, 32], strides = [1, 1]} : vector<256x32xbf16> to vector<64x32xbf16>
      %c0_59 = arith.constant 0 : index
      %c5 = arith.constant 5 : index
      %c0_60 = arith.constant 0 : index
      %c0_61 = arith.constant 0 : index
      %63 = vector.load %arg5[%c0_59, %c5, %c0_60, %c0_61] : memref<1x8x32x128xbf16, #tpu.memory_space<vmem>>, vector<1x1x32x128xbf16>
      %64 = vector.shape_cast %63 : vector<1x1x32x128xbf16> to vector<32x128xbf16>
      %cst_62 = arith.constant dense<0.000000e+00> : vector<64x128xf32>
      %65 = tpu.matmul %62, %64, %cst_62 {dimension_numbers = #tpu.dot_dimension_numbers<[1], [0], [0], [1], [0, 0, 1, 1], [], []>} : vector<64x32xbf16>, vector<32x128xbf16>, vector<64x128xf32> -> vector<64x128xf32>
      %66 = vector.shape_cast %65 : vector<64x128xf32> to vector<4x16x128xf32>
      %67 = vector.extract_strided_slice %66 {offsets = [0, 0, 0], sizes = [4, 4, 128], strides = [1, 1, 1]} : vector<4x16x128xf32> to vector<4x4x128xf32>
      %c0_63 = arith.constant 0 : index
      %c12_64 = arith.constant 12 : index
      %c0_65 = arith.constant 0 : index
      %68 = vector.load %arg9[%c0_63, %c12_64, %c0_65] : memref<16x16x128xf32, #tpu.memory_space<vmem>>, vector<4x4x128xf32>
      %69 = arith.addf %68, %67 : vector<4x4x128xf32>
      %c0_66 = arith.constant 0 : index
      %c12_67 = arith.constant 12 : index
      %c0_68 = arith.constant 0 : index
      %70 = vector.load %arg9[%c0_66, %c12_67, %c0_68] : memref<16x16x128xf32, #tpu.memory_space<vmem>>, vector<4x4x128xf32>
      tpu.vector_store %arg9[%c0_66, %c12_67, %c0_68], %69 {strides = array<i32>} : memref<16x16x128xf32, #tpu.memory_space<vmem>>, vector<4x4x128xf32>,
      %71 = vector.extract_strided_slice %3 {offsets = [192, 0], sizes = [64, 32], strides = [1, 1]} : vector<256x32xbf16> to vector<64x32xbf16>
      %c0_69 = arith.constant 0 : index
      %c6 = arith.constant 6 : index
      %c0_70 = arith.constant 0 : index
      %c0_71 = arith.constant 0 : index
      %72 = vector.load %arg5[%c0_69, %c6, %c0_70, %c0_71] : memref<1x8x32x128xbf16, #tpu.memory_space<vmem>>, vector<1x1x32x128xbf16>
      %73 = vector.shape_cast %72 : vector<1x1x32x128xbf16> to vector<32x128xbf16>
      %cst_72 = arith.constant dense<0.000000e+00> : vector<64x128xf32>
      %74 = tpu.matmul %71, %73, %cst_72 {dimension_numbers = #tpu.dot_dimension_numbers<[1], [0], [0], [1], [0, 0, 1, 1], [], []>} : vector<64x32xbf16>, vector<32x128xbf16>, vector<64x128xf32> -> vector<64x128xf32>
      %75 = vector.shape_cast %74 : vector<64x128xf32> to vector<4x16x128xf32>
      %c0_73 = arith.constant 0 : index
      %c0_74 = arith.constant 0 : index
      %c0_75 = arith.constant 0 : index
      %76 = vector.load %arg9[%c0_73, %c0_74, %c0_75] : memref<16x16x128xf32, #tpu.memory_space<vmem>>, vector<4x16x128xf32>
      %77 = arith.addf %76, %75 : vector<4x16x128xf32>
      %c0_76 = arith.constant 0 : index
      %c0_77 = arith.constant 0 : index
      %c0_78 = arith.constant 0 : index
      %78 = vector.load %arg9[%c0_76, %c0_77, %c0_78] : memref<16x16x128xf32, #tpu.memory_space<vmem>>, vector<4x16x128xf32>
      tpu.vector_store %arg9[%c0_76, %c0_77, %c0_78], %77 {strides = array<i32>} : memref<16x16x128xf32, #tpu.memory_space<vmem>>, vector<4x16x128xf32>,
      %79 = vector.extract_strided_slice %3 {offsets = [192, 0], sizes = [64, 32], strides = [1, 1]} : vector<256x32xbf16> to vector<64x32xbf16>
      %c0_79 = arith.constant 0 : index
      %c7 = arith.constant 7 : index
      %c0_80 = arith.constant 0 : index
      %c0_81 = arith.constant 0 : index
      %80 = vector.load %arg5[%c0_79, %c7, %c0_80, %c0_81] : memref<1x8x32x128xbf16, #tpu.memory_space<vmem>>, vector<1x1x32x128xbf16>
      %81 = vector.shape_cast %80 : vector<1x1x32x128xbf16> to vector<32x128xbf16>
      %cst_82 = arith.constant dense<0.000000e+00> : vector<64x128xf32>
      %82 = tpu.matmul %79, %81, %cst_82 {dimension_numbers = #tpu.dot_dimension_numbers<[1], [0], [0], [1], [0, 0, 1, 1], [], []>} : vector<64x32xbf16>, vector<32x128xbf16>, vector<64x128xf32> -> vector<64x128xf32>
      %83 = vector.shape_cast %82 : vector<64x128xf32> to vector<4x16x128xf32>
      %84 = vector.extract_strided_slice %83 {offsets = [0, 12, 0], sizes = [4, 4, 128], strides = [1, 1, 1]} : vector<4x16x128xf32> to vector<4x4x128xf32>
      %c0_83 = arith.constant 0 : index
      %c0_84 = arith.constant 0 : index
      %c0_85 = arith.constant 0 : index
      %85 = vector.load %arg9[%c0_83, %c0_84, %c0_85] : memref<16x16x128xf32, #tpu.memory_space<vmem>>, vector<4x4x128xf32>
      %86 = arith.addf %85, %84 : vector<4x4x128xf32>
      %c0_86 = arith.constant 0 : index
      %c0_87 = arith.constant 0 : index
      %c0_88 = arith.constant 0 : index
      %87 = vector.load %arg9[%c0_86, %c0_87, %c0_88] : memref<16x16x128xf32, #tpu.memory_space<vmem>>, vector<4x4x128xf32>
      tpu.vector_store %arg9[%c0_86, %c0_87, %c0_88], %86 {strides = array<i32>} : memref<16x16x128xf32, #tpu.memory_space<vmem>>, vector<4x4x128xf32>,
    } else {
    }
    %c1_i32_8 = arith.constant 1 : i32
    %16 = arith.cmpi sge, %arg1, %c1_i32_8 : i32
    %17 = arith.andi %16, %1 : i1
    %18 = arith.extui %17 : i1 to i32
    %c0_i32_9 = arith.constant 0 : i32
    %19 = arith.cmpi ne, %18, %c0_i32_9 : i32
    scf.if %19 {
      %c0_10 = arith.constant 0 : index
      %c0_11 = arith.constant 0 : index
      %c0_12 = arith.constant 0 : index
      %20 = vector.load %arg9[%c0_10, %c0_11, %c0_12] : memref<16x16x128xf32, #tpu.memory_space<vmem>>, vector<16x16x128xf32>
      %c0_13 = arith.constant 0 : index
      %c0_14 = arith.constant 0 : index
      %c0_15 = arith.constant 0 : index
      %21 = vector.load %arg7[%c0_13, %c0_14, %c0_15] : memref<1x1x128xf32, #tpu.memory_space<vmem>>, vector<1x1x128xf32>
      %22 = vector.broadcast %21 : vector<1x1x128xf32> to vector<16x16x128xf32>
      %23 = arith.addf %20, %22 : vector<16x16x128xf32>
      %cst = arith.constant 0.000000e+00 : f32
      %24 = vector.broadcast %cst : f32 to vector<16x16x128xf32>
      %25 = arith.maximumf %23, %24 : vector<16x16x128xf32>
      %26 = arith.truncf %25 : vector<16x16x128xf32> to vector<16x16x128xbf16>
      %c0_16 = arith.constant 0 : index
      %c0_17 = arith.constant 0 : index
      %c0_18 = arith.constant 0 : index
      %c0_19 = arith.constant 0 : index
      %27 = vector.load %arg8[%c0_16, %c0_17, %c0_18, %c0_19] : memref<1x16x16x128xbf16, #tpu.memory_space<vmem>>, vector<1x16x16x128xbf16>
      %28 = vector.shape_cast %27 : vector<1x16x16x128xbf16> to vector<16x16x128xbf16>
      %29 = vector.shape_cast %26 : vector<16x16x128xbf16> to vector<1x16x16x128xbf16>
      tpu.vector_store %arg8[%c0_16, %c0_17, %c0_18, %c0_19], %29 {strides = array<i32>} : memref<1x16x16x128xbf16, #tpu.memory_space<vmem>>, vector<1x16x16x128xbf16>,
    } else {
    }
    return
  }
  func.func @transform_0(%arg0: i32, %arg1: i32, %arg2: i32) -> (i32, i32, i32) {
    %c0_i32 = arith.constant 0 : i32
    %c0_i32_0 = arith.constant 0 : i32
    return %arg0, %c0_i32, %arg2 : i32, i32, i32
  }
  func.func @transform_1(%arg0: i32, %arg1: i32, %arg2: i32) -> (i32, i32, i32) {
    %c1_i32 = arith.constant 1 : i32
    %0 = arith.subi %arg1, %c1_i32 : i32
    %c0_i32 = arith.constant 0 : i32
    %1 = arith.maxsi %0, %c0_i32 : i32
    %c0_i32_0 = arith.constant 0 : i32
    %c0_i32_1 = arith.constant 0 : i32
    return %1, %arg2, %c0_i32_0 : i32, i32, i32
  }
  func.func @transform_2(%arg0: i32, %arg1: i32, %arg2: i32) -> (i32, i32, i32, i32) {
    %c2_i32 = arith.constant 2 : i32
    %0 = arith.subi %arg1, %c2_i32 : i32
    %c0_i32 = arith.constant 0 : i32
    %1 = arith.maxsi %0, %c0_i32 : i32
    %c2_i32_0 = arith.constant 2 : i32
    %2 = arith.minsi %1, %c2_i32_0 : i32
    %c0_i32_1 = arith.constant 0 : i32
    %c0_i32_2 = arith.constant 0 : i32
    %c0_i32_3 = arith.constant 0 : i32
    return %2, %c0_i32_1, %arg2, %c0_i32_2 : i32, i32, i32, i32
  }
  func.func @transform_3(%arg0: i32, %arg1: i32, %arg2: i32) -> (i32, i32) {
    %c0_i32 = arith.constant 0 : i32
    %c0_i32_0 = arith.constant 0 : i32
    return %arg2, %c0_i32 : i32, i32
  }
  func.func @transform_4(%arg0: i32, %arg1: i32, %arg2: i32) -> (i32, i32, i32) {
    %c0_i32 = arith.constant 0 : i32
    %c0_i32_0 = arith.constant 0 : i32
    %c0_i32_1 = arith.constant 0 : i32
    return %arg1, %c0_i32, %c0_i32_0 : i32, i32, i32
  }
  func.func @transform_5(%arg0: i32, %arg1: i32, %arg2: i32) -> (i32, i32, i32, i32) {
    %c0_i32 = arith.constant 0 : i32
    %c0_i32_0 = arith.constant 0 : i32
    %c0_i32_1 = arith.constant 0 : i32
    return %arg0, %c0_i32, %c0_i32_0, %arg1 : i32, i32, i32, i32
  }
}

</mosaic_0001>

<llo_original>
// kernel: tpu_custom_call.1
$region0: #{tpu_custom_call.1}
  #allocation0 [shape = 'u32[]', space=smem, size = 0x4, offset = 0x4, fixed_abs, tag = 'smem constant byte address 0x4 - core index']
  #allocation1 [shape = 'u32[144,128]{1,0:T(1,128)}', space=vmem, size = 0x12000, scoped, tag = 'internal scratch']
  #allocation2 [shape = 'f32[16,16,128]{2,1,0:T(8,128)}', space=vmem, size = 0x20000, scoped, tag = 'scratch operand']
  #allocation3 [shape = 'f32[1,128]{1,0:T(1,128)}', space=vmem, size = 0x200, scoped, tag = 'scratch operand']
  %s0 = inlined_call_operand.vmem [shape: bf16[2,256,32], index: 0, kind: input, shape index: {}]
  %s1 = inlined_call_operand.vmem [shape: bf16[4,32,128], index: 1, kind: input, shape index: {}]
  %s2 = inlined_call_operand.hbm [shape: bf16[3,8,32,128], index: 2, kind: input, shape index: {}]
  %s3 = inlined_call_operand.vmem [shape: bf16[32,128], index: 3, kind: input, shape index: {}]
  %s4 = inlined_call_operand.vmem [shape: f32[5,1,128], index: 4, kind: input, shape index: {}]
  %s5 = inlined_call_operand.hbm [shape: bf16[2,16,16,640], index: 5, kind: output, shape index: {}]
  %s6 = sld [smem:[#allocation0]]
  $region93: #{tpu_custom_call.1} parent=0
    _
  %s8 = ssub.s32 1, %s6
  %s9 = scalar_select 0, %s8, %s6
  $region1: #{tpu_custom_call.1} parent=0
    #allocation4 [shape = 'u8[131072]{0}', space=vmem, size = 0x20000, scoped, tag = 'input window, operand 2']
    #allocation5 [shape = 's32[2]{0}', space=sflag, size = 0x8, scoped, tag = 'scoped memory for tpu_custom_call.1']
    #allocation6 [shape = 's32[2]{0}', space=sflag, size = 0x8, scoped, tag = 'scoped memory for tpu_custom_call.1']
    #allocation7 [shape = 'u8[131072]{0}', space=vmem, size = 0x20000, scoped, tag = 'output window, operand 0']
    %10 = vsyncpa [#allocation5], 0
    %s11 = scalar_lea.sflag [#allocation5], 1
    %12 = vsyncpa %s11, 0
    %13 = vsyncpa [#allocation6], 0
    %s14 = scalar_lea.sflag [#allocation6], 1
    %15 = vsyncpa %s14, 0
    loop: start=0, step=1, limit=12
    $region2: #{tpu_custom_call.1} parent=1 // loop_pre_header
      _
    $region3: #{tpu_custom_call.1} parent=1 // loop_header
      %s17 = sphi 0, %s21
      %p18 = scmp.ge.s32.totalorder %s17, 12
      %s24 = sphi 0, %s43
      %s25 = sphi 0, %s39
      %s26 = sphi 0, %s35
      %s27 = sphi 0, %s24
      %s28 = sphi 0, %s25
      %s29 = sphi 0, %s26
      %s30 = sphi 0, %s27
      %s31 = sphi 0, %s28
      %s32 = sphi 0, %s29
      %s48 = sphi 0, %s50
      %s51 = sphi 0, %s48
      %s52 = sphi 0, %s51
      %s68 = sphi 0, %s52
      %s82 = sphi 0, %s84
      %s85 = sphi 0, %s82
      %s86 = sphi 0, %s85
      %s102 = sphi 0, %s86
      %s120 = sphi 0, %s122
      %s123 = sphi 0, %s120
      %s124 = sphi 0, %s123
      %s140 = sphi 0, %s124
      %s146 = sphi 0, %s148
      %s149 = sphi 0, %s146
      %s150 = sphi 0, %s149
      %s166 = sphi 0, %s150
      %s172 = sphi 0, %s174
      %s175 = sphi 0, %s172
      %s176 = sphi 0, %s175
      %s192 = sphi 0, %s176
      %s200 = sphi 0, %s202
      %s203 = sphi 0, %s200
      %s204 = sphi 0, %s203
      %s220 = sphi 0, %s204
    $region4: #{tpu_custom_call.1} parent=1 // loop_header_branch
      %20 = sbr.rel (%p18) target = $region8
    $region5: #{tpu_custom_call.1} parent=1 // loop_body
      %s22 = ssub.s32 %s17, 1
      %s23 = ssub.s32 %s17, 2
      %s33 = sadd.s32 1, %s26
      %p34 = scmp.ge.s32.totalorder %s33, 1
      %s35 = scalar_select %p34, 0, %s33
      %s36 = sadd.s32 1, %s25
      %s37 = scalar_select %p34, %s36, %s25
      %p38 = scmp.ge.s32.totalorder %s37, 5
      %s39 = scalar_select %p38, 0, %s37
      %s40 = sadd.s32 1, %s24
      %s41 = scalar_select %p38, %s40, %s24
      %p42 = scmp.ge.s32.totalorder %s41, 2
      %s43 = scalar_select %p42, 0, %s41
      %s44 = ssub.s32 %s24, %s43
      %s45 = ssub.s32 %s26, %s35
      %s46 = sor.u32 %s44, %s45
      %p47 = scmp.eq.s32.totalorder %s46, 0
      %s49 = sadd.s32 %s48, 1
      %s50 = scalar_select %p47, %s48, %s49
      %p53 = pneg %p47
      %p54 = scmp.eq.s32.totalorder %s17, 9
      %p55 = por %p53, %p54
      %p56 = scmp.ne.s32.totalorder %s48, %s51
      %p57 = scmp.eq.s32.totalorder %s17, 0
      %p58 = por %p56, %p57
      %p59 = scmp.ne.s32.totalorder %s48, %s51
      %p60 = scmp.eq.s32.totalorder %s22, 9
      %p61 = por %p59, %p60
      %p62 = scmp.ne.s32.totalorder %s51, %s52
      %p63 = scmp.eq.s32.totalorder %s22, 0
      %p64 = por %p62, %p63
      %p65 = scmp.ne.s32.totalorder %s51, %s52
      %p66 = scmp.eq.s32.totalorder %s23, 9
      %p67 = por %p65, %p66
      %p69 = scmp.ne.s32.totalorder %s52, %s68
      %p70 = scmp.eq.s32.totalorder %s23, 0
      %p71 = por %p69, %p70
      %s72 = ssub.s32 %s25, 1
      %p73 = scmp.gt.s32.totalorder %s72, 0
      %s74 = scalar_select %p73, %s72, 0
      %s75 = ssub.s32 %s39, 1
      %p76 = scmp.gt.s32.totalorder %s75, 0
      %s77 = scalar_select %p76, %s75, 0
      %s78 = ssub.s32 %s74, %s77
      %s79 = ssub.s32 %s26, %s35
      %s80 = sor.u32 %s78, %s79
      %p81 = scmp.eq.s32.totalorder %s80, 0
      %s83 = sadd.s32 %s82, 1
      %s84 = scalar_select %p81, %s82, %s83
      %p87 = pneg %p81
      %p88 = scmp.eq.s32.totalorder %s17, 9
      %p89 = por %p87, %p88
      %p90 = scmp.ne.s32.totalorder %s82, %s85
      %p91 = scmp.eq.s32.totalorder %s17, 0
      %p92 = por %p90, %p91
      %p93 = scmp.ne.s32.totalorder %s82, %s85
      %p94 = scmp.eq.s32.totalorder %s22, 9
      %p95 = por %p93, %p94
      %p96 = scmp.ne.s32.totalorder %s85, %s86
      %p97 = scmp.eq.s32.totalorder %s22, 0
      %p98 = por %p96, %p97
      %p99 = scmp.ne.s32.totalorder %s85, %s86
      %p100 = scmp.eq.s32.totalorder %s23, 9
      %p101 = por %p99, %p100
      %p103 = scmp.ne.s32.totalorder %s86, %s102
      %p104 = scmp.eq.s32.totalorder %s23, 0
      %p105 = por %p103, %p104
      %s106 = ssub.s32 %s25, 2
      %p107 = scmp.gt.s32.totalorder %s106, 0
      %s108 = scalar_select %p107, %s106, 0
      %p109 = scmp.lt.s32.totalorder %s108, 2
      %s110 = scalar_select %p109, %s108, 2
      %s111 = ssub.s32 %s39, 2
      %p112 = scmp.gt.s32.totalorder %s111, 0
      %s113 = scalar_select %p112, %s111, 0
      %p114 = scmp.lt.s32.totalorder %s113, 2
      %s115 = scalar_select %p114, %s113, 2
      %s116 = ssub.s32 %s110, %s115
      %s117 = ssub.s32 %s26, %s35
      %s118 = sor.u32 %s116, %s117
      %p119 = scmp.eq.s32.totalorder %s118, 0
      %s121 = sadd.s32 %s120, 1
      %s122 = scalar_select %p119, %s120, %s121
      %p125 = pneg %p119
      %p126 = scmp.eq.s32.totalorder %s17, 9
      %p127 = por %p125, %p126
      %p128 = scmp.ne.s32.totalorder %s120, %s123
      %p129 = scmp.eq.s32.totalorder %s17, 0
      %p130 = por %p128, %p129
      %p131 = scmp.ne.s32.totalorder %s120, %s123
      %p132 = scmp.eq.s32.totalorder %s22, 9
      %p133 = por %p131, %p132
      %p134 = scmp.ne.s32.totalorder %s123, %s124
      %p135 = scmp.eq.s32.totalorder %s22, 0
      %p136 = por %p134, %p135
      %p137 = scmp.ne.s32.totalorder %s123, %s124
      %p138 = scmp.eq.s32.totalorder %s23, 9
      %p139 = por %p137, %p138
      %p141 = scmp.ne.s32.totalorder %s124, %s140
      %p142 = scmp.eq.s32.totalorder %s23, 0
      %p143 = por %p141, %p142
      %s144 = ssub.s32 %s26, %s35
      %p145 = scmp.eq.s32.totalorder %s144, 0
      %s147 = sadd.s32 %s146, 1
      %s148 = scalar_select %p145, %s146, %s147
      %p151 = pneg %p145
      %p152 = scmp.eq.s32.totalorder %s17, 9
      %p153 = por %p151, %p152
      %p154 = scmp.ne.s32.totalorder %s146, %s149
      %p155 = scmp.eq.s32.totalorder %s17, 0
      %p156 = por %p154, %p155
      %p157 = scmp.ne.s32.totalorder %s146, %s149
      %p158 = scmp.eq.s32.totalorder %s22, 9
      %p159 = por %p157, %p158
      %p160 = scmp.ne.s32.totalorder %s149, %s150
      %p161 = scmp.eq.s32.totalorder %s22, 0
      %p162 = por %p160, %p161
      %p163 = scmp.ne.s32.totalorder %s149, %s150
      %p164 = scmp.eq.s32.totalorder %s23, 9
      %p165 = por %p163, %p164
      %p167 = scmp.ne.s32.totalorder %s150, %s166
      %p168 = scmp.eq.s32.totalorder %s23, 0
      %p169 = por %p167, %p168
      %s170 = ssub.s32 %s25, %s39
      %p171 = scmp.eq.s32.totalorder %s170, 0
      %s173 = sadd.s32 %s172, 1
      %s174 = scalar_select %p171, %s172, %s173
      %p177 = pneg %p171
      %p178 = scmp.eq.s32.totalorder %s17, 9
      %p179 = por %p177, %p178
      %p180 = scmp.ne.s32.totalorder %s172, %s175
      %p181 = scmp.eq.s32.totalorder %s17, 0
      %p182 = por %p180, %p181
      %p183 = scmp.ne.s32.totalorder %s172, %s175
      %p184 = scmp.eq.s32.totalorder %s22, 9
      %p185 = por %p183, %p184
      %p186 = scmp.ne.s32.totalorder %s175, %s176
      %p187 = scmp.eq.s32.totalorder %s22, 0
      %p188 = por %p186, %p187
      %p189 = scmp.ne.s32.totalorder %s175, %s176
      %p190 = scmp.eq.s32.totalorder %s23, 9
      %p191 = por %p189, %p190
      %p193 = scmp.ne.s32.totalorder %s176, %s192
      %p194 = scmp.eq.s32.totalorder %s23, 0
      %p195 = por %p193, %p194
      %s196 = ssub.s32 %s24, %s43
      %s197 = ssub.s32 %s25, %s39
      %s198 = sor.u32 %s196, %s197
      %p199 = scmp.eq.s32.totalorder %s198, 0
      %s201 = sadd.s32 %s200, 1
      %s202 = scalar_select %p199, %s200, %s201
      %p205 = pneg %p199
      %p206 = scmp.eq.s32.totalorder %s17, 9
      %p207 = por %p205, %p206
      %p208 = scmp.ne.s32.totalorder %s200, %s203
      %p209 = scmp.eq.s32.totalorder %s17, 0
      %p210 = por %p208, %p209
      %p211 = scmp.ne.s32.totalorder %s200, %s203
      %p212 = scmp.eq.s32.totalorder %s22, 9
      %p213 = por %p211, %p212
      %p214 = scmp.ne.s32.totalorder %s203, %s204
      %p215 = scmp.eq.s32.totalorder %s22, 0
      %p216 = por %p214, %p215
      %p217 = scmp.ne.s32.totalorder %s203, %s204
      %p218 = scmp.eq.s32.totalorder %s23, 9
      %p219 = por %p217, %p218
      %p221 = scmp.ne.s32.totalorder %s204, %s220
      %p222 = scmp.eq.s32.totalorder %s23, 0
      %p223 = por %p221, %p222
      %p224 = scmp.le.s32.totalorder 1, %s17
      %p225 = scmp.lt.s32.totalorder %s17, 11
      %p226 = pnand %p224, %p225
      %p227 = pneg %p226
      // Predicated region
      $region9: #{tpu_custom_call.1} parent=5 // pred_check
        _
      $region10: #{tpu_custom_call.1} parent=5 // pred_check_branch
        %229 = sbr.rel (%p226) target = $region12
      $region11: #{tpu_custom_call.1} parent=5 // pred_region
        %s230 = ssub.s32 %s17, 1
        // Predicated region
        $region13: #{tpu_custom_call.1} parent=11 // pred_check
          %p231 = pneg %p162
        $region14: #{tpu_custom_call.1} parent=11 // pred_check_branch
          %233 = sbr.rel (%p231) target = $region16
        $region15: #{tpu_custom_call.1} parent=11 // pred_region
          %s234 = smul.u32 4, %s29
          %p235 = scmp.lt.s32.totalorder %s234, 3
          %s236 = scalar_select %p235, %s234, 3
          %s237 = smul.addr %s236, 4
          %s238 = scalar_lea.vmem %s3, %s237
          %s239 = smul.u32 4, %s29
        $region16: #{tpu_custom_call.1} parent=11 // pred_fallthru
          _
      $region12: #{tpu_custom_call.1} parent=5 // pred_fallthru
        _
      %p240 = scmp.lt.s32.totalorder %s17, 10
      // Predicated region
      $region17: #{tpu_custom_call.1} parent=5 // pred_check
        %p241 = pneg %p240
      $region18: #{tpu_custom_call.1} parent=5 // pred_check_branch
        %243 = sbr.rel (%p241) target = $region20
      $region19: #{tpu_custom_call.1} parent=5 // pred_region
        // Predicated region
        $region21: #{tpu_custom_call.1} parent=19 // pred_check
          %p244 = pneg %p58
        $region22: #{tpu_custom_call.1} parent=19 // pred_check_branch
          %246 = sbr.rel (%p244) target = $region24
        $region23: #{tpu_custom_call.1} parent=19 // pred_region
          %p247 = scmp.lt.s32.totalorder %s24, 1
          %s248 = scalar_select %p247, %s24, 1
          %p249 = scmp.lt.s32.totalorder %s26, 0
          %s250 = scalar_select %p249, %s26, 0
          %s251 = smul.addr %s248, 32
          %s252 = sadd.s32 %s250, %s251
          %s253 = smul.addr %s252, 4
          %s254 = scalar_lea.vmem %s0, %s253
        $region24: #{tpu_custom_call.1} parent=19 // pred_fallthru
          _
        // Predicated region
        $region25: #{tpu_custom_call.1} parent=19 // pred_check
          %p255 = pneg %p92
        $region26: #{tpu_custom_call.1} parent=19 // pred_check_branch
          %257 = sbr.rel (%p255) target = $region28
        $region27: #{tpu_custom_call.1} parent=19 // pred_region
          %s258 = ssub.s32 %s25, 1
          %p259 = scmp.gt.s32.totalorder %s258, 0
          %s260 = scalar_select %p259, %s258, 0
          %s261 = smul.u32 4, %s26
          %p262 = scmp.lt.s32.totalorder %s260, 3
          %s263 = scalar_select %p262, %s260, 3
          %p264 = scmp.lt.s32.totalorder %s261, 3
          %s265 = scalar_select %p264, %s261, 3
          %s266 = smul.addr %s263, 4
          %s267 = sadd.s32 %s265, %s266
          %s268 = smul.addr %s267, 4
          %s269 = scalar_lea.vmem %s1, %s268
          %s270 = ssub.s32 %s25, 1
          %p271 = scmp.gt.s32.totalorder %s270, 0
          %s272 = scalar_select %p271, %s270, 0
          %s273 = smul.u32 4, %s26
        $region28: #{tpu_custom_call.1} parent=19 // pred_fallthru
          _
        // Predicated region
        $region29: #{tpu_custom_call.1} parent=19 // pred_check
          %p274 = pneg %p130
        $region30: #{tpu_custom_call.1} parent=19 // pred_check_branch
          %276 = sbr.rel (%p274) target = $region32
        $region31: #{tpu_custom_call.1} parent=19 // pred_region
          %s277 = sand.u32 %s120, 1
          %s278 = scalar_lea.sflag [#allocation5], %s277
          %s279 = sand.u32 %s120, 1
          %s280 = smul.addr %s279, 128
          %s281 = scalar_lea.vmem [#allocation4], %s280
          %s282 = ssub.s32 %s25, 2
          %p283 = scmp.gt.s32.totalorder %s282, 0
          %s284 = scalar_select %p283, %s282, 0
          %p285 = scmp.lt.s32.totalorder %s284, 2
          %s286 = scalar_select %p285, %s284, 2
          %s287 = smul.u32 4, %s26
          %s289 = ssub.s32 2048, 2048
          %290 = vsyncadd %s278, %s289
          %s291 = smul.addr %s286, 32
          %s292 = sadd.s32 %s287, %s291
          %s293 = smul.addr %s292, 64
          %s294 = scalar_lea.hbm %s2, %s293
          %s295 = sshll.u32 %s281, 4
          %s296 = int_to_ptr.vmem [resolvable:$true] %s295
          %301 = dma.hbm_to_vmem [thread:$0]  %s294, 2048, %s296, %s278, 64, 64, 4
        $region32: #{tpu_custom_call.1} parent=19 // pred_fallthru
          _
        // Predicated region
        $region33: #{tpu_custom_call.1} parent=19 // pred_check
          %p302 = pneg %p182
        $region34: #{tpu_custom_call.1} parent=19 // pred_check_branch
          %304 = sbr.rel (%p302) target = $region36
        $region35: #{tpu_custom_call.1} parent=19 // pred_region
          %p305 = scmp.lt.s32.totalorder %s25, 4
          %s306 = scalar_select %p305, %s25, 4
          %s307 = scalar_lea.vmem %s4, %s306
        $region36: #{tpu_custom_call.1} parent=19 // pred_fallthru
          _
      $region20: #{tpu_custom_call.1} parent=5 // pred_fallthru
        _
      %p308 = scmp.le.s32.totalorder 1, %s17
      %p309 = scmp.lt.s32.totalorder %s17, 11
      %p310 = pnand %p308, %p309
      %p311 = pneg %p310
      // Predicated region
      $region37: #{tpu_custom_call.1} parent=5 // pred_check
        _
      $region38: #{tpu_custom_call.1} parent=5 // pred_check_branch
        %313 = sbr.rel (%p310) target = $region40
      $region39: #{tpu_custom_call.1} parent=5 // pred_region
        %s314 = ssub.s32 %s17, 1
        %s315 = sand.u32 %s123, 1
        %s316 = scalar_lea.sflag [#allocation5], %s315
        %s317 = sand.u32 %s123, 1
        %s318 = smul.addr %s317, 128
        %s319 = scalar_lea.vmem [#allocation4], %s318
        // Predicated region
        $region41: #{tpu_custom_call.1} parent=39 // pred_check
          %p320 = pneg %p136
        $region42: #{tpu_custom_call.1} parent=39 // pred_check_branch
          %322 = sbr.rel (%p320) target = $region44
        $region43: #{tpu_custom_call.1} parent=39 // pred_region
          %323 = dma.done %s316, 2048
        $region44: #{tpu_custom_call.1} parent=39 // pred_fallthru
          _
        %p324 = scmp.lt.s32.totalorder %s27, 1
        %s325 = scalar_select %p324, %s27, 1
        %p326 = scmp.lt.s32.totalorder %s29, 0
        %s327 = scalar_select %p326, %s29, 0
        %s328 = smul.addr %s325, 32
        %s329 = sadd.s32 %s327, %s328
        %s330 = smul.addr %s329, 4
        %s331 = scalar_lea.vmem %s0, %s330
        %p332 = pneg %p64
        %p333 = pneg %p61
        %s334 = ssub.s32 %s28, 1
        %p335 = scmp.gt.s32.totalorder %s334, 0
        %s336 = scalar_select %p335, %s334, 0
        %s337 = smul.u32 4, %s29
        %p338 = scmp.lt.s32.totalorder %s336, 3
        %s339 = scalar_select %p338, %s336, 3
        %p340 = scmp.lt.s32.totalorder %s337, 3
        %s341 = scalar_select %p340, %s337, 3
        %s342 = smul.addr %s339, 4
        %s343 = sadd.s32 %s341, %s342
        %s344 = smul.addr %s343, 4
        %s345 = scalar_lea.vmem %s1, %s344
        %p346 = pneg %p98
        %p347 = pneg %p95
        %s348 = sand.u32 %s123, 1
        %s349 = scalar_lea.sflag [#allocation5], %s348
        %s350 = sand.u32 %s123, 1
        %s351 = smul.addr %s350, 128
        %s352 = scalar_lea.vmem [#allocation4], %s351
        %p353 = pneg %p136
        %p354 = pneg %p133
        %s355 = smul.u32 4, %s29
        %p356 = scmp.lt.s32.totalorder %s355, 3
        %s357 = scalar_select %p356, %s355, 3
        %s358 = smul.addr %s357, 4
        %s359 = scalar_lea.vmem %s3, %s358
        %p360 = pneg %p162
        %p361 = pneg %p159
        %p362 = scmp.lt.s32.totalorder %s28, 4
        %s363 = scalar_select %p362, %s28, 4
        %s364 = scalar_lea.vmem %s4, %s363
        %p365 = pneg %p188
        %p366 = pneg %p185
        %p367 = pneg %p216
        %p368 = pneg %p213
        %s369 = sand.u32 %s203, 1
        %s370 = scalar_lea.sflag [#allocation6], %s369
        %s371 = sand.u32 %s203, 1
        %s372 = smul.addr %s371, 128
        %s373 = scalar_lea.vmem [#allocation7], %s372
        %p374 = scmp.lt.s32.totalorder %s27, 1
        %s375 = scalar_select %p374, %s27, 1
        %p376 = scmp.lt.s32.totalorder %s29, 0
        %s377 = scalar_select %p376, %s29, 0
        %s378 = smul.addr %s375, 32
        %s379 = sadd.s32 %s377, %s378
        %s380 = smul.addr %s379, 4
        %s381 = scalar_lea.vmem %s0, %s380
        %s382 = ssub.s32 %s28, 1
        %p383 = scmp.gt.s32.totalorder %s382, 0
        %s384 = scalar_select %p383, %s382, 0
        %s385 = smul.u32 4, %s29
        %p386 = scmp.lt.s32.totalorder %s384, 3
        %s387 = scalar_select %p386, %s384, 3
        %p388 = scmp.lt.s32.totalorder %s385, 3
        %s389 = scalar_select %p388, %s385, 3
        %s390 = smul.addr %s387, 4
        %s391 = sadd.s32 %s389, %s390
        %s392 = smul.addr %s391, 4
        %s393 = scalar_lea.vmem %s1, %s392
        %s394 = ssub.s32 %s28, 1
        %p395 = scmp.gt.s32.totalorder %s394, 0
        %s396 = scalar_select %p395, %s394, 0
        %s397 = smul.u32 4, %s29
        %s398 = ssub.s32 %s28, 2
        %p399 = scmp.gt.s32.totalorder %s398, 0
        %s400 = scalar_select %p399, %s398, 0
        %p401 = scmp.lt.s32.totalorder %s400, 2
        %s402 = scalar_select %p401, %s400, 2
        %s403 = smul.u32 4, %s29
        %s404 = smul.u32 4, %s29
        %p405 = scmp.lt.s32.totalorder %s404, 3
        %s406 = scalar_select %p405, %s404, 3
        %s407 = smul.addr %s406, 4
        %s408 = scalar_lea.vmem %s3, %s407
        %s409 = smul.u32 4, %s29
        %p410 = scmp.lt.s32.totalorder %s28, 4
        %s411 = scalar_select %p410, %s28, 4
        %s412 = scalar_lea.vmem %s4, %s411
        %p415 = scmp.eq.s32.totalorder %s29, 0
        %v416 = vld [vmem:[%s381] sm:$0xf]
        %v417 = vld [vmem:[%s381 + $0x4] sm:$0xf]
        %v418 = vld [vmem:[%s381 + $0x8] sm:$0xf]
        %v419 = vld [vmem:[%s381 + $0xc] sm:$0xf]
        %v420 = vld [vmem:[%s381 + $0x10] sm:$0xf]
        %v421 = vld [vmem:[%s381 + $0x14] sm:$0xf]
        %v422 = vld [vmem:[%s381 + $0x18] sm:$0xf]
        %v423 = vld [vmem:[%s381 + $0x1c] sm:$0xf]
        %v424 = vld [vmem:[%s381 + $0x20] sm:$0xf]
        %v425 = vld [vmem:[%s381 + $0x24] sm:$0xf]
        %v426 = vld [vmem:[%s381 + $0x28] sm:$0xf]
        %v427 = vld [vmem:[%s381 + $0x2c] sm:$0xf]
        %v428 = vld [vmem:[%s381 + $0x30] sm:$0xf]
        %v429 = vld [vmem:[%s381 + $0x34] sm:$0xf]
        %v430 = vld [vmem:[%s381 + $0x38] sm:$0xf]
        %v431 = vld [vmem:[%s381 + $0x3c] sm:$0xf]
        %v432 = vld [vmem:[%s381 + $0x40] sm:$0xf]
        %v433 = vld [vmem:[%s381 + $0x44] sm:$0xf]
        %v434 = vld [vmem:[%s381 + $0x48] sm:$0xf]
        %v435 = vld [vmem:[%s381 + $0x4c] sm:$0xf]
        %v436 = vld [vmem:[%s381 + $0x50] sm:$0xf]
        %v437 = vld [vmem:[%s381 + $0x54] sm:$0xf]
        %v438 = vld [vmem:[%s381 + $0x58] sm:$0xf]
        %v439 = vld [vmem:[%s381 + $0x5c] sm:$0xf]
        %v440 = vld [vmem:[%s381 + $0x60] sm:$0xf]
        %v441 = vld [vmem:[%s381 + $0x64] sm:$0xf]
        %v442 = vld [vmem:[%s381 + $0x68] sm:$0xf]
        %v443 = vld [vmem:[%s381 + $0x6c] sm:$0xf]
        %v444 = vld [vmem:[%s381 + $0x70] sm:$0xf]
        %v445 = vld [vmem:[%s381 + $0x74] sm:$0xf]
        %v446 = vld [vmem:[%s381 + $0x78] sm:$0xf]
        %v447 = vld [vmem:[%s381 + $0x7c] sm:$0xf]
        %p448 = scmp.eq.s32.totalorder %s28, 0
        // Predicated region
        $region45: #{tpu_custom_call.1} parent=39 // pred_check
          %p449 = pneg %p448
        $region46: #{tpu_custom_call.1} parent=39 // pred_check_branch
          %451 = sbr.rel (%p449) target = $region48
        $region47: #{tpu_custom_call.1} parent=39 // pred_region
          // Predicated region
          $region49: #{tpu_custom_call.1} parent=47 // pred_check
            %p452 = pneg %p415
          $region50: #{tpu_custom_call.1} parent=47 // pred_check_branch
            %454 = sbr.rel (%p452) target = $region52
          $region51: #{tpu_custom_call.1} parent=47 // pred_region
            %455 = vst [vmem:[#allocation3] sm:$0x1] 0.0
          $region52: #{tpu_custom_call.1} parent=47 // pred_fallthru
            _
          %v488 = vunpack.c.l.b16 %v416
          %v489 = vunpack.c.l.b16 %v417
          %v490 = vunpack.c.l.b16 %v418
          %v491 = vunpack.c.l.b16 %v419
          %v492 = vunpack.c.l.b16 %v420
          %v493 = vunpack.c.l.b16 %v421
          %v494 = vunpack.c.l.b16 %v422
          %v495 = vunpack.c.l.b16 %v423
          %v496 = vunpack.c.l.b16 %v424
          %v497 = vunpack.c.l.b16 %v425
          %v498 = vunpack.c.l.b16 %v426
          %v499 = vunpack.c.l.b16 %v427
          %v500 = vunpack.c.l.b16 %v428
          %v501 = vunpack.c.l.b16 %v429
          %v502 = vunpack.c.l.b16 %v430
          %v503 = vunpack.c.l.b16 %v431
          %v504 = vunpack.c.l.b16 %v432
          %v505 = vunpack.c.l.b16 %v433
          %v506 = vunpack.c.l.b16 %v434
          %v507 = vunpack.c.l.b16 %v435
          %v508 = vunpack.c.l.b16 %v436
          %v509 = vunpack.c.l.b16 %v437
          %v510 = vunpack.c.l.b16 %v438
          %v511 = vunpack.c.l.b16 %v439
          %v512 = vunpack.c.l.b16 %v440
          %v513 = vunpack.c.l.b16 %v441
          %v514 = vunpack.c.l.b16 %v442
          %v515 = vunpack.c.l.b16 %v443
          %v516 = vunpack.c.l.b16 %v444
          %v517 = vunpack.c.l.b16 %v445
          %v518 = vunpack.c.l.b16 %v446
          %v519 = vunpack.c.l.b16 %v447
          %v520 = vpack.c.b16 %v489, %v488
          %v521 = vpack.c.b16 %v491, %v490
          %v522 = vpack.c.b16 %v493, %v492
          %v523 = vpack.c.b16 %v495, %v494
          %v524 = vpack.c.b16 %v497, %v496
          %v525 = vpack.c.b16 %v499, %v498
          %v526 = vpack.c.b16 %v501, %v500
          %v527 = vpack.c.b16 %v503, %v502
          %v528 = vpack.c.b16 %v505, %v504
          %v529 = vpack.c.b16 %v507, %v506
          %v530 = vpack.c.b16 %v509, %v508
          %v531 = vpack.c.b16 %v511, %v510
          %v532 = vpack.c.b16 %v513, %v512
          %v533 = vpack.c.b16 %v515, %v514
          %v534 = vpack.c.b16 %v517, %v516
          %v535 = vpack.c.b16 %v519, %v518
          %552 = vmatprep.subr.bf16.mxu0 0
          %553 = vmatpush1.bf16.msra.mxu0 %v527
          %554 = vmatprep.subr.bf16.mxu0 0
          %555 = vmatpush1.bf16.msra.mxu0 %v526
          %556 = vmatprep.subr.bf16.mxu0 0
          %557 = vmatpush1.bf16.msra.mxu0 %v525
          %558 = vmatprep.subr.bf16.mxu0 0
          %559 = vmatpush1.bf16.msra.mxu0 %v524
          %560 = vmatprep.subr.bf16.mxu0 0
          %561 = vmatpush1.bf16.msra.mxu0 %v523
          %562 = vmatprep.subr.bf16.mxu0 0
          %563 = vmatpush1.bf16.msra.mxu0 %v522
          %564 = vmatprep.subr.bf16.mxu0 0
          %565 = vmatpush1.bf16.msra.mxu0 %v521
          %566 = vmatprep.subr.bf16.mxu0 0
          %567 = vmatpush1.bf16.msra.mxu0 %v520
          %568 = vmatprep.subr.bf16.mxu0 0
          %569 = vmatpush2.bf16.msra.mxu0 %v535
          %570 = vmatprep.subr.bf16.mxu0 0
          %571 = vmatpush2.bf16.msra.mxu0 %v534
          %572 = vmatprep.subr.bf16.mxu0 0
          %573 = vmatpush2.bf16.msra.mxu0 %v533
          %574 = vmatprep.subr.bf16.mxu0 0
          %575 = vmatpush2.bf16.msra.mxu0 %v532
          %576 = vmatprep.subr.bf16.mxu0 0
          %577 = vmatpush2.bf16.msra.mxu0 %v531
          %578 = vmatprep.subr.bf16.mxu0 0
          %579 = vmatpush2.bf16.msra.mxu0 %v530
          %580 = vmatprep.subr.bf16.mxu0 0
          %581 = vmatpush2.bf16.msra.mxu0 %v529
          %582 = vmatprep.subr.bf16.mxu0 0
          %583 = vmatpush2.bf16.msra.mxu0 %v528
          %584 = vmatprep.mubr.bf16.mxu0 1065369472
          %585 = vmatmul.mubr.bf16.gmra.mxu0 1065369472
          %v586 = vpop.f32.mrf.mxu0
          %v587 = vadd.f32 0.0, %v586
          %v588 = vpop.f32.mrf.mxu0
          %v589 = vpop.f32.mrf.mxu0
          %v590 = vpop.f32.mrf.mxu0
          %591 = vdwg.mxu0
          %v592 = vld [vmem:[#allocation3] sm:$0x1]
          %v593 = vpack.c.bf16 %v587, %v587
          %v594 = vld [vmem:[%s408] sm:$0xf]
          %v595 = vld [vmem:[%s408 + $0x4] sm:$0xf]
          %v596 = vld [vmem:[%s408 + $0x8] sm:$0xf]
          %v597 = vld [vmem:[%s408 + $0xc] sm:$0xf]
          %v602 = vunpack.c.l.b16 %v594
          %v603 = vunpack.c.l.b16 %v595
          %v604 = vunpack.c.l.b16 %v596
          %v605 = vunpack.c.l.b16 %v597
          %v606 = vpack.c.b16 %v603, %v602
          %v607 = vpack.c.b16 %v605, %v604
          %vm610 = vcmask 261120
          %v612 = vsel %vm610, %v593, 0
          %614 = vmatprep.subr.bf16.mxu0 0
          %615 = vmatpush1.bf16.msra.mxu0 0
          %616 = vmatprep.subr.bf16.mxu0 0
          %617 = vmatpush1.bf16.msra.mxu0 0
          %618 = vmatprep.subr.bf16.mxu0 0
          %619 = vmatpush1.bf16.msra.mxu0 0
          %620 = vmatprep.subr.bf16.mxu0 0
          %621 = vmatpush1.bf16.msra.mxu0 0
          %622 = vmatprep.subr.bf16.mxu0 0
          %623 = vmatpush1.bf16.msra.mxu0 0
          %624 = vmatprep.subr.bf16.mxu0 0
          %625 = vmatpush1.bf16.msra.mxu0 0
          %626 = vmatprep.subr.bf16.mxu0 0
          %627 = vmatpush1.bf16.msra.mxu0 %v607
          %628 = vmatprep.subr.bf16.mxu0 0
          %629 = vmatpush1.bf16.msra.mxu0 %v606
          %630 = vmatprep.subr.bf16.mxu0 0
          %631 = vmatpush2.bf16.msra.mxu0 0
          %632 = vmatprep.subr.bf16.mxu0 0
          %633 = vmatpush2.bf16.msra.mxu0 0
          %634 = vmatprep.subr.bf16.mxu0 0
          %635 = vmatpush2.bf16.msra.mxu0 0
          %636 = vmatprep.subr.bf16.mxu0 0
          %637 = vmatpush2.bf16.msra.mxu0 0
          %638 = vmatprep.subr.bf16.mxu0 0
          %639 = vmatpush2.bf16.msra.mxu0 0
          %640 = vmatprep.subr.bf16.mxu0 0
          %641 = vmatpush2.bf16.msra.mxu0 0
          %642 = vmatprep.subr.bf16.mxu0 0
          %643 = vmatpush2.bf16.msra.mxu0 0
          %644 = vmatprep.subr.bf16.mxu0 0
          %645 = vmatpush2.bf16.msra.mxu0 0
          %646 = vmatprep.mubr.bf16.mxu0 0
          %647 = vmatmul.mubr.bf16.gmra.mxu0 %v612
          %v648 = vpop.f32.mrf.mxu0
          %v649 = vadd.f32 0.0, %v648
          %v650 = vpop.f32.mrf.mxu0
          %v651 = vpop.f32.mrf.mxu0
          %v652 = vpop.f32.mrf.mxu0
          %653 = vdwg.mxu0
          %v654 = vadd.f32 %v592, %v649
          %655 = vst [vmem:[#allocation3] sm:$0x1] %v654
          // Predicated region
          $region53: #{tpu_custom_call.1} parent=47 // pred_check
            %p656 = pneg %p415
          $region54: #{tpu_custom_call.1} parent=47 // pred_check_branch
            %658 = sbr.rel (%p656) target = $region56
          $region55: #{tpu_custom_call.1} parent=47 // pred_region
            %v659 = vld [vmem:[#allocation3] sm:$0x1]
            %v660 = vmul.f32 %v659, 0.00390625
            %v661 = vld [vmem:[%s412] sm:$0x1]
            %v662 = vadd.f32 %v660, %v661
            %v663 = vmax.f32 %v662, 0.0
            %v665 = vlaneseq
            %v666 = vshrl.u32 %v665, 7
            %v667 = vsub.s32 0, %v666
            %v668 = vrot.slane %v663, %v667
            %v670 = vpack.c.bf16 %v668, %v668
            %v672 = vunpack.c.l.b16 %v670
            %v673 = vpack.c.b16 %v672, %v672
            %675 = vst [vmem:[%s373] sm:$0xf] %v673
            %676 = vst [vmem:[%s373 + $0x4] sm:$0xf] %v673
            %677 = vst [vmem:[%s373 + $0x8] sm:$0xf] %v673
            %678 = vst [vmem:[%s373 + $0xc] sm:$0xf] %v673
            %679 = vst [vmem:[%s373 + $0x10] sm:$0xf] %v673
            %680 = vst [vmem:[%s373 + $0x14] sm:$0xf] %v673
            %681 = vst [vmem:[%s373 + $0x18] sm:$0xf] %v673
            %682 = vst [vmem:[%s373 + $0x1c] sm:$0xf] %v673
            %683 = vst [vmem:[%s373 + $0x20] sm:$0xf] %v673
            %684 = vst [vmem:[%s373 + $0x24] sm:$0xf] %v673
            %685 = vst [vmem:[%s373 + $0x28] sm:$0xf] %v673
            %686 = vst [vmem:[%s373 + $0x2c] sm:$0xf] %v673
            %687 = vst [vmem:[%s373 + $0x30] sm:$0xf] %v673
            %688 = vst [vmem:[%s373 + $0x34] sm:$0xf] %v673
            %689 = vst [vmem:[%s373 + $0x38] sm:$0xf] %v673
            %690 = vst [vmem:[%s373 + $0x3c] sm:$0xf] %v673
            %691 = vst [vmem:[%s373 + $0x40] sm:$0xf] %v673
            %692 = vst [vmem:[%s373 + $0x44] sm:$0xf] %v673
            %693 = vst [vmem:[%s373 + $0x48] sm:$0xf] %v673
            %694 = vst [vmem:[%s373 + $0x4c] sm:$0xf] %v673
            %695 = vst [vmem:[%s373 + $0x50] sm:$0xf] %v673
            %696 = vst [vmem:[%s373 + $0x54] sm:$0xf] %v673
            %697 = vst [vmem:[%s373 + $0x58] sm:$0xf] %v673
            %698 = vst [vmem:[%s373 + $0x5c] sm:$0xf] %v673
            %699 = vst [vmem:[%s373 + $0x60] sm:$0xf] %v673
            %700 = vst [vmem:[%s373 + $0x64] sm:$0xf] %v673
            %701 = vst [vmem:[%s373 + $0x68] sm:$0xf] %v673
            %702 = vst [vmem:[%s373 + $0x6c] sm:$0xf] %v673
            %703 = vst [vmem:[%s373 + $0x70] sm:$0xf] %v673
            %704 = vst [vmem:[%s373 + $0x74] sm:$0xf] %v673
            %705 = vst [vmem:[%s373 + $0x78] sm:$0xf] %v673
            %706 = vst [vmem:[%s373 + $0x7c] sm:$0xf] %v673
          $region56: #{tpu_custom_call.1} parent=47 // pred_fallthru
            _
        $region48: #{tpu_custom_call.1} parent=39 // pred_fallthru
          _
        %p707 = scmp.ge.s32.totalorder %s28, 1
        // Predicated region
        $region57: #{tpu_custom_call.1} parent=39 // pred_check
          %p708 = pneg %p707
        $region58: #{tpu_custom_call.1} parent=39 // pred_check_branch
          %710 = sbr.rel (%p708) target = $region60
        $region59: #{tpu_custom_call.1} parent=39 // pred_region
          %v711 = vld [vmem:[%s393] sm:$0xf]
          %v712 = vld [vmem:[%s393 + $0x4] sm:$0xf]
          %v713 = vld [vmem:[%s393 + $0x8] sm:$0xf]
          %v714 = vld [vmem:[%s393 + $0xc] sm:$0xf]
          %v747 = vunpack.c.l.b16 %v416
          %v748 = vunpack.c.l.b16 %v417
          %v749 = vunpack.c.l.b16 %v418
          %v750 = vunpack.c.l.b16 %v419
          %v751 = vunpack.c.l.b16 %v420
          %v752 = vunpack.c.l.b16 %v421
          %v753 = vunpack.c.l.b16 %v422
          %v754 = vunpack.c.l.b16 %v423
          %v755 = vunpack.c.l.b16 %v424
          %v756 = vunpack.c.l.b16 %v425
          %v757 = vunpack.c.l.b16 %v426
          %v758 = vunpack.c.l.b16 %v427
          %v759 = vunpack.c.l.b16 %v428
          %v760 = vunpack.c.l.b16 %v429
          %v761 = vunpack.c.l.b16 %v430
          %v762 = vunpack.c.l.b16 %v431
          %v763 = vunpack.c.l.b16 %v432
          %v764 = vunpack.c.l.b16 %v433
          %v765 = vunpack.c.l.b16 %v434
          %v766 = vunpack.c.l.b16 %v435
          %v767 = vunpack.c.l.b16 %v436
          %v768 = vunpack.c.l.b16 %v437
          %v769 = vunpack.c.l.b16 %v438
          %v770 = vunpack.c.l.b16 %v439
          %v771 = vunpack.c.l.b16 %v440
          %v772 = vunpack.c.l.b16 %v441
          %v773 = vunpack.c.l.b16 %v442
          %v774 = vunpack.c.l.b16 %v443
          %v775 = vunpack.c.l.b16 %v444
          %v776 = vunpack.c.l.b16 %v445
          %v777 = vunpack.c.l.b16 %v446
          %v778 = vunpack.c.l.b16 %v447
          %v779 = vpack.c.b16 %v748, %v747
          %v780 = vpack.c.b16 %v750, %v749
          %v781 = vpack.c.b16 %v752, %v751
          %v782 = vpack.c.b16 %v754, %v753
          %v783 = vpack.c.b16 %v756, %v755
          %v784 = vpack.c.b16 %v758, %v757
          %v785 = vpack.c.b16 %v760, %v759
          %v786 = vpack.c.b16 %v762, %v761
          %v787 = vpack.c.b16 %v764, %v763
          %v788 = vpack.c.b16 %v766, %v765
          %v789 = vpack.c.b16 %v768, %v767
          %v790 = vpack.c.b16 %v770, %v769
          %v791 = vpack.c.b16 %v772, %v771
          %v792 = vpack.c.b16 %v774, %v773
          %v793 = vpack.c.b16 %v776, %v775
          %v794 = vpack.c.b16 %v778, %v777
          %v799 = vunpack.c.l.b16 %v711
          %v800 = vunpack.c.l.b16 %v712
          %v801 = vunpack.c.l.b16 %v713
          %v802 = vunpack.c.l.b16 %v714
          %v803 = vpack.c.b16 %v800, %v799
          %v804 = vpack.c.b16 %v802, %v801
          %vm807 = vcmask 261120
          %v809 = vsel %vm807, %v779, 0
          %v812 = vsel %vm807, %v780, 0
          %v815 = vsel %vm807, %v781, 0
          %v818 = vsel %vm807, %v782, 0
          %v821 = vsel %vm807, %v783, 0
          %v824 = vsel %vm807, %v784, 0
          %v827 = vsel %vm807, %v785, 0
          %v830 = vsel %vm807, %v786, 0
          %v833 = vsel %vm807, %v787, 0
          %v836 = vsel %vm807, %v788, 0
          %v839 = vsel %vm807, %v789, 0
          %v842 = vsel %vm807, %v790, 0
          %v845 = vsel %vm807, %v791, 0
          %v848 = vsel %vm807, %v792, 0
          %v851 = vsel %vm807, %v793, 0
          %v854 = vsel %vm807, %v794, 0
          %856 = vmatprep.subr.bf16.mxu0 0
          %857 = vmatpush1.bf16.msra.mxu0 0
          %858 = vmatprep.subr.bf16.mxu0 0
          %859 = vmatpush1.bf16.msra.mxu0 0
          %860 = vmatprep.subr.bf16.mxu0 0
          %861 = vmatpush1.bf16.msra.mxu0 0
          %862 = vmatprep.subr.bf16.mxu0 0
          %863 = vmatpush1.bf16.msra.mxu0 0
          %864 = vmatprep.subr.bf16.mxu0 0
          %865 = vmatpush1.bf16.msra.mxu0 0
          %866 = vmatprep.subr.bf16.mxu0 0
          %867 = vmatpush1.bf16.msra.mxu0 0
          %868 = vmatprep.subr.bf16.mxu0 0
          %869 = vmatpush1.bf16.msra.mxu0 %v804
          %870 = vmatprep.subr.bf16.mxu0 0
          %871 = vmatpush1.bf16.msra.mxu0 %v803
          %872 = vmatprep.subr.bf16.mxu0 0
          %873 = vmatpush2.bf16.msra.mxu0 0
          %874 = vmatprep.subr.bf16.mxu0 0
          %875 = vmatpush2.bf16.msra.mxu0 0
          %876 = vmatprep.subr.bf16.mxu0 0
          %877 = vmatpush2.bf16.msra.mxu0 0
          %878 = vmatprep.subr.bf16.mxu0 0
          %879 = vmatpush2.bf16.msra.mxu0 0
          %880 = vmatprep.subr.bf16.mxu0 0
          %881 = vmatpush2.bf16.msra.mxu0 0
          %882 = vmatprep.subr.bf16.mxu0 0
          %883 = vmatpush2.bf16.msra.mxu0 0
          %884 = vmatprep.subr.bf16.mxu0 0
          %885 = vmatpush2.bf16.msra.mxu0 0
          %886 = vmatprep.subr.bf16.mxu0 0
          %887 = vmatpush2.bf16.msra.mxu0 0
          %888 = vmatprep.mubr.bf16.mxu0 0
          %889 = vmatmul.mubr.bf16.gmra.mxu0 %v809
          %v890 = vpop.f32.mrf.mxu0
          %v891 = vadd.f32 0.0, %v890
          %v892 = vpop.f32.mrf.mxu0
          %v893 = vpop.f32.mrf.mxu0
          %v894 = vadd.f32 0.0, %v893
          %v895 = vpop.f32.mrf.mxu0
          %896 = vmatprep.mubr.bf16.mxu0 0
          %897 = vmatmul.mubr.bf16.gmra.mxu0 %v812
          %v898 = vpop.f32.mrf.mxu0
          %v899 = vadd.f32 0.0, %v898
          %v900 = vpop.f32.mrf.mxu0
          %v901 = vpop.f32.mrf.mxu0
          %v902 = vadd.f32 0.0, %v901
          %v903 = vpop.f32.mrf.mxu0
          %904 = vmatprep.mubr.bf16.mxu0 0
          %905 = vmatmul.mubr.bf16.gmra.mxu0 %v815
          %v906 = vpop.f32.mrf.mxu0
          %v907 = vadd.f32 0.0, %v906
          %v908 = vpop.f32.mrf.mxu0
          %v909 = vpop.f32.mrf.mxu0
          %v910 = vadd.f32 0.0, %v909
          %v911 = vpop.f32.mrf.mxu0
          %912 = vmatprep.mubr.bf16.mxu0 0
          %913 = vmatmul.mubr.bf16.gmra.mxu0 %v818
          %v914 = vpop.f32.mrf.mxu0
          %v915 = vadd.f32 0.0, %v914
          %v916 = vpop.f32.mrf.mxu0
          %v917 = vpop.f32.mrf.mxu0
          %v918 = vadd.f32 0.0, %v917
          %v919 = vpop.f32.mrf.mxu0
          %920 = vmatprep.mubr.bf16.mxu0 0
          %921 = vmatmul.mubr.bf16.gmra.mxu0 %v821
          %v922 = vpop.f32.mrf.mxu0
          %v923 = vadd.f32 0.0, %v922
          %v924 = vpop.f32.mrf.mxu0
          %v925 = vpop.f32.mrf.mxu0
          %v926 = vadd.f32 0.0, %v925
          %v927 = vpop.f32.mrf.mxu0
          %928 = vmatprep.mubr.bf16.mxu0 0
          %929 = vmatmul.mubr.bf16.gmra.mxu0 %v824
          %v930 = vpop.f32.mrf.mxu0
          %v931 = vadd.f32 0.0, %v930
          %v932 = vpop.f32.mrf.mxu0
          %v933 = vpop.f32.mrf.mxu0
          %v934 = vadd.f32 0.0, %v933
          %v935 = vpop.f32.mrf.mxu0
          %936 = vmatprep.mubr.bf16.mxu0 0
          %937 = vmatmul.mubr.bf16.gmra.mxu0 %v827
          %v938 = vpop.f32.mrf.mxu0
          %v939 = vadd.f32 0.0, %v938
          %v940 = vpop.f32.mrf.mxu0
          %v941 = vpop.f32.mrf.mxu0
          %v942 = vadd.f32 0.0, %v941
          %v943 = vpop.f32.mrf.mxu0
          %944 = vmatprep.mubr.bf16.mxu0 0
          %945 = vmatmul.mubr.bf16.gmra.mxu0 %v830
          %v946 = vpop.f32.mrf.mxu0
          %v947 = vadd.f32 0.0, %v946
          %v948 = vpop.f32.mrf.mxu0
          %v949 = vpop.f32.mrf.mxu0
          %v950 = vadd.f32 0.0, %v949
          %v951 = vpop.f32.mrf.mxu0
          %952 = vmatprep.mubr.bf16.mxu0 0
          %953 = vmatmul.mubr.bf16.gmra.mxu0 %v833
          %v954 = vpop.f32.mrf.mxu0
          %v955 = vadd.f32 0.0, %v954
          %v956 = vpop.f32.mrf.mxu0
          %v957 = vpop.f32.mrf.mxu0
          %v958 = vadd.f32 0.0, %v957
          %v959 = vpop.f32.mrf.mxu0
          %960 = vmatprep.mubr.bf16.mxu0 0
          %961 = vmatmul.mubr.bf16.gmra.mxu0 %v836
          %v962 = vpop.f32.mrf.mxu0
          %v963 = vadd.f32 0.0, %v962
          %v964 = vpop.f32.mrf.mxu0
          %v965 = vpop.f32.mrf.mxu0
          %v966 = vadd.f32 0.0, %v965
          %v967 = vpop.f32.mrf.mxu0
          %968 = vmatprep.mubr.bf16.mxu0 0
          %969 = vmatmul.mubr.bf16.gmra.mxu0 %v839
          %v970 = vpop.f32.mrf.mxu0
          %v971 = vadd.f32 0.0, %v970
          %v972 = vpop.f32.mrf.mxu0
          %v973 = vpop.f32.mrf.mxu0
          %v974 = vadd.f32 0.0, %v973
          %v975 = vpop.f32.mrf.mxu0
          %976 = vmatprep.mubr.bf16.mxu0 0
          %977 = vmatmul.mubr.bf16.gmra.mxu0 %v842
          %v978 = vpop.f32.mrf.mxu0
          %v979 = vadd.f32 0.0, %v978
          %v980 = vpop.f32.mrf.mxu0
          %v981 = vpop.f32.mrf.mxu0
          %v982 = vadd.f32 0.0, %v981
          %v983 = vpop.f32.mrf.mxu0
          %984 = vmatprep.mubr.bf16.mxu0 0
          %985 = vmatmul.mubr.bf16.gmra.mxu0 %v845
          %v986 = vpop.f32.mrf.mxu0
          %v987 = vadd.f32 0.0, %v986
          %v988 = vpop.f32.mrf.mxu0
          %v989 = vpop.f32.mrf.mxu0
          %v990 = vadd.f32 0.0, %v989
          %v991 = vpop.f32.mrf.mxu0
          %992 = vmatprep.mubr.bf16.mxu0 0
          %993 = vmatmul.mubr.bf16.gmra.mxu0 %v848
          %v994 = vpop.f32.mrf.mxu0
          %v995 = vadd.f32 0.0, %v994
          %v996 = vpop.f32.mrf.mxu0
          %v997 = vpop.f32.mrf.mxu0
          %v998 = vadd.f32 0.0, %v997
          %v999 = vpop.f32.mrf.mxu0
          %1000 = vmatprep.mubr.bf16.mxu0 0
          %1001 = vmatmul.mubr.bf16.gmra.mxu0 %v851
          %v1002 = vpop.f32.mrf.mxu0
          %v1003 = vadd.f32 0.0, %v1002
          %v1004 = vpop.f32.mrf.mxu0
          %v1005 = vpop.f32.mrf.mxu0
          %v1006 = vadd.f32 0.0, %v1005
          %v1007 = vpop.f32.mrf.mxu0
          %1008 = vmatprep.mubr.bf16.mxu0 0
          %1009 = vmatmul.mubr.bf16.gmra.mxu0 %v854
          %v1010 = vpop.f32.mrf.mxu0
          %v1011 = vadd.f32 0.0, %v1010
          %v1012 = vpop.f32.mrf.mxu0
          %v1013 = vpop.f32.mrf.mxu0
          %v1014 = vadd.f32 0.0, %v1013
          %v1015 = vpop.f32.mrf.mxu0
          %1016 = vdwg.mxu0
          // Predicated region
          $region61: #{tpu_custom_call.1} parent=59 // pred_check
            %p1017 = pneg %p415
          $region62: #{tpu_custom_call.1} parent=59 // pred_check_branch
            %1019 = sbr.rel (%p1017) target = $region64
          $region63: #{tpu_custom_call.1} parent=59 // pred_region
            %1020 = vst [vmem:[#allocation2] sm:$0xff] %v891
            %1021 = vst [vmem:[#allocation2 + $0x8] sm:$0xff] %v894
            %1022 = vst [vmem:[#allocation2 + $0x10] sm:$0xff] %v899
            %1023 = vst [vmem:[#allocation2 + $0x18] sm:$0xff] %v902
            %1024 = vst [vmem:[#allocation2 + $0x20] sm:$0xff] %v907
            %1025 = vst [vmem:[#allocation2 + $0x28] sm:$0xff] %v910
            %1026 = vst [vmem:[#allocation2 + $0x30] sm:$0xff] %v915
            %1027 = vst [vmem:[#allocation2 + $0x38] sm:$0xff] %v918
            %1028 = vst [vmem:[#allocation2 + $0x40] sm:$0xff] %v923
            %1029 = vst [vmem:[#allocation2 + $0x48] sm:$0xff] %v926
            %1030 = vst [vmem:[#allocation2 + $0x50] sm:$0xff] %v931
            %1031 = vst [vmem:[#allocation2 + $0x58] sm:$0xff] %v934
            %1032 = vst [vmem:[#allocation2 + $0x60] sm:$0xff] %v939
            %1033 = vst [vmem:[#allocation2 + $0x68] sm:$0xff] %v942
            %1034 = vst [vmem:[#allocation2 + $0x70] sm:$0xff] %v947
            %1035 = vst [vmem:[#allocation2 + $0x78] sm:$0xff] %v950
            %1036 = vst [vmem:[#allocation2 + $0x80] sm:$0xff] %v955
            %1037 = vst [vmem:[#allocation2 + $0x88] sm:$0xff] %v958
            %1038 = vst [vmem:[#allocation2 + $0x90] sm:$0xff] %v963
            %1039 = vst [vmem:[#allocation2 + $0x98] sm:$0xff] %v966
            %1040 = vst [vmem:[#allocation2 + $0xa0] sm:$0xff] %v971
            %1041 = vst [vmem:[#allocation2 + $0xa8] sm:$0xff] %v974
            %1042 = vst [vmem:[#allocation2 + $0xb0] sm:$0xff] %v979
            %1043 = vst [vmem:[#allocation2 + $0xb8] sm:$0xff] %v982
            %1044 = vst [vmem:[#allocation2 + $0xc0] sm:$0xff] %v987
            %1045 = vst [vmem:[#allocation2 + $0xc8] sm:$0xff] %v990
            %1046 = vst [vmem:[#allocation2 + $0xd0] sm:$0xff] %v995
            %1047 = vst [vmem:[#allocation2 + $0xd8] sm:$0xff] %v998
            %1048 = vst [vmem:[#allocation2 + $0xe0] sm:$0xff] %v1003
            %1049 = vst [vmem:[#allocation2 + $0xe8] sm:$0xff] %v1006
            %1050 = vst [vmem:[#allocation2 + $0xf0] sm:$0xff] %v1011
            %1051 = vst [vmem:[#allocation2 + $0xf8] sm:$0xff] %v1014
          $region64: #{tpu_custom_call.1} parent=59 // pred_fallthru
            _
          %p1052 = scmp.ne.s32.totalorder %s29, 0
          // Predicated region
          $region65: #{tpu_custom_call.1} parent=59 // pred_check
            %p1053 = pneg %p1052
          $region66: #{tpu_custom_call.1} parent=59 // pred_check_branch
            %1055 = sbr.rel (%p1053) target = $region68
          $region67: #{tpu_custom_call.1} parent=59 // pred_region
            %v1056 = vld [vmem:[#allocation2] sm:$0xff]
            %v1057 = vld [vmem:[#allocation2 + $0x8] sm:$0xff]
            %v1058 = vld [vmem:[#allocation2 + $0x10] sm:$0xff]
            %v1059 = vld [vmem:[#allocation2 + $0x18] sm:$0xff]
            %v1060 = vld [vmem:[#allocation2 + $0x20] sm:$0xff]
            %v1061 = vld [vmem:[#allocation2 + $0x28] sm:$0xff]
            %v1062 = vld [vmem:[#allocation2 + $0x30] sm:$0xff]
            %v1063 = vld [vmem:[#allocation2 + $0x38] sm:$0xff]
            %v1064 = vld [vmem:[#allocation2 + $0x40] sm:$0xff]
            %v1065 = vld [vmem:[#allocation2 + $0x48] sm:$0xff]
            %v1066 = vld [vmem:[#allocation2 + $0x50] sm:$0xff]
            %v1067 = vld [vmem:[#allocation2 + $0x58] sm:$0xff]
            %v1068 = vld [vmem:[#allocation2 + $0x60] sm:$0xff]
            %v1069 = vld [vmem:[#allocation2 + $0x68] sm:$0xff]
            %v1070 = vld [vmem:[#allocation2 + $0x70] sm:$0xff]
            %v1071 = vld [vmem:[#allocation2 + $0x78] sm:$0xff]
            %v1072 = vld [vmem:[#allocation2 + $0x80] sm:$0xff]
            %v1073 = vld [vmem:[#allocation2 + $0x88] sm:$0xff]
            %v1074 = vld [vmem:[#allocation2 + $0x90] sm:$0xff]
            %v1075 = vld [vmem:[#allocation2 + $0x98] sm:$0xff]
            %v1076 = vld [vmem:[#allocation2 + $0xa0] sm:$0xff]
            %v1077 = vld [vmem:[#allocation2 + $0xa8] sm:$0xff]
            %v1078 = vld [vmem:[#allocation2 + $0xb0] sm:$0xff]
            %v1079 = vld [vmem:[#allocation2 + $0xb8] sm:$0xff]
            %v1080 = vld [vmem:[#allocation2 + $0xc0] sm:$0xff]
            %v1081 = vld [vmem:[#allocation2 + $0xc8] sm:$0xff]
            %v1082 = vld [vmem:[#allocation2 + $0xd0] sm:$0xff]
            %v1083 = vld [vmem:[#allocation2 + $0xd8] sm:$0xff]
            %v1084 = vld [vmem:[#allocation2 + $0xe0] sm:$0xff]
            %v1085 = vld [vmem:[#allocation2 + $0xe8] sm:$0xff]
            %v1086 = vld [vmem:[#allocation2 + $0xf0] sm:$0xff]
            %v1087 = vld [vmem:[#allocation2 + $0xf8] sm:$0xff]
            %v1088 = vadd.f32 %v1056, %v891
            %v1089 = vadd.f32 %v1057, %v894
            %v1090 = vadd.f32 %v1058, %v899
            %v1091 = vadd.f32 %v1059, %v902
            %v1092 = vadd.f32 %v1060, %v907
            %v1093 = vadd.f32 %v1061, %v910
            %v1094 = vadd.f32 %v1062, %v915
            %v1095 = vadd.f32 %v1063, %v918
            %v1096 = vadd.f32 %v1064, %v923
            %v1097 = vadd.f32 %v1065, %v926
            %v1098 = vadd.f32 %v1066, %v931
            %v1099 = vadd.f32 %v1067, %v934
            %v1100 = vadd.f32 %v1068, %v939
            %v1101 = vadd.f32 %v1069, %v942
            %v1102 = vadd.f32 %v1070, %v947
            %v1103 = vadd.f32 %v1071, %v950
            %v1104 = vadd.f32 %v1072, %v955
            %v1105 = vadd.f32 %v1073, %v958
            %v1106 = vadd.f32 %v1074, %v963
            %v1107 = vadd.f32 %v1075, %v966
            %v1108 = vadd.f32 %v1076, %v971
            %v1109 = vadd.f32 %v1077, %v974
            %v1110 = vadd.f32 %v1078, %v979
            %v1111 = vadd.f32 %v1079, %v982
            %v1112 = vadd.f32 %v1080, %v987
            %v1113 = vadd.f32 %v1081, %v990
            %v1114 = vadd.f32 %v1082, %v995
            %v1115 = vadd.f32 %v1083, %v998
            %v1116 = vadd.f32 %v1084, %v1003
            %v1117 = vadd.f32 %v1085, %v1006
            %v1118 = vadd.f32 %v1086, %v1011
            %v1119 = vadd.f32 %v1087, %v1014
            %1120 = vst [vmem:[#allocation2] sm:$0xff] %v1088
            %1121 = vst [vmem:[#allocation2 + $0x8] sm:$0xff] %v1089
            %1122 = vst [vmem:[#allocation2 + $0x10] sm:$0xff] %v1090
            %1123 = vst [vmem:[#allocation2 + $0x18] sm:$0xff] %v1091
            %1124 = vst [vmem:[#allocation2 + $0x20] sm:$0xff] %v1092
            %1125 = vst [vmem:[#allocation2 + $0x28] sm:$0xff] %v1093
            %1126 = vst [vmem:[#allocation2 + $0x30] sm:$0xff] %v1094
            %1127 = vst [vmem:[#allocation2 + $0x38] sm:$0xff] %v1095
            %1128 = vst [vmem:[#allocation2 + $0x40] sm:$0xff] %v1096
            %1129 = vst [vmem:[#allocation2 + $0x48] sm:$0xff] %v1097
            %1130 = vst [vmem:[#allocation2 + $0x50] sm:$0xff] %v1098
            %1131 = vst [vmem:[#allocation2 + $0x58] sm:$0xff] %v1099
            %1132 = vst [vmem:[#allocation2 + $0x60] sm:$0xff] %v1100
            %1133 = vst [vmem:[#allocation2 + $0x68] sm:$0xff] %v1101
            %1134 = vst [vmem:[#allocation2 + $0x70] sm:$0xff] %v1102
            %1135 = vst [vmem:[#allocation2 + $0x78] sm:$0xff] %v1103
            %1136 = vst [vmem:[#allocation2 + $0x80] sm:$0xff] %v1104
            %1137 = vst [vmem:[#allocation2 + $0x88] sm:$0xff] %v1105
            %1138 = vst [vmem:[#allocation2 + $0x90] sm:$0xff] %v1106
            %1139 = vst [vmem:[#allocation2 + $0x98] sm:$0xff] %v1107
            %1140 = vst [vmem:[#allocation2 + $0xa0] sm:$0xff] %v1108
            %1141 = vst [vmem:[#allocation2 + $0xa8] sm:$0xff] %v1109
            %1142 = vst [vmem:[#allocation2 + $0xb0] sm:$0xff] %v1110
            %1143 = vst [vmem:[#allocation2 + $0xb8] sm:$0xff] %v1111
            %1144 = vst [vmem:[#allocation2 + $0xc0] sm:$0xff] %v1112
            %1145 = vst [vmem:[#allocation2 + $0xc8] sm:$0xff] %v1113
            %1146 = vst [vmem:[#allocation2 + $0xd0] sm:$0xff] %v1114
            %1147 = vst [vmem:[#allocation2 + $0xd8] sm:$0xff] %v1115
            %1148 = vst [vmem:[#allocation2 + $0xe0] sm:$0xff] %v1116
            %1149 = vst [vmem:[#allocation2 + $0xe8] sm:$0xff] %v1117
            %1150 = vst [vmem:[#allocation2 + $0xf0] sm:$0xff] %v1118
            %1151 = vst [vmem:[#allocation2 + $0xf8] sm:$0xff] %v1119
          $region68: #{tpu_custom_call.1} parent=59 // pred_fallthru
            _
        $region60: #{tpu_custom_call.1} parent=39 // pred_fallthru
          _
        %p1152 = scmp.eq.s32.totalorder %s28, 2
        // Predicated region
        $region69: #{tpu_custom_call.1} parent=39 // pred_check
          %p1153 = pneg %p1152
        $region70: #{tpu_custom_call.1} parent=39 // pred_check_branch
          %1155 = sbr.rel (%p1153) target = $region72
        $region71: #{tpu_custom_call.1} parent=39 // pred_region
          %v1156 = vld [vmem:[%s319] sm:$0xf]
          %v1157 = vld [vmem:[%s319 + $0x4] sm:$0xf]
          %v1158 = vld [vmem:[%s319 + $0x8] sm:$0xf]
          %v1159 = vld [vmem:[%s319 + $0xc] sm:$0xf]
          %v1180 = vunpack.c.l.b16 %v416
          %v1181 = vunpack.c.l.b16 %v417
          %v1182 = vunpack.c.l.b16 %v418
          %v1183 = vunpack.c.l.b16 %v419
          %v1184 = vunpack.c.l.b16 %v420
          %v1185 = vunpack.c.l.b16 %v421
          %v1186 = vunpack.c.l.b16 %v422
          %v1187 = vunpack.c.l.b16 %v423
          %v1188 = vunpack.c.l.b16 %v424
          %v1189 = vunpack.c.l.b16 %v425
          %v1190 = vunpack.c.l.b16 %v426
          %v1191 = vunpack.c.l.b16 %v427
          %v1192 = vunpack.c.l.b16 %v428
          %v1193 = vunpack.c.l.b16 %v429
          %v1194 = vunpack.c.l.b16 %v430
          %v1195 = vunpack.c.l.b16 %v431
          %v1196 = vunpack.c.l.b16 %v432
          %v1197 = vunpack.c.l.b16 %v433
          %v1198 = vunpack.c.l.b16 %v434
          %v1199 = vunpack.c.l.b16 %v435
          %v1200 = vpack.c.b16 %v1181, %v1180
          %v1201 = vpack.c.b16 %v1183, %v1182
          %v1202 = vpack.c.b16 %v1185, %v1184
          %v1203 = vpack.c.b16 %v1187, %v1186
          %v1204 = vpack.c.b16 %v1189, %v1188
          %v1205 = vpack.c.b16 %v1191, %v1190
          %v1206 = vpack.c.b16 %v1193, %v1192
          %v1207 = vpack.c.b16 %v1195, %v1194
          %v1208 = vpack.c.b16 %v1197, %v1196
          %v1209 = vpack.c.b16 %v1199, %v1198
          %v1214 = vunpack.c.l.b16 %v1156
          %v1215 = vunpack.c.l.b16 %v1157
          %v1216 = vunpack.c.l.b16 %v1158
          %v1217 = vunpack.c.l.b16 %v1159
          %v1218 = vpack.c.b16 %v1215, %v1214
          %v1219 = vpack.c.b16 %v1217, %v1216
          %vm1222 = vcmask 261120
          %v1224 = vsel %vm1222, %v1200, 0
          %v1227 = vsel %vm1222, %v1201, 0
          %v1230 = vsel %vm1222, %v1202, 0
          %v1233 = vsel %vm1222, %v1203, 0
          %v1236 = vsel %vm1222, %v1204, 0
          %v1239 = vsel %vm1222, %v1205, 0
          %v1242 = vsel %vm1222, %v1206, 0
          %v1245 = vsel %vm1222, %v1207, 0
          %v1248 = vsel %vm1222, %v1208, 0
          %v1251 = vsel %vm1222, %v1209, 0
          %1253 = vmatprep.subr.bf16.mxu0 0
          %1254 = vmatpush1.bf16.msra.mxu0 0
          %1255 = vmatprep.subr.bf16.mxu0 0
          %1256 = vmatpush1.bf16.msra.mxu0 0
          %1257 = vmatprep.subr.bf16.mxu0 0
          %1258 = vmatpush1.bf16.msra.mxu0 0
          %1259 = vmatprep.subr.bf16.mxu0 0
          %1260 = vmatpush1.bf16.msra.mxu0 0
          %1261 = vmatprep.subr.bf16.mxu0 0
          %1262 = vmatpush1.bf16.msra.mxu0 0
          %1263 = vmatprep.subr.bf16.mxu0 0
          %1264 = vmatpush1.bf16.msra.mxu0 0
          %1265 = vmatprep.subr.bf16.mxu0 0
          %1266 = vmatpush1.bf16.msra.mxu0 %v1219
          %1267 = vmatprep.subr.bf16.mxu0 0
          %1268 = vmatpush1.bf16.msra.mxu0 %v1218
          %1269 = vmatprep.subr.bf16.mxu0 0
          %1270 = vmatpush2.bf16.msra.mxu0 0
          %1271 = vmatprep.subr.bf16.mxu0 0
          %1272 = vmatpush2.bf16.msra.mxu0 0
          %1273 = vmatprep.subr.bf16.mxu0 0
          %1274 = vmatpush2.bf16.msra.mxu0 0
          %1275 = vmatprep.subr.bf16.mxu0 0
          %1276 = vmatpush2.bf16.msra.mxu0 0
          %1277 = vmatprep.subr.bf16.mxu0 0
          %1278 = vmatpush2.bf16.msra.mxu0 0
          %1279 = vmatprep.subr.bf16.mxu0 0
          %1280 = vmatpush2.bf16.msra.mxu0 0
          %1281 = vmatprep.subr.bf16.mxu0 0
          %1282 = vmatpush2.bf16.msra.mxu0 0
          %1283 = vmatprep.subr.bf16.mxu0 0
          %1284 = vmatpush2.bf16.msra.mxu0 0
          %1285 = vmatprep.mubr.bf16.mxu0 0
          %1286 = vmatmul.mubr.bf16.gmra.mxu0 %v1224
          %v1287 = vpop.f32.mrf.mxu0
          %v1288 = vadd.f32 0.0, %v1287
          %v1289 = vpop.f32.mrf.mxu0
          %v1290 = vpop.f32.mrf.mxu0
          %v1291 = vadd.f32 0.0, %v1290
          %v1292 = vpop.f32.mrf.mxu0
          %1293 = vmatprep.mubr.bf16.mxu0 0
          %1294 = vmatmul.mubr.bf16.gmra.mxu0 %v1227
          %v1295 = vpop.f32.mrf.mxu0
          %v1296 = vadd.f32 0.0, %v1295
          %v1297 = vpop.f32.mrf.mxu0
          %v1298 = vpop.f32.mrf.mxu0
          %v1299 = vadd.f32 0.0, %v1298
          %v1300 = vpop.f32.mrf.mxu0
          %1301 = vmatprep.mubr.bf16.mxu0 0
          %1302 = vmatmul.mubr.bf16.gmra.mxu0 %v1230
          %v1303 = vpop.f32.mrf.mxu0
          %v1304 = vadd.f32 0.0, %v1303
          %v1305 = vpop.f32.mrf.mxu0
          %v1306 = vpop.f32.mrf.mxu0
          %v1307 = vadd.f32 0.0, %v1306
          %v1308 = vpop.f32.mrf.mxu0
          %1309 = vmatprep.mubr.bf16.mxu0 0
          %1310 = vmatmul.mubr.bf16.gmra.mxu0 %v1233
          %v1311 = vpop.f32.mrf.mxu0
          %v1312 = vadd.f32 0.0, %v1311
          %v1313 = vpop.f32.mrf.mxu0
          %v1314 = vpop.f32.mrf.mxu0
          %v1315 = vadd.f32 0.0, %v1314
          %v1316 = vpop.f32.mrf.mxu0
          %1317 = vmatprep.mubr.bf16.mxu0 0
          %1318 = vmatmul.mubr.bf16.gmra.mxu0 %v1236
          %v1319 = vpop.f32.mrf.mxu0
          %v1320 = vadd.f32 0.0, %v1319
          %v1321 = vpop.f32.mrf.mxu0
          %v1322 = vpop.f32.mrf.mxu0
          %v1323 = vadd.f32 0.0, %v1322
          %v1324 = vpop.f32.mrf.mxu0
          %1325 = vmatprep.mubr.bf16.mxu0 0
          %1326 = vmatmul.mubr.bf16.gmra.mxu0 %v1239
          %v1327 = vpop.f32.mrf.mxu0
          %v1328 = vadd.f32 0.0, %v1327
          %v1329 = vpop.f32.mrf.mxu0
          %v1330 = vpop.f32.mrf.mxu0
          %v1331 = vadd.f32 0.0, %v1330
          %v1332 = vpop.f32.mrf.mxu0
          %1333 = vmatprep.mubr.bf16.mxu0 0
          %1334 = vmatmul.mubr.bf16.gmra.mxu0 %v1242
          %v1335 = vpop.f32.mrf.mxu0
          %v1336 = vadd.f32 0.0, %v1335
          %v1337 = vpop.f32.mrf.mxu0
          %v1338 = vpop.f32.mrf.mxu0
          %v1339 = vadd.f32 0.0, %v1338
          %v1340 = vpop.f32.mrf.mxu0
          %1341 = vmatprep.mubr.bf16.mxu0 0
          %1342 = vmatmul.mubr.bf16.gmra.mxu0 %v1245
          %v1343 = vpop.f32.mrf.mxu0
          %v1344 = vadd.f32 0.0, %v1343
          %v1345 = vpop.f32.mrf.mxu0
          %v1346 = vpop.f32.mrf.mxu0
          %v1347 = vadd.f32 0.0, %v1346
          %v1348 = vpop.f32.mrf.mxu0
          %1349 = vmatprep.mubr.bf16.mxu0 0
          %1350 = vmatmul.mubr.bf16.gmra.mxu0 %v1248
          %v1351 = vpop.f32.mrf.mxu0
          %v1352 = vadd.f32 0.0, %v1351
          %v1353 = vpop.f32.mrf.mxu0
          %v1354 = vpop.f32.mrf.mxu0
          %v1355 = vadd.f32 0.0, %v1354
          %v1356 = vpop.f32.mrf.mxu0
          %1357 = vmatprep.mubr.bf16.mxu0 0
          %1358 = vmatmul.mubr.bf16.gmra.mxu0 %v1251
          %v1359 = vpop.f32.mrf.mxu0
          %v1360 = vadd.f32 0.0, %v1359
          %v1361 = vpop.f32.mrf.mxu0
          %v1362 = vpop.f32.mrf.mxu0
          %v1363 = vadd.f32 0.0, %v1362
          %v1364 = vpop.f32.mrf.mxu0
          %1365 = vdwg.mxu0
          %s1366 = scalar_lea.vmem [#allocation2], 96
          %v1367 = vld [vmem:[%s1366 + $0x6] sm:$0xff]
          %v1368 = vld [vmem:[%s1366 + $0xe] sm:$0x3]
          %v1369 = vld [vmem:[%s1366 + $0x16] sm:$0xff]
          %v1370 = vld [vmem:[%s1366 + $0x1e] sm:$0x3]
          %v1371 = vld [vmem:[%s1366 + $0x26] sm:$0xff]
          %v1372 = vld [vmem:[%s1366 + $0x2e] sm:$0x3]
          %v1373 = vld [vmem:[%s1366 + $0x36] sm:$0xff]
          %v1374 = vld [vmem:[%s1366 + $0x3e] sm:$0x3]
          %v1375 = vld [vmem:[%s1366 + $0x46] sm:$0xff]
          %v1376 = vld [vmem:[%s1366 + $0x4e] sm:$0x3]
          %v1377 = vld [vmem:[%s1366 + $0x56] sm:$0xff]
          %v1378 = vld [vmem:[%s1366 + $0x5e] sm:$0x3]
          %v1379 = vld [vmem:[%s1366 + $0x66] sm:$0xff]
          %v1380 = vld [vmem:[%s1366 + $0x6e] sm:$0x3]
          %v1381 = vld [vmem:[%s1366 + $0x76] sm:$0xff]
          %v1382 = vld [vmem:[%s1366 + $0x7e] sm:$0x3]
          %v1383 = vld [vmem:[%s1366 + $0x86] sm:$0xff]
          %v1384 = vld [vmem:[%s1366 + $0x8e] sm:$0x3]
          %v1385 = vld [vmem:[%s1366 + $0x96] sm:$0xff]
          %v1386 = vld [vmem:[%s1366 + $0x9e] sm:$0x3]
          %v1387 = vadd.f32 %v1367, %v1288
          %v1388 = vadd.f32 %v1368, %v1291
          %v1389 = vadd.f32 %v1369, %v1296
          %v1390 = vadd.f32 %v1370, %v1299
          %v1391 = vadd.f32 %v1371, %v1304
          %v1392 = vadd.f32 %v1372, %v1307
          %v1393 = vadd.f32 %v1373, %v1312
          %v1394 = vadd.f32 %v1374, %v1315
          %v1395 = vadd.f32 %v1375, %v1320
          %v1396 = vadd.f32 %v1376, %v1323
          %v1397 = vadd.f32 %v1377, %v1328
          %v1398 = vadd.f32 %v1378, %v1331
          %v1399 = vadd.f32 %v1379, %v1336
          %v1400 = vadd.f32 %v1380, %v1339
          %v1401 = vadd.f32 %v1381, %v1344
          %v1402 = vadd.f32 %v1382, %v1347
          %v1403 = vadd.f32 %v1383, %v1352
          %v1404 = vadd.f32 %v1384, %v1355
          %v1405 = vadd.f32 %v1385, %v1360
          %v1406 = vadd.f32 %v1386, %v1363
          %1407 = vst [vmem:[%s1366 + $0x6] sm:$0xff] %v1387
          %1408 = vst [vmem:[%s1366 + $0xe] sm:$0x3] %v1388
          %1409 = vst [vmem:[%s1366 + $0x16] sm:$0xff] %v1389
          %1410 = vst [vmem:[%s1366 + $0x1e] sm:$0x3] %v1390
          %1411 = vst [vmem:[%s1366 + $0x26] sm:$0xff] %v1391
          %1412 = vst [vmem:[%s1366 + $0x2e] sm:$0x3] %v1392
          %1413 = vst [vmem:[%s1366 + $0x36] sm:$0xff] %v1393
          %1414 = vst [vmem:[%s1366 + $0x3e] sm:$0x3] %v1394
          %1415 = vst [vmem:[%s1366 + $0x46] sm:$0xff] %v1395
          %1416 = vst [vmem:[%s1366 + $0x4e] sm:$0x3] %v1396
          %1417 = vst [vmem:[%s1366 + $0x56] sm:$0xff] %v1397
          %1418 = vst [vmem:[%s1366 + $0x5e] sm:$0x3] %v1398
          %1419 = vst [vmem:[%s1366 + $0x66] sm:$0xff] %v1399
          %1420 = vst [vmem:[%s1366 + $0x6e] sm:$0x3] %v1400
          %1421 = vst [vmem:[%s1366 + $0x76] sm:$0xff] %v1401
          %1422 = vst [vmem:[%s1366 + $0x7e] sm:$0x3] %v1402
          %1423 = vst [vmem:[%s1366 + $0x86] sm:$0xff] %v1403
          %1424 = vst [vmem:[%s1366 + $0x8e] sm:$0x3] %v1404
          %1425 = vst [vmem:[%s1366 + $0x96] sm:$0xff] %v1405
          %1426 = vst [vmem:[%s1366 + $0x9e] sm:$0x3] %v1406
          %s1427 = scalar_lea.vmem %s319, 16 [#allocation4]
          %v1428 = vld [vmem:[%s1427] sm:$0xf]
          %v1429 = vld [vmem:[%s1427 + $0x4] sm:$0xf]
          %v1430 = vld [vmem:[%s1427 + $0x8] sm:$0xf]
          %v1431 = vld [vmem:[%s1427 + $0xc] sm:$0xf]
          %v1436 = vunpack.c.l.b16 %v1428
          %v1437 = vunpack.c.l.b16 %v1429
          %v1438 = vunpack.c.l.b16 %v1430
          %v1439 = vunpack.c.l.b16 %v1431
          %v1440 = vpack.c.b16 %v1437, %v1436
          %v1441 = vpack.c.b16 %v1439, %v1438
          %1444 = vmatprep.subr.bf16.mxu0 0
          %1445 = vmatpush1.bf16.msra.mxu0 0
          %1446 = vmatprep.subr.bf16.mxu0 0
          %1447 = vmatpush1.bf16.msra.mxu0 0
          %1448 = vmatprep.subr.bf16.mxu0 0
          %1449 = vmatpush1.bf16.msra.mxu0 0
          %1450 = vmatprep.subr.bf16.mxu0 0
          %1451 = vmatpush1.bf16.msra.mxu0 0
          %1452 = vmatprep.subr.bf16.mxu0 0
          %1453 = vmatpush1.bf16.msra.mxu0 0
          %1454 = vmatprep.subr.bf16.mxu0 0
          %1455 = vmatpush1.bf16.msra.mxu0 0
          %1456 = vmatprep.subr.bf16.mxu0 0
          %1457 = vmatpush1.bf16.msra.mxu0 %v1441
          %1458 = vmatprep.subr.bf16.mxu0 0
          %1459 = vmatpush1.bf16.msra.mxu0 %v1440
          %1460 = vmatprep.subr.bf16.mxu0 0
          %1461 = vmatpush2.bf16.msra.mxu0 0
          %1462 = vmatprep.subr.bf16.mxu0 0
          %1463 = vmatpush2.bf16.msra.mxu0 0
          %1464 = vmatprep.subr.bf16.mxu0 0
          %1465 = vmatpush2.bf16.msra.mxu0 0
          %1466 = vmatprep.subr.bf16.mxu0 0
          %1467 = vmatpush2.bf16.msra.mxu0 0
          %1468 = vmatprep.subr.bf16.mxu0 0
          %1469 = vmatpush2.bf16.msra.mxu0 0
          %1470 = vmatprep.subr.bf16.mxu0 0
          %1471 = vmatpush2.bf16.msra.mxu0 0
          %1472 = vmatprep.subr.bf16.mxu0 0
          %1473 = vmatpush2.bf16.msra.mxu0 0
          %1474 = vmatprep.subr.bf16.mxu0 0
          %1475 = vmatpush2.bf16.msra.mxu0 0
          %1476 = vmatprep.mubr.bf16.mxu0 0
          %1477 = vmatmul.mubr.bf16.gmra.mxu0 %v1224
          %v1478 = vpop.f32.mrf.mxu0
          %v1479 = vadd.f32 0.0, %v1478
          %v1480 = vpop.f32.mrf.mxu0
          %v1481 = vpop.f32.mrf.mxu0
          %v1482 = vadd.f32 0.0, %v1481
          %v1483 = vpop.f32.mrf.mxu0
          %1484 = vmatprep.mubr.bf16.mxu0 0
          %1485 = vmatmul.mubr.bf16.gmra.mxu0 %v1227
          %v1486 = vpop.f32.mrf.mxu0
          %v1487 = vadd.f32 0.0, %v1486
          %v1488 = vpop.f32.mrf.mxu0
          %v1489 = vpop.f32.mrf.mxu0
          %v1490 = vadd.f32 0.0, %v1489
          %v1491 = vpop.f32.mrf.mxu0
          %1492 = vmatprep.mubr.bf16.mxu0 0
          %1493 = vmatmul.mubr.bf16.gmra.mxu0 %v1230
          %v1494 = vpop.f32.mrf.mxu0
          %v1495 = vadd.f32 0.0, %v1494
          %v1496 = vpop.f32.mrf.mxu0
          %v1497 = vpop.f32.mrf.mxu0
          %v1498 = vadd.f32 0.0, %v1497
          %v1499 = vpop.f32.mrf.mxu0
          %1500 = vmatprep.mubr.bf16.mxu0 0
          %1501 = vmatmul.mubr.bf16.gmra.mxu0 %v1233
          %v1502 = vpop.f32.mrf.mxu0
          %v1503 = vadd.f32 0.0, %v1502
          %v1504 = vpop.f32.mrf.mxu0
          %v1505 = vpop.f32.mrf.mxu0
          %v1506 = vadd.f32 0.0, %v1505
          %v1507 = vpop.f32.mrf.mxu0
          %1508 = vmatprep.mubr.bf16.mxu0 0
          %1509 = vmatmul.mubr.bf16.gmra.mxu0 %v1236
          %v1510 = vpop.f32.mrf.mxu0
          %v1511 = vadd.f32 0.0, %v1510
          %v1512 = vpop.f32.mrf.mxu0
          %v1513 = vpop.f32.mrf.mxu0
          %v1514 = vadd.f32 0.0, %v1513
          %v1515 = vpop.f32.mrf.mxu0
          %1516 = vmatprep.mubr.bf16.mxu0 0
          %1517 = vmatmul.mubr.bf16.gmra.mxu0 %v1239
          %v1518 = vpop.f32.mrf.mxu0
          %v1519 = vadd.f32 0.0, %v1518
          %v1520 = vpop.f32.mrf.mxu0
          %v1521 = vpop.f32.mrf.mxu0
          %v1522 = vadd.f32 0.0, %v1521
          %v1523 = vpop.f32.mrf.mxu0
          %1524 = vmatprep.mubr.bf16.mxu0 0
          %1525 = vmatmul.mubr.bf16.gmra.mxu0 %v1242
          %v1526 = vpop.f32.mrf.mxu0
          %v1527 = vadd.f32 0.0, %v1526
          %v1528 = vpop.f32.mrf.mxu0
          %v1529 = vpop.f32.mrf.mxu0
          %v1530 = vadd.f32 0.0, %v1529
          %v1531 = vpop.f32.mrf.mxu0
          %1532 = vmatprep.mubr.bf16.mxu0 0
          %1533 = vmatmul.mubr.bf16.gmra.mxu0 %v1245
          %v1534 = vpop.f32.mrf.mxu0
          %v1535 = vadd.f32 0.0, %v1534
          %v1536 = vpop.f32.mrf.mxu0
          %v1537 = vpop.f32.mrf.mxu0
          %v1538 = vadd.f32 0.0, %v1537
          %v1539 = vpop.f32.mrf.mxu0
          %1540 = vmatprep.mubr.bf16.mxu0 0
          %1541 = vmatmul.mubr.bf16.gmra.mxu0 %v1248
          %v1542 = vpop.f32.mrf.mxu0
          %v1543 = vadd.f32 0.0, %v1542
          %v1544 = vpop.f32.mrf.mxu0
          %v1545 = vpop.f32.mrf.mxu0
          %v1546 = vadd.f32 0.0, %v1545
          %v1547 = vpop.f32.mrf.mxu0
          %1548 = vmatprep.mubr.bf16.mxu0 0
          %1549 = vmatmul.mubr.bf16.gmra.mxu0 %v1251
          %v1550 = vpop.f32.mrf.mxu0
          %v1551 = vadd.f32 0.0, %v1550
          %v1552 = vpop.f32.mrf.mxu0
          %v1553 = vpop.f32.mrf.mxu0
          %v1554 = vadd.f32 0.0, %v1553
          %v1555 = vpop.f32.mrf.mxu0
          %1556 = vdwg.mxu0
          %v1557 = vld [vmem:[%s1366] sm:$0xff]
          %v1558 = vld [vmem:[%s1366 + $0x8] sm:$0xff]
          %v1559 = vld [vmem:[%s1366 + $0x10] sm:$0xff]
          %v1560 = vld [vmem:[%s1366 + $0x18] sm:$0xff]
          %v1561 = vld [vmem:[%s1366 + $0x20] sm:$0xff]
          %v1562 = vld [vmem:[%s1366 + $0x28] sm:$0xff]
          %v1563 = vld [vmem:[%s1366 + $0x30] sm:$0xff]
          %v1564 = vld [vmem:[%s1366 + $0x38] sm:$0xff]
          %v1565 = vld [vmem:[%s1366 + $0x40] sm:$0xff]
          %v1566 = vld [vmem:[%s1366 + $0x48] sm:$0xff]
          %v1567 = vld [vmem:[%s1366 + $0x50] sm:$0xff]
          %v1568 = vld [vmem:[%s1366 + $0x58] sm:$0xff]
          %v1569 = vld [vmem:[%s1366 + $0x60] sm:$0xff]
          %v1570 = vld [vmem:[%s1366 + $0x68] sm:$0xff]
          %v1571 = vld [vmem:[%s1366 + $0x70] sm:$0xff]
          %v1572 = vld [vmem:[%s1366 + $0x78] sm:$0xff]
          %v1573 = vld [vmem:[%s1366 + $0x80] sm:$0xff]
          %v1574 = vld [vmem:[%s1366 + $0x88] sm:$0xff]
          %v1575 = vld [vmem:[%s1366 + $0x90] sm:$0xff]
          %v1576 = vld [vmem:[%s1366 + $0x98] sm:$0xff]
          %v1577 = vadd.f32 %v1557, %v1479
          %v1578 = vadd.f32 %v1558, %v1482
          %v1579 = vadd.f32 %v1559, %v1487
          %v1580 = vadd.f32 %v1560, %v1490
          %v1581 = vadd.f32 %v1561, %v1495
          %v1582 = vadd.f32 %v1562, %v1498
          %v1583 = vadd.f32 %v1563, %v1503
          %v1584 = vadd.f32 %v1564, %v1506
          %v1585 = vadd.f32 %v1565, %v1511
          %v1586 = vadd.f32 %v1566, %v1514
          %v1587 = vadd.f32 %v1567, %v1519
          %v1588 = vadd.f32 %v1568, %v1522
          %v1589 = vadd.f32 %v1569, %v1527
          %v1590 = vadd.f32 %v1570, %v1530
          %v1591 = vadd.f32 %v1571, %v1535
          %v1592 = vadd.f32 %v1572, %v1538
          %v1593 = vadd.f32 %v1573, %v1543
          %v1594 = vadd.f32 %v1574, %v1546
          %v1595 = vadd.f32 %v1575, %v1551
          %v1596 = vadd.f32 %v1576, %v1554
          %1597 = vst [vmem:[%s1366] sm:$0xff] %v1577
          %1598 = vst [vmem:[%s1366 + $0x8] sm:$0xff] %v1578
          %1599 = vst [vmem:[%s1366 + $0x10] sm:$0xff] %v1579
          %1600 = vst [vmem:[%s1366 + $0x18] sm:$0xff] %v1580
          %1601 = vst [vmem:[%s1366 + $0x20] sm:$0xff] %v1581
          %1602 = vst [vmem:[%s1366 + $0x28] sm:$0xff] %v1582
          %1603 = vst [vmem:[%s1366 + $0x30] sm:$0xff] %v1583
          %1604 = vst [vmem:[%s1366 + $0x38] sm:$0xff] %v1584
          %1605 = vst [vmem:[%s1366 + $0x40] sm:$0xff] %v1585
          %1606 = vst [vmem:[%s1366 + $0x48] sm:$0xff] %v1586
          %1607 = vst [vmem:[%s1366 + $0x50] sm:$0xff] %v1587
          %1608 = vst [vmem:[%s1366 + $0x58] sm:$0xff] %v1588
          %1609 = vst [vmem:[%s1366 + $0x60] sm:$0xff] %v1589
          %1610 = vst [vmem:[%s1366 + $0x68] sm:$0xff] %v1590
          %1611 = vst [vmem:[%s1366 + $0x70] sm:$0xff] %v1591
          %1612 = vst [vmem:[%s1366 + $0x78] sm:$0xff] %v1592
          %1613 = vst [vmem:[%s1366 + $0x80] sm:$0xff] %v1593
          %1614 = vst [vmem:[%s1366 + $0x88] sm:$0xff] %v1594
          %1615 = vst [vmem:[%s1366 + $0x90] sm:$0xff] %v1595
          %1616 = vst [vmem:[%s1366 + $0x98] sm:$0xff] %v1596
          %s1617 = scalar_lea.vmem %s319, 32 [#allocation4]
          %v1618 = vld [vmem:[%s1617] sm:$0xf]
          %v1619 = vld [vmem:[%s1617 + $0x4] sm:$0xf]
          %v1620 = vld [vmem:[%s1617 + $0x8] sm:$0xf]
          %v1621 = vld [vmem:[%s1617 + $0xc] sm:$0xf]
          %v1626 = vunpack.c.l.b16 %v1618
          %v1627 = vunpack.c.l.b16 %v1619
          %v1628 = vunpack.c.l.b16 %v1620
          %v1629 = vunpack.c.l.b16 %v1621
          %v1630 = vpack.c.b16 %v1627, %v1626
          %v1631 = vpack.c.b16 %v1629, %v1628
          %1634 = vmatprep.subr.bf16.mxu0 0
          %1635 = vmatpush1.bf16.msra.mxu0 0
          %1636 = vmatprep.subr.bf16.mxu0 0
          %1637 = vmatpush1.bf16.msra.mxu0 0
          %1638 = vmatprep.subr.bf16.mxu0 0
          %1639 = vmatpush1.bf16.msra.mxu0 0
          %1640 = vmatprep.subr.bf16.mxu0 0
          %1641 = vmatpush1.bf16.msra.mxu0 0
          %1642 = vmatprep.subr.bf16.mxu0 0
          %1643 = vmatpush1.bf16.msra.mxu0 0
          %1644 = vmatprep.subr.bf16.mxu0 0
          %1645 = vmatpush1.bf16.msra.mxu0 0
          %1646 = vmatprep.subr.bf16.mxu0 0
          %1647 = vmatpush1.bf16.msra.mxu0 %v1631
          %1648 = vmatprep.subr.bf16.mxu0 0
          %1649 = vmatpush1.bf16.msra.mxu0 %v1630
          %1650 = vmatprep.subr.bf16.mxu0 0
          %1651 = vmatpush2.bf16.msra.mxu0 0
          %1652 = vmatprep.subr.bf16.mxu0 0
          %1653 = vmatpush2.bf16.msra.mxu0 0
          %1654 = vmatprep.subr.bf16.mxu0 0
          %1655 = vmatpush2.bf16.msra.mxu0 0
          %1656 = vmatprep.subr.bf16.mxu0 0
          %1657 = vmatpush2.bf16.msra.mxu0 0
          %1658 = vmatprep.subr.bf16.mxu0 0
          %1659 = vmatpush2.bf16.msra.mxu0 0
          %1660 = vmatprep.subr.bf16.mxu0 0
          %1661 = vmatpush2.bf16.msra.mxu0 0
          %1662 = vmatprep.subr.bf16.mxu0 0
          %1663 = vmatpush2.bf16.msra.mxu0 0
          %1664 = vmatprep.subr.bf16.mxu0 0
          %1665 = vmatpush2.bf16.msra.mxu0 0
          %1666 = vmatprep.mubr.bf16.mxu0 0
          %1667 = vmatmul.mubr.bf16.gmra.mxu0 %v1224
          %v1668 = vpop.f32.mrf.mxu0
          %v1669 = vadd.f32 0.0, %v1668
          %v1670 = vpop.f32.mrf.mxu0
          %v1671 = vpop.f32.mrf.mxu0
          %v1672 = vadd.f32 0.0, %v1671
          %v1673 = vpop.f32.mrf.mxu0
          %1674 = vmatprep.mubr.bf16.mxu0 0
          %1675 = vmatmul.mubr.bf16.gmra.mxu0 %v1227
          %v1676 = vpop.f32.mrf.mxu0
          %v1677 = vadd.f32 0.0, %v1676
          %v1678 = vpop.f32.mrf.mxu0
          %v1679 = vpop.f32.mrf.mxu0
          %v1680 = vadd.f32 0.0, %v1679
          %v1681 = vpop.f32.mrf.mxu0
          %1682 = vmatprep.mubr.bf16.mxu0 0
          %1683 = vmatmul.mubr.bf16.gmra.mxu0 %v1230
          %v1684 = vpop.f32.mrf.mxu0
          %v1685 = vadd.f32 0.0, %v1684
          %v1686 = vpop.f32.mrf.mxu0
          %v1687 = vpop.f32.mrf.mxu0
          %v1688 = vadd.f32 0.0, %v1687
          %v1689 = vpop.f32.mrf.mxu0
          %1690 = vmatprep.mubr.bf16.mxu0 0
          %1691 = vmatmul.mubr.bf16.gmra.mxu0 %v1233
          %v1692 = vpop.f32.mrf.mxu0
          %v1693 = vadd.f32 0.0, %v1692
          %v1694 = vpop.f32.mrf.mxu0
          %v1695 = vpop.f32.mrf.mxu0
          %v1696 = vadd.f32 0.0, %v1695
          %v1697 = vpop.f32.mrf.mxu0
          %1698 = vmatprep.mubr.bf16.mxu0 0
          %1699 = vmatmul.mubr.bf16.gmra.mxu0 %v1236
          %v1700 = vpop.f32.mrf.mxu0
          %v1701 = vadd.f32 0.0, %v1700
          %v1702 = vpop.f32.mrf.mxu0
          %v1703 = vpop.f32.mrf.mxu0
          %v1704 = vadd.f32 0.0, %v1703
          %v1705 = vpop.f32.mrf.mxu0
          %1706 = vmatprep.mubr.bf16.mxu0 0
          %1707 = vmatmul.mubr.bf16.gmra.mxu0 %v1239
          %v1708 = vpop.f32.mrf.mxu0
          %v1709 = vadd.f32 0.0, %v1708
          %v1710 = vpop.f32.mrf.mxu0
          %v1711 = vpop.f32.mrf.mxu0
          %v1712 = vadd.f32 0.0, %v1711
          %v1713 = vpop.f32.mrf.mxu0
          %1714 = vmatprep.mubr.bf16.mxu0 0
          %1715 = vmatmul.mubr.bf16.gmra.mxu0 %v1242
          %v1716 = vpop.f32.mrf.mxu0
          %v1717 = vadd.f32 0.0, %v1716
          %v1718 = vpop.f32.mrf.mxu0
          %v1719 = vpop.f32.mrf.mxu0
          %v1720 = vadd.f32 0.0, %v1719
          %v1721 = vpop.f32.mrf.mxu0
          %1722 = vmatprep.mubr.bf16.mxu0 0
          %1723 = vmatmul.mubr.bf16.gmra.mxu0 %v1245
          %v1724 = vpop.f32.mrf.mxu0
          %v1725 = vadd.f32 0.0, %v1724
          %v1726 = vpop.f32.mrf.mxu0
          %v1727 = vpop.f32.mrf.mxu0
          %v1728 = vadd.f32 0.0, %v1727
          %v1729 = vpop.f32.mrf.mxu0
          %1730 = vmatprep.mubr.bf16.mxu0 0
          %1731 = vmatmul.mubr.bf16.gmra.mxu0 %v1248
          %v1732 = vpop.f32.mrf.mxu0
          %v1733 = vadd.f32 0.0, %v1732
          %v1734 = vpop.f32.mrf.mxu0
          %v1735 = vpop.f32.mrf.mxu0
          %v1736 = vadd.f32 0.0, %v1735
          %v1737 = vpop.f32.mrf.mxu0
          %1738 = vmatprep.mubr.bf16.mxu0 0
          %1739 = vmatmul.mubr.bf16.gmra.mxu0 %v1251
          %v1740 = vpop.f32.mrf.mxu0
          %v1741 = vadd.f32 0.0, %v1740
          %v1742 = vpop.f32.mrf.mxu0
          %v1743 = vpop.f32.mrf.mxu0
          %v1744 = vadd.f32 0.0, %v1743
          %v1745 = vpop.f32.mrf.mxu0
          %1746 = vdwg.mxu0
          %v1747 = vld [vmem:[%s1366] sm:$0xff]
          %v1748 = vld [vmem:[%s1366 + $0x8] sm:$0x3]
          %v1749 = vld [vmem:[%s1366 + $0x10] sm:$0xff]
          %v1750 = vld [vmem:[%s1366 + $0x18] sm:$0x3]
          %v1751 = vld [vmem:[%s1366 + $0x20] sm:$0xff]
          %v1752 = vld [vmem:[%s1366 + $0x28] sm:$0x3]
          %v1753 = vld [vmem:[%s1366 + $0x30] sm:$0xff]
          %v1754 = vld [vmem:[%s1366 + $0x38] sm:$0x3]
          %v1755 = vld [vmem:[%s1366 + $0x40] sm:$0xff]
          %v1756 = vld [vmem:[%s1366 + $0x48] sm:$0x3]
          %v1757 = vld [vmem:[%s1366 + $0x50] sm:$0xff]
          %v1758 = vld [vmem:[%s1366 + $0x58] sm:$0x3]
          %v1759 = vld [vmem:[%s1366 + $0x60] sm:$0xff]
          %v1760 = vld [vmem:[%s1366 + $0x68] sm:$0x3]
          %v1761 = vld [vmem:[%s1366 + $0x70] sm:$0xff]
          %v1762 = vld [vmem:[%s1366 + $0x78] sm:$0x3]
          %v1763 = vld [vmem:[%s1366 + $0x80] sm:$0xff]
          %v1764 = vld [vmem:[%s1366 + $0x88] sm:$0x3]
          %v1765 = vld [vmem:[%s1366 + $0x90] sm:$0xff]
          %v1766 = vld [vmem:[%s1366 + $0x98] sm:$0x3]
          %vm1787 = vcmask 1041408
          %v1788 = vrot.slane %v1669, 6
          %v1789 = vrot.slane %v1672, 6
          %v1790 = vsel %vm1787, %v1788, %v1789
          %v1791 = vrot.slane %v1677, 6
          %v1792 = vrot.slane %v1680, 6
          %v1793 = vsel %vm1787, %v1791, %v1792
          %v1794 = vrot.slane %v1685, 6
          %v1795 = vrot.slane %v1688, 6
          %v1796 = vsel %vm1787, %v1794, %v1795
          %v1797 = vrot.slane %v1693, 6
          %v1798 = vrot.slane %v1696, 6
          %v1799 = vsel %vm1787, %v1797, %v1798
          %v1800 = vrot.slane %v1701, 6
          %v1801 = vrot.slane %v1704, 6
          %v1802 = vsel %vm1787, %v1800, %v1801
          %v1803 = vrot.slane %v1709, 6
          %v1804 = vrot.slane %v1712, 6
          %v1805 = vsel %vm1787, %v1803, %v1804
          %v1806 = vrot.slane %v1717, 6
          %v1807 = vrot.slane %v1720, 6
          %v1808 = vsel %vm1787, %v1806, %v1807
          %v1809 = vrot.slane %v1725, 6
          %v1810 = vrot.slane %v1728, 6
          %v1811 = vsel %vm1787, %v1809, %v1810
          %v1812 = vrot.slane %v1733, 6
          %v1813 = vrot.slane %v1736, 6
          %v1814 = vsel %vm1787, %v1812, %v1813
          %v1815 = vrot.slane %v1741, 6
          %v1816 = vrot.slane %v1744, 6
          %v1817 = vsel %vm1787, %v1815, %v1816
          %v1838 = vadd.f32 %v1747, %v1790
          %v1839 = vadd.f32 %v1748, %v1789
          %v1840 = vadd.f32 %v1749, %v1793
          %v1841 = vadd.f32 %v1750, %v1792
          %v1842 = vadd.f32 %v1751, %v1796
          %v1843 = vadd.f32 %v1752, %v1795
          %v1844 = vadd.f32 %v1753, %v1799
          %v1845 = vadd.f32 %v1754, %v1798
          %v1846 = vadd.f32 %v1755, %v1802
          %v1847 = vadd.f32 %v1756, %v1801
          %v1848 = vadd.f32 %v1757, %v1805
          %v1849 = vadd.f32 %v1758, %v1804
          %v1850 = vadd.f32 %v1759, %v1808
          %v1851 = vadd.f32 %v1760, %v1807
          %v1852 = vadd.f32 %v1761, %v1811
          %v1853 = vadd.f32 %v1762, %v1810
          %v1854 = vadd.f32 %v1763, %v1814
          %v1855 = vadd.f32 %v1764, %v1813
          %v1856 = vadd.f32 %v1765, %v1817
          %v1857 = vadd.f32 %v1766, %v1816
          %1858 = vst [vmem:[%s1366] sm:$0xff] %v1838
          %1859 = vst [vmem:[%s1366 + $0x8] sm:$0x3] %v1839
          %1860 = vst [vmem:[%s1366 + $0x10] sm:$0xff] %v1840
          %1861 = vst [vmem:[%s1366 + $0x18] sm:$0x3] %v1841
          %1862 = vst [vmem:[%s1366 + $0x20] sm:$0xff] %v1842
          %1863 = vst [vmem:[%s1366 + $0x28] sm:$0x3] %v1843
          %1864 = vst [vmem:[%s1366 + $0x30] sm:$0xff] %v1844
          %1865 = vst [vmem:[%s1366 + $0x38] sm:$0x3] %v1845
          %1866 = vst [vmem:[%s1366 + $0x40] sm:$0xff] %v1846
          %1867 = vst [vmem:[%s1366 + $0x48] sm:$0x3] %v1847
          %1868 = vst [vmem:[%s1366 + $0x50] sm:$0xff] %v1848
          %1869 = vst [vmem:[%s1366 + $0x58] sm:$0x3] %v1849
          %1870 = vst [vmem:[%s1366 + $0x60] sm:$0xff] %v1850
          %1871 = vst [vmem:[%s1366 + $0x68] sm:$0x3] %v1851
          %1872 = vst [vmem:[%s1366 + $0x70] sm:$0xff] %v1852
          %1873 = vst [vmem:[%s1366 + $0x78] sm:$0x3] %v1853
          %1874 = vst [vmem:[%s1366 + $0x80] sm:$0xff] %v1854
          %1875 = vst [vmem:[%s1366 + $0x88] sm:$0x3] %v1855
          %1876 = vst [vmem:[%s1366 + $0x90] sm:$0xff] %v1856
          %1877 = vst [vmem:[%s1366 + $0x98] sm:$0x3] %v1857
          %s1878 = scalar_lea.vmem %s319, 48 [#allocation4]
          %v1879 = vld [vmem:[%s1878] sm:$0xf]
          %v1880 = vld [vmem:[%s1878 + $0x4] sm:$0xf]
          %v1881 = vld [vmem:[%s1878 + $0x8] sm:$0xf]
          %v1882 = vld [vmem:[%s1878 + $0xc] sm:$0xf]
          %v1895 = vunpack.c.l.b16 %v436
          %v1896 = vunpack.c.l.b16 %v437
          %v1897 = vunpack.c.l.b16 %v438
          %v1898 = vunpack.c.l.b16 %v439
          %v1899 = vunpack.c.l.b16 %v440
          %v1900 = vunpack.c.l.b16 %v441
          %v1901 = vunpack.c.l.b16 %v442
          %v1902 = vunpack.c.l.b16 %v443
          %v1903 = vunpack.c.l.b16 %v444
          %v1904 = vunpack.c.l.b16 %v445
          %v1905 = vunpack.c.l.b16 %v446
          %v1906 = vunpack.c.l.b16 %v447
          %v1907 = vpack.c.b16 %v1896, %v1895
          %v1908 = vpack.c.b16 %v1898, %v1897
          %v1909 = vpack.c.b16 %v1900, %v1899
          %v1910 = vpack.c.b16 %v1902, %v1901
          %v1911 = vpack.c.b16 %v1904, %v1903
          %v1912 = vpack.c.b16 %v1906, %v1905
          %v1917 = vunpack.c.l.b16 %v1879
          %v1918 = vunpack.c.l.b16 %v1880
          %v1919 = vunpack.c.l.b16 %v1881
          %v1920 = vunpack.c.l.b16 %v1882
          %v1921 = vpack.c.b16 %v1918, %v1917
          %v1922 = vpack.c.b16 %v1920, %v1919
          %v1926 = vsel %vm1222, %v1907, 0
          %v1929 = vsel %vm1222, %v1908, 0
          %v1932 = vsel %vm1222, %v1909, 0
          %v1935 = vsel %vm1222, %v1910, 0
          %v1938 = vsel %vm1222, %v1911, 0
          %v1941 = vsel %vm1222, %v1912, 0
          %1943 = vmatprep.subr.bf16.mxu0 0
          %1944 = vmatpush1.bf16.msra.mxu0 0
          %1945 = vmatprep.subr.bf16.mxu0 0
          %1946 = vmatpush1.bf16.msra.mxu0 0
          %1947 = vmatprep.subr.bf16.mxu0 0
          %1948 = vmatpush1.bf16.msra.mxu0 0
          %1949 = vmatprep.subr.bf16.mxu0 0
          %1950 = vmatpush1.bf16.msra.mxu0 0
          %1951 = vmatprep.subr.bf16.mxu0 0
          %1952 = vmatpush1.bf16.msra.mxu0 0
          %1953 = vmatprep.subr.bf16.mxu0 0
          %1954 = vmatpush1.bf16.msra.mxu0 0
          %1955 = vmatprep.subr.bf16.mxu0 0
          %1956 = vmatpush1.bf16.msra.mxu0 %v1922
          %1957 = vmatprep.subr.bf16.mxu0 0
          %1958 = vmatpush1.bf16.msra.mxu0 %v1921
          %1959 = vmatprep.subr.bf16.mxu0 0
          %1960 = vmatpush2.bf16.msra.mxu0 0
          %1961 = vmatprep.subr.bf16.mxu0 0
          %1962 = vmatpush2.bf16.msra.mxu0 0
          %1963 = vmatprep.subr.bf16.mxu0 0
          %1964 = vmatpush2.bf16.msra.mxu0 0
          %1965 = vmatprep.subr.bf16.mxu0 0
          %1966 = vmatpush2.bf16.msra.mxu0 0
          %1967 = vmatprep.subr.bf16.mxu0 0
          %1968 = vmatpush2.bf16.msra.mxu0 0
          %1969 = vmatprep.subr.bf16.mxu0 0
          %1970 = vmatpush2.bf16.msra.mxu0 0
          %1971 = vmatprep.subr.bf16.mxu0 0
          %1972 = vmatpush2.bf16.msra.mxu0 0
          %1973 = vmatprep.subr.bf16.mxu0 0
          %1974 = vmatpush2.bf16.msra.mxu0 0
          %1975 = vmatprep.mubr.bf16.mxu0 0
          %1976 = vmatmul.mubr.bf16.gmra.mxu0 %v1224
          %v1977 = vpop.f32.mrf.mxu0
          %v1978 = vadd.f32 0.0, %v1977
          %v1979 = vpop.f32.mrf.mxu0
          %v1980 = vpop.f32.mrf.mxu0
          %v1981 = vadd.f32 0.0, %v1980
          %v1982 = vpop.f32.mrf.mxu0
          %1983 = vmatprep.mubr.bf16.mxu0 0
          %1984 = vmatmul.mubr.bf16.gmra.mxu0 %v1227
          %v1985 = vpop.f32.mrf.mxu0
          %v1986 = vadd.f32 0.0, %v1985
          %v1987 = vpop.f32.mrf.mxu0
          %v1988 = vpop.f32.mrf.mxu0
          %v1989 = vadd.f32 0.0, %v1988
          %v1990 = vpop.f32.mrf.mxu0
          %1991 = vmatprep.mubr.bf16.mxu0 0
          %1992 = vmatmul.mubr.bf16.gmra.mxu0 %v1230
          %v1993 = vpop.f32.mrf.mxu0
          %v1994 = vadd.f32 0.0, %v1993
          %v1995 = vpop.f32.mrf.mxu0
          %v1996 = vpop.f32.mrf.mxu0
          %v1997 = vadd.f32 0.0, %v1996
          %v1998 = vpop.f32.mrf.mxu0
          %1999 = vmatprep.mubr.bf16.mxu0 0
          %2000 = vmatmul.mubr.bf16.gmra.mxu0 %v1233
          %v2001 = vpop.f32.mrf.mxu0
          %v2002 = vadd.f32 0.0, %v2001
          %v2003 = vpop.f32.mrf.mxu0
          %v2004 = vpop.f32.mrf.mxu0
          %v2005 = vadd.f32 0.0, %v2004
          %v2006 = vpop.f32.mrf.mxu0
          %2007 = vmatprep.mubr.bf16.mxu0 0
          %2008 = vmatmul.mubr.bf16.gmra.mxu0 %v1236
          %v2009 = vpop.f32.mrf.mxu0
          %v2010 = vadd.f32 0.0, %v2009
          %v2011 = vpop.f32.mrf.mxu0
          %v2012 = vpop.f32.mrf.mxu0
          %v2013 = vadd.f32 0.0, %v2012
          %v2014 = vpop.f32.mrf.mxu0
          %2015 = vmatprep.mubr.bf16.mxu0 0
          %2016 = vmatmul.mubr.bf16.gmra.mxu0 %v1239
          %v2017 = vpop.f32.mrf.mxu0
          %v2018 = vadd.f32 0.0, %v2017
          %v2019 = vpop.f32.mrf.mxu0
          %v2020 = vpop.f32.mrf.mxu0
          %v2021 = vadd.f32 0.0, %v2020
          %v2022 = vpop.f32.mrf.mxu0
          %2023 = vmatprep.mubr.bf16.mxu0 0
          %2024 = vmatmul.mubr.bf16.gmra.mxu0 %v1242
          %v2025 = vpop.f32.mrf.mxu0
          %v2026 = vadd.f32 0.0, %v2025
          %v2027 = vpop.f32.mrf.mxu0
          %v2028 = vpop.f32.mrf.mxu0
          %v2029 = vadd.f32 0.0, %v2028
          %v2030 = vpop.f32.mrf.mxu0
          %2031 = vmatprep.mubr.bf16.mxu0 0
          %2032 = vmatmul.mubr.bf16.gmra.mxu0 %v1245
          %v2033 = vpop.f32.mrf.mxu0
          %v2034 = vadd.f32 0.0, %v2033
          %v2035 = vpop.f32.mrf.mxu0
          %v2036 = vpop.f32.mrf.mxu0
          %v2037 = vadd.f32 0.0, %v2036
          %v2038 = vpop.f32.mrf.mxu0
          %2039 = vmatprep.mubr.bf16.mxu0 0
          %2040 = vmatmul.mubr.bf16.gmra.mxu0 %v1248
          %v2041 = vpop.f32.mrf.mxu0
          %v2042 = vadd.f32 0.0, %v2041
          %v2043 = vpop.f32.mrf.mxu0
          %v2044 = vpop.f32.mrf.mxu0
          %v2045 = vadd.f32 0.0, %v2044
          %v2046 = vpop.f32.mrf.mxu0
          %2047 = vmatprep.mubr.bf16.mxu0 0
          %2048 = vmatmul.mubr.bf16.gmra.mxu0 %v1251
          %v2049 = vpop.f32.mrf.mxu0
          %v2050 = vadd.f32 0.0, %v2049
          %v2051 = vpop.f32.mrf.mxu0
          %v2052 = vpop.f32.mrf.mxu0
          %v2053 = vadd.f32 0.0, %v2052
          %v2054 = vpop.f32.mrf.mxu0
          %2055 = vmatprep.mubr.bf16.mxu0 0
          %2056 = vmatmul.mubr.bf16.gmra.mxu0 %v1926
          %v2057 = vpop.f32.mrf.mxu0
          %v2058 = vadd.f32 0.0, %v2057
          %v2059 = vpop.f32.mrf.mxu0
          %v2060 = vpop.f32.mrf.mxu0
          %v2061 = vadd.f32 0.0, %v2060
          %v2062 = vpop.f32.mrf.mxu0
          %2063 = vmatprep.mubr.bf16.mxu0 0
          %2064 = vmatmul.mubr.bf16.gmra.mxu0 %v1929
          %v2065 = vpop.f32.mrf.mxu0
          %v2066 = vadd.f32 0.0, %v2065
          %v2067 = vpop.f32.mrf.mxu0
          %v2068 = vpop.f32.mrf.mxu0
          %v2069 = vadd.f32 0.0, %v2068
          %v2070 = vpop.f32.mrf.mxu0
          %2071 = vmatprep.mubr.bf16.mxu0 0
          %2072 = vmatmul.mubr.bf16.gmra.mxu0 %v1932
          %v2073 = vpop.f32.mrf.mxu0
          %v2074 = vadd.f32 0.0, %v2073
          %v2075 = vpop.f32.mrf.mxu0
          %v2076 = vpop.f32.mrf.mxu0
          %v2077 = vadd.f32 0.0, %v2076
          %v2078 = vpop.f32.mrf.mxu0
          %2079 = vmatprep.mubr.bf16.mxu0 0
          %2080 = vmatmul.mubr.bf16.gmra.mxu0 %v1935
          %v2081 = vpop.f32.mrf.mxu0
          %v2082 = vadd.f32 0.0, %v2081
          %v2083 = vpop.f32.mrf.mxu0
          %v2084 = vpop.f32.mrf.mxu0
          %v2085 = vadd.f32 0.0, %v2084
          %v2086 = vpop.f32.mrf.mxu0
          %2087 = vmatprep.mubr.bf16.mxu0 0
          %2088 = vmatmul.mubr.bf16.gmra.mxu0 %v1938
          %v2089 = vpop.f32.mrf.mxu0
          %v2090 = vadd.f32 0.0, %v2089
          %v2091 = vpop.f32.mrf.mxu0
          %v2092 = vpop.f32.mrf.mxu0
          %v2093 = vadd.f32 0.0, %v2092
          %v2094 = vpop.f32.mrf.mxu0
          %2095 = vmatprep.mubr.bf16.mxu0 0
          %2096 = vmatmul.mubr.bf16.gmra.mxu0 %v1941
          %v2097 = vpop.f32.mrf.mxu0
          %v2098 = vadd.f32 0.0, %v2097
          %v2099 = vpop.f32.mrf.mxu0
          %v2100 = vpop.f32.mrf.mxu0
          %v2101 = vadd.f32 0.0, %v2100
          %v2102 = vpop.f32.mrf.mxu0
          %2103 = vdwg.mxu0
          %v2104 = vld [vmem:[#allocation2 + $0x6] sm:$0xff]
          %v2105 = vld [vmem:[#allocation2 + $0xe] sm:$0x3]
          %v2106 = vld [vmem:[#allocation2 + $0x16] sm:$0xff]
          %v2107 = vld [vmem:[#allocation2 + $0x1e] sm:$0x3]
          %v2108 = vld [vmem:[#allocation2 + $0x26] sm:$0xff]
          %v2109 = vld [vmem:[#allocation2 + $0x2e] sm:$0x3]
          %v2110 = vld [vmem:[#allocation2 + $0x36] sm:$0xff]
          %v2111 = vld [vmem:[#allocation2 + $0x3e] sm:$0x3]
          %v2112 = vld [vmem:[#allocation2 + $0x46] sm:$0xff]
          %v2113 = vld [vmem:[#allocation2 + $0x4e] sm:$0x3]
          %v2114 = vld [vmem:[#allocation2 + $0x56] sm:$0xff]
          %v2115 = vld [vmem:[#allocation2 + $0x5e] sm:$0x3]
          %v2116 = vld [vmem:[#allocation2 + $0x66] sm:$0xff]
          %v2117 = vld [vmem:[#allocation2 + $0x6e] sm:$0x3]
          %v2118 = vld [vmem:[#allocation2 + $0x76] sm:$0xff]
          %v2119 = vld [vmem:[#allocation2 + $0x7e] sm:$0x3]
          %v2120 = vld [vmem:[#allocation2 + $0x86] sm:$0xff]
          %v2121 = vld [vmem:[#allocation2 + $0x8e] sm:$0x3]
          %v2122 = vld [vmem:[#allocation2 + $0x96] sm:$0xff]
          %v2123 = vld [vmem:[#allocation2 + $0x9e] sm:$0x3]
          %v2124 = vld [vmem:[#allocation2 + $0xa6] sm:$0xff]
          %v2125 = vld [vmem:[#allocation2 + $0xae] sm:$0x3]
          %v2126 = vld [vmem:[#allocation2 + $0xb6] sm:$0xff]
          %v2127 = vld [vmem:[#allocation2 + $0xbe] sm:$0x3]
          %v2128 = vld [vmem:[#allocation2 + $0xc6] sm:$0xff]
          %v2129 = vld [vmem:[#allocation2 + $0xce] sm:$0x3]
          %v2130 = vld [vmem:[#allocation2 + $0xd6] sm:$0xff]
          %v2131 = vld [vmem:[#allocation2 + $0xde] sm:$0x3]
          %v2132 = vld [vmem:[#allocation2 + $0xe6] sm:$0xff]
          %v2133 = vld [vmem:[#allocation2 + $0xee] sm:$0x3]
          %v2134 = vld [vmem:[#allocation2 + $0xf6] sm:$0xff]
          %v2135 = vld [vmem:[#allocation2 + $0xfe] sm:$0x3]
          %v2136 = vadd.f32 %v2104, %v1978
          %v2137 = vadd.f32 %v2105, %v1981
          %v2138 = vadd.f32 %v2106, %v1986
          %v2139 = vadd.f32 %v2107, %v1989
          %v2140 = vadd.f32 %v2108, %v1994
          %v2141 = vadd.f32 %v2109, %v1997
          %v2142 = vadd.f32 %v2110, %v2002
          %v2143 = vadd.f32 %v2111, %v2005
          %v2144 = vadd.f32 %v2112, %v2010
          %v2145 = vadd.f32 %v2113, %v2013
          %v2146 = vadd.f32 %v2114, %v2018
          %v2147 = vadd.f32 %v2115, %v2021
          %v2148 = vadd.f32 %v2116, %v2026
          %v2149 = vadd.f32 %v2117, %v2029
          %v2150 = vadd.f32 %v2118, %v2034
          %v2151 = vadd.f32 %v2119, %v2037
          %v2152 = vadd.f32 %v2120, %v2042
          %v2153 = vadd.f32 %v2121, %v2045
          %v2154 = vadd.f32 %v2122, %v2050
          %v2155 = vadd.f32 %v2123, %v2053
          %v2156 = vadd.f32 %v2124, %v2058
          %v2157 = vadd.f32 %v2125, %v2061
          %v2158 = vadd.f32 %v2126, %v2066
          %v2159 = vadd.f32 %v2127, %v2069
          %v2160 = vadd.f32 %v2128, %v2074
          %v2161 = vadd.f32 %v2129, %v2077
          %v2162 = vadd.f32 %v2130, %v2082
          %v2163 = vadd.f32 %v2131, %v2085
          %v2164 = vadd.f32 %v2132, %v2090
          %v2165 = vadd.f32 %v2133, %v2093
          %v2166 = vadd.f32 %v2134, %v2098
          %v2167 = vadd.f32 %v2135, %v2101
          %2168 = vst [vmem:[#allocation2 + $0x6] sm:$0xff] %v2136
          %2169 = vst [vmem:[#allocation2 + $0xe] sm:$0x3] %v2137
          %2170 = vst [vmem:[#allocation2 + $0x16] sm:$0xff] %v2138
          %2171 = vst [vmem:[#allocation2 + $0x1e] sm:$0x3] %v2139
          %2172 = vst [vmem:[#allocation2 + $0x26] sm:$0xff] %v2140
          %2173 = vst [vmem:[#allocation2 + $0x2e] sm:$0x3] %v2141
          %2174 = vst [vmem:[#allocation2 + $0x36] sm:$0xff] %v2142
          %2175 = vst [vmem:[#allocation2 + $0x3e] sm:$0x3] %v2143
          %2176 = vst [vmem:[#allocation2 + $0x46] sm:$0xff] %v2144
          %2177 = vst [vmem:[#allocation2 + $0x4e] sm:$0x3] %v2145
          %2178 = vst [vmem:[#allocation2 + $0x56] sm:$0xff] %v2146
          %2179 = vst [vmem:[#allocation2 + $0x5e] sm:$0x3] %v2147
          %2180 = vst [vmem:[#allocation2 + $0x66] sm:$0xff] %v2148
          %2181 = vst [vmem:[#allocation2 + $0x6e] sm:$0x3] %v2149
          %2182 = vst [vmem:[#allocation2 + $0x76] sm:$0xff] %v2150
          %2183 = vst [vmem:[#allocation2 + $0x7e] sm:$0x3] %v2151
          %2184 = vst [vmem:[#allocation2 + $0x86] sm:$0xff] %v2152
          %2185 = vst [vmem:[#allocation2 + $0x8e] sm:$0x3] %v2153
          %2186 = vst [vmem:[#allocation2 + $0x96] sm:$0xff] %v2154
          %2187 = vst [vmem:[#allocation2 + $0x9e] sm:$0x3] %v2155
          %2188 = vst [vmem:[#allocation2 + $0xa6] sm:$0xff] %v2156
          %2189 = vst [vmem:[#allocation2 + $0xae] sm:$0x3] %v2157
          %2190 = vst [vmem:[#allocation2 + $0xb6] sm:$0xff] %v2158
          %2191 = vst [vmem:[#allocation2 + $0xbe] sm:$0x3] %v2159
          %2192 = vst [vmem:[#allocation2 + $0xc6] sm:$0xff] %v2160
          %2193 = vst [vmem:[#allocation2 + $0xce] sm:$0x3] %v2161
          %2194 = vst [vmem:[#allocation2 + $0xd6] sm:$0xff] %v2162
          %2195 = vst [vmem:[#allocation2 + $0xde] sm:$0x3] %v2163
          %2196 = vst [vmem:[#allocation2 + $0xe6] sm:$0xff] %v2164
          %2197 = vst [vmem:[#allocation2 + $0xee] sm:$0x3] %v2165
          %2198 = vst [vmem:[#allocation2 + $0xf6] sm:$0xff] %v2166
          %2199 = vst [vmem:[#allocation2 + $0xfe] sm:$0x3] %v2167
          %s2200 = scalar_lea.vmem %s319, 64 [#allocation4]
          %v2201 = vld [vmem:[%s2200] sm:$0xf]
          %v2202 = vld [vmem:[%s2200 + $0x4] sm:$0xf]
          %v2203 = vld [vmem:[%s2200 + $0x8] sm:$0xf]
          %v2204 = vld [vmem:[%s2200 + $0xc] sm:$0xf]
          %v2209 = vunpack.c.l.b16 %v2201
          %v2210 = vunpack.c.l.b16 %v2202
          %v2211 = vunpack.c.l.b16 %v2203
          %v2212 = vunpack.c.l.b16 %v2204
          %v2213 = vpack.c.b16 %v2210, %v2209
          %v2214 = vpack.c.b16 %v2212, %v2211
          %2217 = vmatprep.subr.bf16.mxu0 0
          %2218 = vmatpush1.bf16.msra.mxu0 0
          %2219 = vmatprep.subr.bf16.mxu0 0
          %2220 = vmatpush1.bf16.msra.mxu0 0
          %2221 = vmatprep.subr.bf16.mxu0 0
          %2222 = vmatpush1.bf16.msra.mxu0 0
          %2223 = vmatprep.subr.bf16.mxu0 0
          %2224 = vmatpush1.bf16.msra.mxu0 0
          %2225 = vmatprep.subr.bf16.mxu0 0
          %2226 = vmatpush1.bf16.msra.mxu0 0
          %2227 = vmatprep.subr.bf16.mxu0 0
          %2228 = vmatpush1.bf16.msra.mxu0 0
          %2229 = vmatprep.subr.bf16.mxu0 0
          %2230 = vmatpush1.bf16.msra.mxu0 %v2214
          %2231 = vmatprep.subr.bf16.mxu0 0
          %2232 = vmatpush1.bf16.msra.mxu0 %v2213
          %2233 = vmatprep.subr.bf16.mxu0 0
          %2234 = vmatpush2.bf16.msra.mxu0 0
          %2235 = vmatprep.subr.bf16.mxu0 0
          %2236 = vmatpush2.bf16.msra.mxu0 0
          %2237 = vmatprep.subr.bf16.mxu0 0
          %2238 = vmatpush2.bf16.msra.mxu0 0
          %2239 = vmatprep.subr.bf16.mxu0 0
          %2240 = vmatpush2.bf16.msra.mxu0 0
          %2241 = vmatprep.subr.bf16.mxu0 0
          %2242 = vmatpush2.bf16.msra.mxu0 0
          %2243 = vmatprep.subr.bf16.mxu0 0
          %2244 = vmatpush2.bf16.msra.mxu0 0
          %2245 = vmatprep.subr.bf16.mxu0 0
          %2246 = vmatpush2.bf16.msra.mxu0 0
          %2247 = vmatprep.subr.bf16.mxu0 0
          %2248 = vmatpush2.bf16.msra.mxu0 0
          %2249 = vmatprep.mubr.bf16.mxu0 0
          %2250 = vmatmul.mubr.bf16.gmra.mxu0 %v1224
          %v2251 = vpop.f32.mrf.mxu0
          %v2252 = vadd.f32 0.0, %v2251
          %v2253 = vpop.f32.mrf.mxu0
          %v2254 = vpop.f32.mrf.mxu0
          %v2255 = vadd.f32 0.0, %v2254
          %v2256 = vpop.f32.mrf.mxu0
          %2257 = vmatprep.mubr.bf16.mxu0 0
          %2258 = vmatmul.mubr.bf16.gmra.mxu0 %v1227
          %v2259 = vpop.f32.mrf.mxu0
          %v2260 = vadd.f32 0.0, %v2259
          %v2261 = vpop.f32.mrf.mxu0
          %v2262 = vpop.f32.mrf.mxu0
          %v2263 = vadd.f32 0.0, %v2262
          %v2264 = vpop.f32.mrf.mxu0
          %2265 = vmatprep.mubr.bf16.mxu0 0
          %2266 = vmatmul.mubr.bf16.gmra.mxu0 %v1230
          %v2267 = vpop.f32.mrf.mxu0
          %v2268 = vadd.f32 0.0, %v2267
          %v2269 = vpop.f32.mrf.mxu0
          %v2270 = vpop.f32.mrf.mxu0
          %v2271 = vadd.f32 0.0, %v2270
          %v2272 = vpop.f32.mrf.mxu0
          %2273 = vmatprep.mubr.bf16.mxu0 0
          %2274 = vmatmul.mubr.bf16.gmra.mxu0 %v1233
          %v2275 = vpop.f32.mrf.mxu0
          %v2276 = vadd.f32 0.0, %v2275
          %v2277 = vpop.f32.mrf.mxu0
          %v2278 = vpop.f32.mrf.mxu0
          %v2279 = vadd.f32 0.0, %v2278
          %v2280 = vpop.f32.mrf.mxu0
          %2281 = vmatprep.mubr.bf16.mxu0 0
          %2282 = vmatmul.mubr.bf16.gmra.mxu0 %v1236
          %v2283 = vpop.f32.mrf.mxu0
          %v2284 = vadd.f32 0.0, %v2283
          %v2285 = vpop.f32.mrf.mxu0
          %v2286 = vpop.f32.mrf.mxu0
          %v2287 = vadd.f32 0.0, %v2286
          %v2288 = vpop.f32.mrf.mxu0
          %2289 = vmatprep.mubr.bf16.mxu0 0
          %2290 = vmatmul.mubr.bf16.gmra.mxu0 %v1239
          %v2291 = vpop.f32.mrf.mxu0
          %v2292 = vadd.f32 0.0, %v2291
          %v2293 = vpop.f32.mrf.mxu0
          %v2294 = vpop.f32.mrf.mxu0
          %v2295 = vadd.f32 0.0, %v2294
          %v2296 = vpop.f32.mrf.mxu0
          %2297 = vmatprep.mubr.bf16.mxu0 0
          %2298 = vmatmul.mubr.bf16.gmra.mxu0 %v1242
          %v2299 = vpop.f32.mrf.mxu0
          %v2300 = vadd.f32 0.0, %v2299
          %v2301 = vpop.f32.mrf.mxu0
          %v2302 = vpop.f32.mrf.mxu0
          %v2303 = vadd.f32 0.0, %v2302
          %v2304 = vpop.f32.mrf.mxu0
          %2305 = vmatprep.mubr.bf16.mxu0 0
          %2306 = vmatmul.mubr.bf16.gmra.mxu0 %v1245
          %v2307 = vpop.f32.mrf.mxu0
          %v2308 = vadd.f32 0.0, %v2307
          %v2309 = vpop.f32.mrf.mxu0
          %v2310 = vpop.f32.mrf.mxu0
          %v2311 = vadd.f32 0.0, %v2310
          %v2312 = vpop.f32.mrf.mxu0
          %2313 = vmatprep.mubr.bf16.mxu0 0
          %2314 = vmatmul.mubr.bf16.gmra.mxu0 %v1248
          %v2315 = vpop.f32.mrf.mxu0
          %v2316 = vadd.f32 0.0, %v2315
          %v2317 = vpop.f32.mrf.mxu0
          %v2318 = vpop.f32.mrf.mxu0
          %v2319 = vadd.f32 0.0, %v2318
          %v2320 = vpop.f32.mrf.mxu0
          %2321 = vmatprep.mubr.bf16.mxu0 0
          %2322 = vmatmul.mubr.bf16.gmra.mxu0 %v1251
          %v2323 = vpop.f32.mrf.mxu0
          %v2324 = vadd.f32 0.0, %v2323
          %v2325 = vpop.f32.mrf.mxu0
          %v2326 = vpop.f32.mrf.mxu0
          %v2327 = vadd.f32 0.0, %v2326
          %v2328 = vpop.f32.mrf.mxu0
          %2329 = vmatprep.mubr.bf16.mxu0 0
          %2330 = vmatmul.mubr.bf16.gmra.mxu0 %v1926
          %v2331 = vpop.f32.mrf.mxu0
          %v2332 = vadd.f32 0.0, %v2331
          %v2333 = vpop.f32.mrf.mxu0
          %v2334 = vpop.f32.mrf.mxu0
          %v2335 = vadd.f32 0.0, %v2334
          %v2336 = vpop.f32.mrf.mxu0
          %2337 = vmatprep.mubr.bf16.mxu0 0
          %2338 = vmatmul.mubr.bf16.gmra.mxu0 %v1929
          %v2339 = vpop.f32.mrf.mxu0
          %v2340 = vadd.f32 0.0, %v2339
          %v2341 = vpop.f32.mrf.mxu0
          %v2342 = vpop.f32.mrf.mxu0
          %v2343 = vadd.f32 0.0, %v2342
          %v2344 = vpop.f32.mrf.mxu0
          %2345 = vmatprep.mubr.bf16.mxu0 0
          %2346 = vmatmul.mubr.bf16.gmra.mxu0 %v1932
          %v2347 = vpop.f32.mrf.mxu0
          %v2348 = vadd.f32 0.0, %v2347
          %v2349 = vpop.f32.mrf.mxu0
          %v2350 = vpop.f32.mrf.mxu0
          %v2351 = vadd.f32 0.0, %v2350
          %v2352 = vpop.f32.mrf.mxu0
          %2353 = vmatprep.mubr.bf16.mxu0 0
          %2354 = vmatmul.mubr.bf16.gmra.mxu0 %v1935
          %v2355 = vpop.f32.mrf.mxu0
          %v2356 = vadd.f32 0.0, %v2355
          %v2357 = vpop.f32.mrf.mxu0
          %v2358 = vpop.f32.mrf.mxu0
          %v2359 = vadd.f32 0.0, %v2358
          %v2360 = vpop.f32.mrf.mxu0
          %2361 = vmatprep.mubr.bf16.mxu0 0
          %2362 = vmatmul.mubr.bf16.gmra.mxu0 %v1938
          %v2363 = vpop.f32.mrf.mxu0
          %v2364 = vadd.f32 0.0, %v2363
          %v2365 = vpop.f32.mrf.mxu0
          %v2366 = vpop.f32.mrf.mxu0
          %v2367 = vadd.f32 0.0, %v2366
          %v2368 = vpop.f32.mrf.mxu0
          %2369 = vmatprep.mubr.bf16.mxu0 0
          %2370 = vmatmul.mubr.bf16.gmra.mxu0 %v1941
          %v2371 = vpop.f32.mrf.mxu0
          %v2372 = vadd.f32 0.0, %v2371
          %v2373 = vpop.f32.mrf.mxu0
          %v2374 = vpop.f32.mrf.mxu0
          %v2375 = vadd.f32 0.0, %v2374
          %v2376 = vpop.f32.mrf.mxu0
          %2377 = vdwg.mxu0
          %v2378 = vld [vmem:[#allocation2] sm:$0xff]
          %v2379 = vld [vmem:[#allocation2 + $0x8] sm:$0x3]
          %v2380 = vld [vmem:[#allocation2 + $0x10] sm:$0xff]
          %v2381 = vld [vmem:[#allocation2 + $0x18] sm:$0x3]
          %v2382 = vld [vmem:[#allocation2 + $0x20] sm:$0xff]
          %v2383 = vld [vmem:[#allocation2 + $0x28] sm:$0x3]
          %v2384 = vld [vmem:[#allocation2 + $0x30] sm:$0xff]
          %v2385 = vld [vmem:[#allocation2 + $0x38] sm:$0x3]
          %v2386 = vld [vmem:[#allocation2 + $0x40] sm:$0xff]
          %v2387 = vld [vmem:[#allocation2 + $0x48] sm:$0x3]
          %v2388 = vld [vmem:[#allocation2 + $0x50] sm:$0xff]
          %v2389 = vld [vmem:[#allocation2 + $0x58] sm:$0x3]
          %v2390 = vld [vmem:[#allocation2 + $0x60] sm:$0xff]
          %v2391 = vld [vmem:[#allocation2 + $0x68] sm:$0x3]
          %v2392 = vld [vmem:[#allocation2 + $0x70] sm:$0xff]
          %v2393 = vld [vmem:[#allocation2 + $0x78] sm:$0x3]
          %v2394 = vld [vmem:[#allocation2 + $0x80] sm:$0xff]
          %v2395 = vld [vmem:[#allocation2 + $0x88] sm:$0x3]
          %v2396 = vld [vmem:[#allocation2 + $0x90] sm:$0xff]
          %v2397 = vld [vmem:[#allocation2 + $0x98] sm:$0x3]
          %v2398 = vld [vmem:[#allocation2 + $0xa0] sm:$0xff]
          %v2399 = vld [vmem:[#allocation2 + $0xa8] sm:$0x3]
          %v2400 = vld [vmem:[#allocation2 + $0xb0] sm:$0xff]
          %v2401 = vld [vmem:[#allocation2 + $0xb8] sm:$0x3]
          %v2402 = vld [vmem:[#allocation2 + $0xc0] sm:$0xff]
          %v2403 = vld [vmem:[#allocation2 + $0xc8] sm:$0x3]
          %v2404 = vld [vmem:[#allocation2 + $0xd0] sm:$0xff]
          %v2405 = vld [vmem:[#allocation2 + $0xd8] sm:$0x3]
          %v2406 = vld [vmem:[#allocation2 + $0xe0] sm:$0xff]
          %v2407 = vld [vmem:[#allocation2 + $0xe8] sm:$0x3]
          %v2408 = vld [vmem:[#allocation2 + $0xf0] sm:$0xff]
          %v2409 = vld [vmem:[#allocation2 + $0xf8] sm:$0x3]
          %v2442 = vrot.slane %v2252, 6
          %v2443 = vrot.slane %v2255, 6
          %v2444 = vsel %vm1787, %v2442, %v2443
          %v2445 = vrot.slane %v2260, 6
          %v2446 = vrot.slane %v2263, 6
          %v2447 = vsel %vm1787, %v2445, %v2446
          %v2448 = vrot.slane %v2268, 6
          %v2449 = vrot.slane %v2271, 6
          %v2450 = vsel %vm1787, %v2448, %v2449
          %v2451 = vrot.slane %v2276, 6
          %v2452 = vrot.slane %v2279, 6
          %v2453 = vsel %vm1787, %v2451, %v2452
          %v2454 = vrot.slane %v2284, 6
          %v2455 = vrot.slane %v2287, 6
          %v2456 = vsel %vm1787, %v2454, %v2455
          %v2457 = vrot.slane %v2292, 6
          %v2458 = vrot.slane %v2295, 6
          %v2459 = vsel %vm1787, %v2457, %v2458
          %v2460 = vrot.slane %v2300, 6
          %v2461 = vrot.slane %v2303, 6
          %v2462 = vsel %vm1787, %v2460, %v2461
          %v2463 = vrot.slane %v2308, 6
          %v2464 = vrot.slane %v2311, 6
          %v2465 = vsel %vm1787, %v2463, %v2464
          %v2466 = vrot.slane %v2316, 6
          %v2467 = vrot.slane %v2319, 6
          %v2468 = vsel %vm1787, %v2466, %v2467
          %v2469 = vrot.slane %v2324, 6
          %v2470 = vrot.slane %v2327, 6
          %v2471 = vsel %vm1787, %v2469, %v2470
          %v2472 = vrot.slane %v2332, 6
          %v2473 = vrot.slane %v2335, 6
          %v2474 = vsel %vm1787, %v2472, %v2473
          %v2475 = vrot.slane %v2340, 6
          %v2476 = vrot.slane %v2343, 6
          %v2477 = vsel %vm1787, %v2475, %v2476
          %v2478 = vrot.slane %v2348, 6
          %v2479 = vrot.slane %v2351, 6
          %v2480 = vsel %vm1787, %v2478, %v2479
          %v2481 = vrot.slane %v2356, 6
          %v2482 = vrot.slane %v2359, 6
          %v2483 = vsel %vm1787, %v2481, %v2482
          %v2484 = vrot.slane %v2364, 6
          %v2485 = vrot.slane %v2367, 6
          %v2486 = vsel %vm1787, %v2484, %v2485
          %v2487 = vrot.slane %v2372, 6
          %v2488 = vrot.slane %v2375, 6
          %v2489 = vsel %vm1787, %v2487, %v2488
          %v2522 = vadd.f32 %v2378, %v2444
          %v2523 = vadd.f32 %v2379, %v2443
          %v2524 = vadd.f32 %v2380, %v2447
          %v2525 = vadd.f32 %v2381, %v2446
          %v2526 = vadd.f32 %v2382, %v2450
          %v2527 = vadd.f32 %v2383, %v2449
          %v2528 = vadd.f32 %v2384, %v2453
          %v2529 = vadd.f32 %v2385, %v2452
          %v2530 = vadd.f32 %v2386, %v2456
          %v2531 = vadd.f32 %v2387, %v2455
          %v2532 = vadd.f32 %v2388, %v2459
          %v2533 = vadd.f32 %v2389, %v2458
          %v2534 = vadd.f32 %v2390, %v2462
          %v2535 = vadd.f32 %v2391, %v2461
          %v2536 = vadd.f32 %v2392, %v2465
          %v2537 = vadd.f32 %v2393, %v2464
          %v2538 = vadd.f32 %v2394, %v2468
          %v2539 = vadd.f32 %v2395, %v2467
          %v2540 = vadd.f32 %v2396, %v2471
          %v2541 = vadd.f32 %v2397, %v2470
          %v2542 = vadd.f32 %v2398, %v2474
          %v2543 = vadd.f32 %v2399, %v2473
          %v2544 = vadd.f32 %v2400, %v2477
          %v2545 = vadd.f32 %v2401, %v2476
          %v2546 = vadd.f32 %v2402, %v2480
          %v2547 = vadd.f32 %v2403, %v2479
          %v2548 = vadd.f32 %v2404, %v2483
          %v2549 = vadd.f32 %v2405, %v2482
          %v2550 = vadd.f32 %v2406, %v2486
          %v2551 = vadd.f32 %v2407, %v2485
          %v2552 = vadd.f32 %v2408, %v2489
          %v2553 = vadd.f32 %v2409, %v2488
          %2554 = vst [vmem:[#allocation2] sm:$0xff] %v2522
          %2555 = vst [vmem:[#allocation2 + $0x8] sm:$0x3] %v2523
          %2556 = vst [vmem:[#allocation2 + $0x10] sm:$0xff] %v2524
          %2557 = vst [vmem:[#allocation2 + $0x18] sm:$0x3] %v2525
          %2558 = vst [vmem:[#allocation2 + $0x20] sm:$0xff] %v2526
          %2559 = vst [vmem:[#allocation2 + $0x28] sm:$0x3] %v2527
          %2560 = vst [vmem:[#allocation2 + $0x30] sm:$0xff] %v2528
          %2561 = vst [vmem:[#allocation2 + $0x38] sm:$0x3] %v2529
          %2562 = vst [vmem:[#allocation2 + $0x40] sm:$0xff] %v2530
          %2563 = vst [vmem:[#allocation2 + $0x48] sm:$0x3] %v2531
          %2564 = vst [vmem:[#allocation2 + $0x50] sm:$0xff] %v2532
          %2565 = vst [vmem:[#allocation2 + $0x58] sm:$0x3] %v2533
          %2566 = vst [vmem:[#allocation2 + $0x60] sm:$0xff] %v2534
          %2567 = vst [vmem:[#allocation2 + $0x68] sm:$0x3] %v2535
          %2568 = vst [vmem:[#allocation2 + $0x70] sm:$0xff] %v2536
          %2569 = vst [vmem:[#allocation2 + $0x78] sm:$0x3] %v2537
          %2570 = vst [vmem:[#allocation2 + $0x80] sm:$0xff] %v2538
          %2571 = vst [vmem:[#allocation2 + $0x88] sm:$0x3] %v2539
          %2572 = vst [vmem:[#allocation2 + $0x90] sm:$0xff] %v2540
          %2573 = vst [vmem:[#allocation2 + $0x98] sm:$0x3] %v2541
          %2574 = vst [vmem:[#allocation2 + $0xa0] sm:$0xff] %v2542
          %2575 = vst [vmem:[#allocation2 + $0xa8] sm:$0x3] %v2543
          %2576 = vst [vmem:[#allocation2 + $0xb0] sm:$0xff] %v2544
          %2577 = vst [vmem:[#allocation2 + $0xb8] sm:$0x3] %v2545
          %2578 = vst [vmem:[#allocation2 + $0xc0] sm:$0xff] %v2546
          %2579 = vst [vmem:[#allocation2 + $0xc8] sm:$0x3] %v2547
          %2580 = vst [vmem:[#allocation2 + $0xd0] sm:$0xff] %v2548
          %2581 = vst [vmem:[#allocation2 + $0xd8] sm:$0x3] %v2549
          %2582 = vst [vmem:[#allocation2 + $0xe0] sm:$0xff] %v2550
          %2583 = vst [vmem:[#allocation2 + $0xe8] sm:$0x3] %v2551
          %2584 = vst [vmem:[#allocation2 + $0xf0] sm:$0xff] %v2552
          %2585 = vst [vmem:[#allocation2 + $0xf8] sm:$0x3] %v2553
          %s2586 = scalar_lea.vmem %s319, 80 [#allocation4]
          %v2587 = vld [vmem:[%s2586] sm:$0xf]
          %v2588 = vld [vmem:[%s2586 + $0x4] sm:$0xf]
          %v2589 = vld [vmem:[%s2586 + $0x8] sm:$0xf]
          %v2590 = vld [vmem:[%s2586 + $0xc] sm:$0xf]
          %v2595 = vunpack.c.l.b16 %v2587
          %v2596 = vunpack.c.l.b16 %v2588
          %v2597 = vunpack.c.l.b16 %v2589
          %v2598 = vunpack.c.l.b16 %v2590
          %v2599 = vpack.c.b16 %v2596, %v2595
          %v2600 = vpack.c.b16 %v2598, %v2597
          %2603 = vmatprep.subr.bf16.mxu0 0
          %2604 = vmatpush1.bf16.msra.mxu0 0
          %2605 = vmatprep.subr.bf16.mxu0 0
          %2606 = vmatpush1.bf16.msra.mxu0 0
          %2607 = vmatprep.subr.bf16.mxu0 0
          %2608 = vmatpush1.bf16.msra.mxu0 0
          %2609 = vmatprep.subr.bf16.mxu0 0
          %2610 = vmatpush1.bf16.msra.mxu0 0
          %2611 = vmatprep.subr.bf16.mxu0 0
          %2612 = vmatpush1.bf16.msra.mxu0 0
          %2613 = vmatprep.subr.bf16.mxu0 0
          %2614 = vmatpush1.bf16.msra.mxu0 0
          %2615 = vmatprep.subr.bf16.mxu0 0
          %2616 = vmatpush1.bf16.msra.mxu0 %v2600
          %2617 = vmatprep.subr.bf16.mxu0 0
          %2618 = vmatpush1.bf16.msra.mxu0 %v2599
          %2619 = vmatprep.subr.bf16.mxu0 0
          %2620 = vmatpush2.bf16.msra.mxu0 0
          %2621 = vmatprep.subr.bf16.mxu0 0
          %2622 = vmatpush2.bf16.msra.mxu0 0
          %2623 = vmatprep.subr.bf16.mxu0 0
          %2624 = vmatpush2.bf16.msra.mxu0 0
          %2625 = vmatprep.subr.bf16.mxu0 0
          %2626 = vmatpush2.bf16.msra.mxu0 0
          %2627 = vmatprep.subr.bf16.mxu0 0
          %2628 = vmatpush2.bf16.msra.mxu0 0
          %2629 = vmatprep.subr.bf16.mxu0 0
          %2630 = vmatpush2.bf16.msra.mxu0 0
          %2631 = vmatprep.subr.bf16.mxu0 0
          %2632 = vmatpush2.bf16.msra.mxu0 0
          %2633 = vmatprep.subr.bf16.mxu0 0
          %2634 = vmatpush2.bf16.msra.mxu0 0
          %2635 = vmatprep.mubr.bf16.mxu0 0
          %2636 = vmatmul.mubr.bf16.gmra.mxu0 %v1242
          %v2637 = vpop.f32.mrf.mxu0
          %v2638 = vadd.f32 0.0, %v2637
          %v2639 = vpop.f32.mrf.mxu0
          %v2640 = vpop.f32.mrf.mxu0
          %v2641 = vadd.f32 0.0, %v2640
          %v2642 = vpop.f32.mrf.mxu0
          %2643 = vmatprep.mubr.bf16.mxu0 0
          %2644 = vmatmul.mubr.bf16.gmra.mxu0 %v1245
          %v2645 = vpop.f32.mrf.mxu0
          %v2646 = vadd.f32 0.0, %v2645
          %v2647 = vpop.f32.mrf.mxu0
          %v2648 = vpop.f32.mrf.mxu0
          %v2649 = vadd.f32 0.0, %v2648
          %v2650 = vpop.f32.mrf.mxu0
          %2651 = vmatprep.mubr.bf16.mxu0 0
          %2652 = vmatmul.mubr.bf16.gmra.mxu0 %v1248
          %v2653 = vpop.f32.mrf.mxu0
          %v2654 = vadd.f32 0.0, %v2653
          %v2655 = vpop.f32.mrf.mxu0
          %v2656 = vpop.f32.mrf.mxu0
          %v2657 = vadd.f32 0.0, %v2656
          %v2658 = vpop.f32.mrf.mxu0
          %2659 = vmatprep.mubr.bf16.mxu0 0
          %2660 = vmatmul.mubr.bf16.gmra.mxu0 %v1251
          %v2661 = vpop.f32.mrf.mxu0
          %v2662 = vadd.f32 0.0, %v2661
          %v2663 = vpop.f32.mrf.mxu0
          %v2664 = vpop.f32.mrf.mxu0
          %v2665 = vadd.f32 0.0, %v2664
          %v2666 = vpop.f32.mrf.mxu0
          %2667 = vmatprep.mubr.bf16.mxu0 0
          %2668 = vmatmul.mubr.bf16.gmra.mxu0 %v1926
          %v2669 = vpop.f32.mrf.mxu0
          %v2670 = vadd.f32 0.0, %v2669
          %v2671 = vpop.f32.mrf.mxu0
          %v2672 = vpop.f32.mrf.mxu0
          %v2673 = vadd.f32 0.0, %v2672
          %v2674 = vpop.f32.mrf.mxu0
          %2675 = vmatprep.mubr.bf16.mxu0 0
          %2676 = vmatmul.mubr.bf16.gmra.mxu0 %v1929
          %v2677 = vpop.f32.mrf.mxu0
          %v2678 = vadd.f32 0.0, %v2677
          %v2679 = vpop.f32.mrf.mxu0
          %v2680 = vpop.f32.mrf.mxu0
          %v2681 = vadd.f32 0.0, %v2680
          %v2682 = vpop.f32.mrf.mxu0
          %2683 = vmatprep.mubr.bf16.mxu0 0
          %2684 = vmatmul.mubr.bf16.gmra.mxu0 %v1932
          %v2685 = vpop.f32.mrf.mxu0
          %v2686 = vadd.f32 0.0, %v2685
          %v2687 = vpop.f32.mrf.mxu0
          %v2688 = vpop.f32.mrf.mxu0
          %v2689 = vadd.f32 0.0, %v2688
          %v2690 = vpop.f32.mrf.mxu0
          %2691 = vmatprep.mubr.bf16.mxu0 0
          %2692 = vmatmul.mubr.bf16.gmra.mxu0 %v1935
          %v2693 = vpop.f32.mrf.mxu0
          %v2694 = vadd.f32 0.0, %v2693
          %v2695 = vpop.f32.mrf.mxu0
          %v2696 = vpop.f32.mrf.mxu0
          %v2697 = vadd.f32 0.0, %v2696
          %v2698 = vpop.f32.mrf.mxu0
          %2699 = vmatprep.mubr.bf16.mxu0 0
          %2700 = vmatmul.mubr.bf16.gmra.mxu0 %v1938
          %v2701 = vpop.f32.mrf.mxu0
          %v2702 = vadd.f32 0.0, %v2701
          %v2703 = vpop.f32.mrf.mxu0
          %v2704 = vpop.f32.mrf.mxu0
          %v2705 = vadd.f32 0.0, %v2704
          %v2706 = vpop.f32.mrf.mxu0
          %2707 = vmatprep.mubr.bf16.mxu0 0
          %2708 = vmatmul.mubr.bf16.gmra.mxu0 %v1941
          %v2709 = vpop.f32.mrf.mxu0
          %v2710 = vadd.f32 0.0, %v2709
          %v2711 = vpop.f32.mrf.mxu0
          %v2712 = vpop.f32.mrf.mxu0
          %v2713 = vadd.f32 0.0, %v2712
          %v2714 = vpop.f32.mrf.mxu0
          %2715 = vdwg.mxu0
          %v2716 = vld [vmem:[#allocation2 + $0x6] sm:$0xff]
          %v2717 = vld [vmem:[#allocation2 + $0xe] sm:$0x3]
          %v2718 = vld [vmem:[#allocation2 + $0x16] sm:$0xff]
          %v2719 = vld [vmem:[#allocation2 + $0x1e] sm:$0x3]
          %v2720 = vld [vmem:[#allocation2 + $0x26] sm:$0xff]
          %v2721 = vld [vmem:[#allocation2 + $0x2e] sm:$0x3]
          %v2722 = vld [vmem:[#allocation2 + $0x36] sm:$0xff]
          %v2723 = vld [vmem:[#allocation2 + $0x3e] sm:$0x3]
          %v2724 = vld [vmem:[#allocation2 + $0x46] sm:$0xff]
          %v2725 = vld [vmem:[#allocation2 + $0x4e] sm:$0x3]
          %v2726 = vld [vmem:[#allocation2 + $0x56] sm:$0xff]
          %v2727 = vld [vmem:[#allocation2 + $0x5e] sm:$0x3]
          %v2728 = vld [vmem:[#allocation2 + $0x66] sm:$0xff]
          %v2729 = vld [vmem:[#allocation2 + $0x6e] sm:$0x3]
          %v2730 = vld [vmem:[#allocation2 + $0x76] sm:$0xff]
          %v2731 = vld [vmem:[#allocation2 + $0x7e] sm:$0x3]
          %v2732 = vld [vmem:[#allocation2 + $0x86] sm:$0xff]
          %v2733 = vld [vmem:[#allocation2 + $0x8e] sm:$0x3]
          %v2734 = vld [vmem:[#allocation2 + $0x96] sm:$0xff]
          %v2735 = vld [vmem:[#allocation2 + $0x9e] sm:$0x3]
          %v2736 = vadd.f32 %v2716, %v2638
          %v2737 = vadd.f32 %v2717, %v2641
          %v2738 = vadd.f32 %v2718, %v2646
          %v2739 = vadd.f32 %v2719, %v2649
          %v2740 = vadd.f32 %v2720, %v2654
          %v2741 = vadd.f32 %v2721, %v2657
          %v2742 = vadd.f32 %v2722, %v2662
          %v2743 = vadd.f32 %v2723, %v2665
          %v2744 = vadd.f32 %v2724, %v2670
          %v2745 = vadd.f32 %v2725, %v2673
          %v2746 = vadd.f32 %v2726, %v2678
          %v2747 = vadd.f32 %v2727, %v2681
          %v2748 = vadd.f32 %v2728, %v2686
          %v2749 = vadd.f32 %v2729, %v2689
          %v2750 = vadd.f32 %v2730, %v2694
          %v2751 = vadd.f32 %v2731, %v2697
          %v2752 = vadd.f32 %v2732, %v2702
          %v2753 = vadd.f32 %v2733, %v2705
          %v2754 = vadd.f32 %v2734, %v2710
          %v2755 = vadd.f32 %v2735, %v2713
          %2756 = vst [vmem:[#allocation2 + $0x6] sm:$0xff] %v2736
          %2757 = vst [vmem:[#allocation2 + $0xe] sm:$0x3] %v2737
          %2758 = vst [vmem:[#allocation2 + $0x16] sm:$0xff] %v2738
          %2759 = vst [vmem:[#allocation2 + $0x1e] sm:$0x3] %v2739
          %2760 = vst [vmem:[#allocation2 + $0x26] sm:$0xff] %v2740
          %2761 = vst [vmem:[#allocation2 + $0x2e] sm:$0x3] %v2741
          %2762 = vst [vmem:[#allocation2 + $0x36] sm:$0xff] %v2742
          %2763 = vst [vmem:[#allocation2 + $0x3e] sm:$0x3] %v2743
          %2764 = vst [vmem:[#allocation2 + $0x46] sm:$0xff] %v2744
          %2765 = vst [vmem:[#allocation2 + $0x4e] sm:$0x3] %v2745
          %2766 = vst [vmem:[#allocation2 + $0x56] sm:$0xff] %v2746
          %2767 = vst [vmem:[#allocation2 + $0x5e] sm:$0x3] %v2747
          %2768 = vst [vmem:[#allocation2 + $0x66] sm:$0xff] %v2748
          %2769 = vst [vmem:[#allocation2 + $0x6e] sm:$0x3] %v2749
          %2770 = vst [vmem:[#allocation2 + $0x76] sm:$0xff] %v2750
          %2771 = vst [vmem:[#allocation2 + $0x7e] sm:$0x3] %v2751
          %2772 = vst [vmem:[#allocation2 + $0x86] sm:$0xff] %v2752
          %2773 = vst [vmem:[#allocation2 + $0x8e] sm:$0x3] %v2753
          %2774 = vst [vmem:[#allocation2 + $0x96] sm:$0xff] %v2754
          %2775 = vst [vmem:[#allocation2 + $0x9e] sm:$0x3] %v2755
          %s2776 = scalar_lea.vmem %s319, 96 [#allocation4]
          %v2777 = vld [vmem:[%s2776] sm:$0xf]
          %v2778 = vld [vmem:[%s2776 + $0x4] sm:$0xf]
          %v2779 = vld [vmem:[%s2776 + $0x8] sm:$0xf]
          %v2780 = vld [vmem:[%s2776 + $0xc] sm:$0xf]
          %v2785 = vunpack.c.l.b16 %v2777
          %v2786 = vunpack.c.l.b16 %v2778
          %v2787 = vunpack.c.l.b16 %v2779
          %v2788 = vunpack.c.l.b16 %v2780
          %v2789 = vpack.c.b16 %v2786, %v2785
          %v2790 = vpack.c.b16 %v2788, %v2787
          %2793 = vmatprep.subr.bf16.mxu0 0
          %2794 = vmatpush1.bf16.msra.mxu0 0
          %2795 = vmatprep.subr.bf16.mxu0 0
          %2796 = vmatpush1.bf16.msra.mxu0 0
          %2797 = vmatprep.subr.bf16.mxu0 0
          %2798 = vmatpush1.bf16.msra.mxu0 0
          %2799 = vmatprep.subr.bf16.mxu0 0
          %2800 = vmatpush1.bf16.msra.mxu0 0
          %2801 = vmatprep.subr.bf16.mxu0 0
          %2802 = vmatpush1.bf16.msra.mxu0 0
          %2803 = vmatprep.subr.bf16.mxu0 0
          %2804 = vmatpush1.bf16.msra.mxu0 0
          %2805 = vmatprep.subr.bf16.mxu0 0
          %2806 = vmatpush1.bf16.msra.mxu0 %v2790
          %2807 = vmatprep.subr.bf16.mxu0 0
          %2808 = vmatpush1.bf16.msra.mxu0 %v2789
          %2809 = vmatprep.subr.bf16.mxu0 0
          %2810 = vmatpush2.bf16.msra.mxu0 0
          %2811 = vmatprep.subr.bf16.mxu0 0
          %2812 = vmatpush2.bf16.msra.mxu0 0
          %2813 = vmatprep.subr.bf16.mxu0 0
          %2814 = vmatpush2.bf16.msra.mxu0 0
          %2815 = vmatprep.subr.bf16.mxu0 0
          %2816 = vmatpush2.bf16.msra.mxu0 0
          %2817 = vmatprep.subr.bf16.mxu0 0
          %2818 = vmatpush2.bf16.msra.mxu0 0
          %2819 = vmatprep.subr.bf16.mxu0 0
          %2820 = vmatpush2.bf16.msra.mxu0 0
          %2821 = vmatprep.subr.bf16.mxu0 0
          %2822 = vmatpush2.bf16.msra.mxu0 0
          %2823 = vmatprep.subr.bf16.mxu0 0
          %2824 = vmatpush2.bf16.msra.mxu0 0
          %2825 = vmatprep.mubr.bf16.mxu0 0
          %2826 = vmatmul.mubr.bf16.gmra.mxu0 %v1242
          %v2827 = vpop.f32.mrf.mxu0
          %v2828 = vadd.f32 0.0, %v2827
          %v2829 = vpop.f32.mrf.mxu0
          %v2830 = vpop.f32.mrf.mxu0
          %v2831 = vadd.f32 0.0, %v2830
          %v2832 = vpop.f32.mrf.mxu0
          %2833 = vmatprep.mubr.bf16.mxu0 0
          %2834 = vmatmul.mubr.bf16.gmra.mxu0 %v1245
          %v2835 = vpop.f32.mrf.mxu0
          %v2836 = vadd.f32 0.0, %v2835
          %v2837 = vpop.f32.mrf.mxu0
          %v2838 = vpop.f32.mrf.mxu0
          %v2839 = vadd.f32 0.0, %v2838
          %v2840 = vpop.f32.mrf.mxu0
          %2841 = vmatprep.mubr.bf16.mxu0 0
          %2842 = vmatmul.mubr.bf16.gmra.mxu0 %v1248
          %v2843 = vpop.f32.mrf.mxu0
          %v2844 = vadd.f32 0.0, %v2843
          %v2845 = vpop.f32.mrf.mxu0
          %v2846 = vpop.f32.mrf.mxu0
          %v2847 = vadd.f32 0.0, %v2846
          %v2848 = vpop.f32.mrf.mxu0
          %2849 = vmatprep.mubr.bf16.mxu0 0
          %2850 = vmatmul.mubr.bf16.gmra.mxu0 %v1251
          %v2851 = vpop.f32.mrf.mxu0
          %v2852 = vadd.f32 0.0, %v2851
          %v2853 = vpop.f32.mrf.mxu0
          %v2854 = vpop.f32.mrf.mxu0
          %v2855 = vadd.f32 0.0, %v2854
          %v2856 = vpop.f32.mrf.mxu0
          %2857 = vmatprep.mubr.bf16.mxu0 0
          %2858 = vmatmul.mubr.bf16.gmra.mxu0 %v1926
          %v2859 = vpop.f32.mrf.mxu0
          %v2860 = vadd.f32 0.0, %v2859
          %v2861 = vpop.f32.mrf.mxu0
          %v2862 = vpop.f32.mrf.mxu0
          %v2863 = vadd.f32 0.0, %v2862
          %v2864 = vpop.f32.mrf.mxu0
          %2865 = vmatprep.mubr.bf16.mxu0 0
          %2866 = vmatmul.mubr.bf16.gmra.mxu0 %v1929
          %v2867 = vpop.f32.mrf.mxu0
          %v2868 = vadd.f32 0.0, %v2867
          %v2869 = vpop.f32.mrf.mxu0
          %v2870 = vpop.f32.mrf.mxu0
          %v2871 = vadd.f32 0.0, %v2870
          %v2872 = vpop.f32.mrf.mxu0
          %2873 = vmatprep.mubr.bf16.mxu0 0
          %2874 = vmatmul.mubr.bf16.gmra.mxu0 %v1932
          %v2875 = vpop.f32.mrf.mxu0
          %v2876 = vadd.f32 0.0, %v2875
          %v2877 = vpop.f32.mrf.mxu0
          %v2878 = vpop.f32.mrf.mxu0
          %v2879 = vadd.f32 0.0, %v2878
          %v2880 = vpop.f32.mrf.mxu0
          %2881 = vmatprep.mubr.bf16.mxu0 0
          %2882 = vmatmul.mubr.bf16.gmra.mxu0 %v1935
          %v2883 = vpop.f32.mrf.mxu0
          %v2884 = vadd.f32 0.0, %v2883
          %v2885 = vpop.f32.mrf.mxu0
          %v2886 = vpop.f32.mrf.mxu0
          %v2887 = vadd.f32 0.0, %v2886
          %v2888 = vpop.f32.mrf.mxu0
          %2889 = vmatprep.mubr.bf16.mxu0 0
          %2890 = vmatmul.mubr.bf16.gmra.mxu0 %v1938
          %v2891 = vpop.f32.mrf.mxu0
          %v2892 = vadd.f32 0.0, %v2891
          %v2893 = vpop.f32.mrf.mxu0
          %v2894 = vpop.f32.mrf.mxu0
          %v2895 = vadd.f32 0.0, %v2894
          %v2896 = vpop.f32.mrf.mxu0
          %2897 = vmatprep.mubr.bf16.mxu0 0
          %2898 = vmatmul.mubr.bf16.gmra.mxu0 %v1941
          %v2899 = vpop.f32.mrf.mxu0
          %v2900 = vadd.f32 0.0, %v2899
          %v2901 = vpop.f32.mrf.mxu0
          %v2902 = vpop.f32.mrf.mxu0
          %v2903 = vadd.f32 0.0, %v2902
          %v2904 = vpop.f32.mrf.mxu0
          %2905 = vdwg.mxu0
          %v2906 = vld [vmem:[#allocation2] sm:$0xff]
          %v2907 = vld [vmem:[#allocation2 + $0x8] sm:$0xff]
          %v2908 = vld [vmem:[#allocation2 + $0x10] sm:$0xff]
          %v2909 = vld [vmem:[#allocation2 + $0x18] sm:$0xff]
          %v2910 = vld [vmem:[#allocation2 + $0x20] sm:$0xff]
          %v2911 = vld [vmem:[#allocation2 + $0x28] sm:$0xff]
          %v2912 = vld [vmem:[#allocation2 + $0x30] sm:$0xff]
          %v2913 = vld [vmem:[#allocation2 + $0x38] sm:$0xff]
          %v2914 = vld [vmem:[#allocation2 + $0x40] sm:$0xff]
          %v2915 = vld [vmem:[#allocation2 + $0x48] sm:$0xff]
          %v2916 = vld [vmem:[#allocation2 + $0x50] sm:$0xff]
          %v2917 = vld [vmem:[#allocation2 + $0x58] sm:$0xff]
          %v2918 = vld [vmem:[#allocation2 + $0x60] sm:$0xff]
          %v2919 = vld [vmem:[#allocation2 + $0x68] sm:$0xff]
          %v2920 = vld [vmem:[#allocation2 + $0x70] sm:$0xff]
          %v2921 = vld [vmem:[#allocation2 + $0x78] sm:$0xff]
          %v2922 = vld [vmem:[#allocation2 + $0x80] sm:$0xff]
          %v2923 = vld [vmem:[#allocation2 + $0x88] sm:$0xff]
          %v2924 = vld [vmem:[#allocation2 + $0x90] sm:$0xff]
          %v2925 = vld [vmem:[#allocation2 + $0x98] sm:$0xff]
          %v2926 = vadd.f32 %v2906, %v2828
          %v2927 = vadd.f32 %v2907, %v2831
          %v2928 = vadd.f32 %v2908, %v2836
          %v2929 = vadd.f32 %v2909, %v2839
          %v2930 = vadd.f32 %v2910, %v2844
          %v2931 = vadd.f32 %v2911, %v2847
          %v2932 = vadd.f32 %v2912, %v2852
          %v2933 = vadd.f32 %v2913, %v2855
          %v2934 = vadd.f32 %v2914, %v2860
          %v2935 = vadd.f32 %v2915, %v2863
          %v2936 = vadd.f32 %v2916, %v2868
          %v2937 = vadd.f32 %v2917, %v2871
          %v2938 = vadd.f32 %v2918, %v2876
          %v2939 = vadd.f32 %v2919, %v2879
          %v2940 = vadd.f32 %v2920, %v2884
          %v2941 = vadd.f32 %v2921, %v2887
          %v2942 = vadd.f32 %v2922, %v2892
          %v2943 = vadd.f32 %v2923, %v2895
          %v2944 = vadd.f32 %v2924, %v2900
          %v2945 = vadd.f32 %v2925, %v2903
          %2946 = vst [vmem:[#allocation2] sm:$0xff] %v2926
          %2947 = vst [vmem:[#allocation2 + $0x8] sm:$0xff] %v2927
          %2948 = vst [vmem:[#allocation2 + $0x10] sm:$0xff] %v2928
          %2949 = vst [vmem:[#allocation2 + $0x18] sm:$0xff] %v2929
          %2950 = vst [vmem:[#allocation2 + $0x20] sm:$0xff] %v2930
          %2951 = vst [vmem:[#allocation2 + $0x28] sm:$0xff] %v2931
          %2952 = vst [vmem:[#allocation2 + $0x30] sm:$0xff] %v2932
          %2953 = vst [vmem:[#allocation2 + $0x38] sm:$0xff] %v2933
          %2954 = vst [vmem:[#allocation2 + $0x40] sm:$0xff] %v2934
          %2955 = vst [vmem:[#allocation2 + $0x48] sm:$0xff] %v2935
          %2956 = vst [vmem:[#allocation2 + $0x50] sm:$0xff] %v2936
          %2957 = vst [vmem:[#allocation2 + $0x58] sm:$0xff] %v2937
          %2958 = vst [vmem:[#allocation2 + $0x60] sm:$0xff] %v2938
          %2959 = vst [vmem:[#allocation2 + $0x68] sm:$0xff] %v2939
          %2960 = vst [vmem:[#allocation2 + $0x70] sm:$0xff] %v2940
          %2961 = vst [vmem:[#allocation2 + $0x78] sm:$0xff] %v2941
          %2962 = vst [vmem:[#allocation2 + $0x80] sm:$0xff] %v2942
          %2963 = vst [vmem:[#allocation2 + $0x88] sm:$0xff] %v2943
          %2964 = vst [vmem:[#allocation2 + $0x90] sm:$0xff] %v2944
          %2965 = vst [vmem:[#allocation2 + $0x98] sm:$0xff] %v2945
          %s2966 = scalar_lea.vmem %s319, 112 [#allocation4]
          %v2967 = vld [vmem:[%s2966] sm:$0xf]
          %v2968 = vld [vmem:[%s2966 + $0x4] sm:$0xf]
          %v2969 = vld [vmem:[%s2966 + $0x8] sm:$0xf]
          %v2970 = vld [vmem:[%s2966 + $0xc] sm:$0xf]
          %v2975 = vunpack.c.l.b16 %v2967
          %v2976 = vunpack.c.l.b16 %v2968
          %v2977 = vunpack.c.l.b16 %v2969
          %v2978 = vunpack.c.l.b16 %v2970
          %v2979 = vpack.c.b16 %v2976, %v2975
          %v2980 = vpack.c.b16 %v2978, %v2977
          %2983 = vmatprep.subr.bf16.mxu0 0
          %2984 = vmatpush1.bf16.msra.mxu0 0
          %2985 = vmatprep.subr.bf16.mxu0 0
          %2986 = vmatpush1.bf16.msra.mxu0 0
          %2987 = vmatprep.subr.bf16.mxu0 0
          %2988 = vmatpush1.bf16.msra.mxu0 0
          %2989 = vmatprep.subr.bf16.mxu0 0
          %2990 = vmatpush1.bf16.msra.mxu0 0
          %2991 = vmatprep.subr.bf16.mxu0 0
          %2992 = vmatpush1.bf16.msra.mxu0 0
          %2993 = vmatprep.subr.bf16.mxu0 0
          %2994 = vmatpush1.bf16.msra.mxu0 0
          %2995 = vmatprep.subr.bf16.mxu0 0
          %2996 = vmatpush1.bf16.msra.mxu0 %v2980
          %2997 = vmatprep.subr.bf16.mxu0 0
          %2998 = vmatpush1.bf16.msra.mxu0 %v2979
          %2999 = vmatprep.subr.bf16.mxu0 0
          %3000 = vmatpush2.bf16.msra.mxu0 0
          %3001 = vmatprep.subr.bf16.mxu0 0
          %3002 = vmatpush2.bf16.msra.mxu0 0
          %3003 = vmatprep.subr.bf16.mxu0 0
          %3004 = vmatpush2.bf16.msra.mxu0 0
          %3005 = vmatprep.subr.bf16.mxu0 0
          %3006 = vmatpush2.bf16.msra.mxu0 0
          %3007 = vmatprep.subr.bf16.mxu0 0
          %3008 = vmatpush2.bf16.msra.mxu0 0
          %3009 = vmatprep.subr.bf16.mxu0 0
          %3010 = vmatpush2.bf16.msra.mxu0 0
          %3011 = vmatprep.subr.bf16.mxu0 0
          %3012 = vmatpush2.bf16.msra.mxu0 0
          %3013 = vmatprep.subr.bf16.mxu0 0
          %3014 = vmatpush2.bf16.msra.mxu0 0
          %3015 = vmatprep.mubr.bf16.mxu0 0
          %3016 = vmatmul.mubr.bf16.gmra.mxu0 %v1242
          %v3017 = vpop.f32.mrf.mxu0
          %v3018 = vadd.f32 0.0, %v3017
          %v3019 = vpop.f32.mrf.mxu0
          %v3020 = vpop.f32.mrf.mxu0
          %v3021 = vadd.f32 0.0, %v3020
          %v3022 = vpop.f32.mrf.mxu0
          %3023 = vmatprep.mubr.bf16.mxu0 0
          %3024 = vmatmul.mubr.bf16.gmra.mxu0 %v1245
          %v3025 = vpop.f32.mrf.mxu0
          %v3026 = vadd.f32 0.0, %v3025
          %v3027 = vpop.f32.mrf.mxu0
          %v3028 = vpop.f32.mrf.mxu0
          %v3029 = vadd.f32 0.0, %v3028
          %v3030 = vpop.f32.mrf.mxu0
          %3031 = vmatprep.mubr.bf16.mxu0 0
          %3032 = vmatmul.mubr.bf16.gmra.mxu0 %v1248
          %v3033 = vpop.f32.mrf.mxu0
          %v3034 = vadd.f32 0.0, %v3033
          %v3035 = vpop.f32.mrf.mxu0
          %v3036 = vpop.f32.mrf.mxu0
          %v3037 = vadd.f32 0.0, %v3036
          %v3038 = vpop.f32.mrf.mxu0
          %3039 = vmatprep.mubr.bf16.mxu0 0
          %3040 = vmatmul.mubr.bf16.gmra.mxu0 %v1251
          %v3041 = vpop.f32.mrf.mxu0
          %v3042 = vadd.f32 0.0, %v3041
          %v3043 = vpop.f32.mrf.mxu0
          %v3044 = vpop.f32.mrf.mxu0
          %v3045 = vadd.f32 0.0, %v3044
          %v3046 = vpop.f32.mrf.mxu0
          %3047 = vmatprep.mubr.bf16.mxu0 0
          %3048 = vmatmul.mubr.bf16.gmra.mxu0 %v1926
          %v3049 = vpop.f32.mrf.mxu0
          %v3050 = vadd.f32 0.0, %v3049
          %v3051 = vpop.f32.mrf.mxu0
          %v3052 = vpop.f32.mrf.mxu0
          %v3053 = vadd.f32 0.0, %v3052
          %v3054 = vpop.f32.mrf.mxu0
          %3055 = vmatprep.mubr.bf16.mxu0 0
          %3056 = vmatmul.mubr.bf16.gmra.mxu0 %v1929
          %v3057 = vpop.f32.mrf.mxu0
          %v3058 = vadd.f32 0.0, %v3057
          %v3059 = vpop.f32.mrf.mxu0
          %v3060 = vpop.f32.mrf.mxu0
          %v3061 = vadd.f32 0.0, %v3060
          %v3062 = vpop.f32.mrf.mxu0
          %3063 = vmatprep.mubr.bf16.mxu0 0
          %3064 = vmatmul.mubr.bf16.gmra.mxu0 %v1932
          %v3065 = vpop.f32.mrf.mxu0
          %v3066 = vadd.f32 0.0, %v3065
          %v3067 = vpop.f32.mrf.mxu0
          %v3068 = vpop.f32.mrf.mxu0
          %v3069 = vadd.f32 0.0, %v3068
          %v3070 = vpop.f32.mrf.mxu0
          %3071 = vmatprep.mubr.bf16.mxu0 0
          %3072 = vmatmul.mubr.bf16.gmra.mxu0 %v1935
          %v3073 = vpop.f32.mrf.mxu0
          %v3074 = vadd.f32 0.0, %v3073
          %v3075 = vpop.f32.mrf.mxu0
          %v3076 = vpop.f32.mrf.mxu0
          %v3077 = vadd.f32 0.0, %v3076
          %v3078 = vpop.f32.mrf.mxu0
          %3079 = vmatprep.mubr.bf16.mxu0 0
          %3080 = vmatmul.mubr.bf16.gmra.mxu0 %v1938
          %v3081 = vpop.f32.mrf.mxu0
          %v3082 = vadd.f32 0.0, %v3081
          %v3083 = vpop.f32.mrf.mxu0
          %v3084 = vpop.f32.mrf.mxu0
          %v3085 = vadd.f32 0.0, %v3084
          %v3086 = vpop.f32.mrf.mxu0
          %3087 = vmatprep.mubr.bf16.mxu0 0
          %3088 = vmatmul.mubr.bf16.gmra.mxu0 %v1941
          %v3089 = vpop.f32.mrf.mxu0
          %v3090 = vadd.f32 0.0, %v3089
          %v3091 = vpop.f32.mrf.mxu0
          %v3092 = vpop.f32.mrf.mxu0
          %v3093 = vadd.f32 0.0, %v3092
          %v3094 = vpop.f32.mrf.mxu0
          %3095 = vdwg.mxu0
          %v3096 = vld [vmem:[#allocation2] sm:$0xff]
          %v3097 = vld [vmem:[#allocation2 + $0x8] sm:$0x3]
          %v3098 = vld [vmem:[#allocation2 + $0x10] sm:$0xff]
          %v3099 = vld [vmem:[#allocation2 + $0x18] sm:$0x3]
          %v3100 = vld [vmem:[#allocation2 + $0x20] sm:$0xff]
          %v3101 = vld [vmem:[#allocation2 + $0x28] sm:$0x3]
          %v3102 = vld [vmem:[#allocation2 + $0x30] sm:$0xff]
          %v3103 = vld [vmem:[#allocation2 + $0x38] sm:$0x3]
          %v3104 = vld [vmem:[#allocation2 + $0x40] sm:$0xff]
          %v3105 = vld [vmem:[#allocation2 + $0x48] sm:$0x3]
          %v3106 = vld [vmem:[#allocation2 + $0x50] sm:$0xff]
          %v3107 = vld [vmem:[#allocation2 + $0x58] sm:$0x3]
          %v3108 = vld [vmem:[#allocation2 + $0x60] sm:$0xff]
          %v3109 = vld [vmem:[#allocation2 + $0x68] sm:$0x3]
          %v3110 = vld [vmem:[#allocation2 + $0x70] sm:$0xff]
          %v3111 = vld [vmem:[#allocation2 + $0x78] sm:$0x3]
          %v3112 = vld [vmem:[#allocation2 + $0x80] sm:$0xff]
          %v3113 = vld [vmem:[#allocation2 + $0x88] sm:$0x3]
          %v3114 = vld [vmem:[#allocation2 + $0x90] sm:$0xff]
          %v3115 = vld [vmem:[#allocation2 + $0x98] sm:$0x3]
          %v3136 = vrot.slane %v3018, 6
          %v3137 = vrot.slane %v3021, 6
          %v3138 = vsel %vm1787, %v3136, %v3137
          %v3139 = vrot.slane %v3026, 6
          %v3140 = vrot.slane %v3029, 6
          %v3141 = vsel %vm1787, %v3139, %v3140
          %v3142 = vrot.slane %v3034, 6
          %v3143 = vrot.slane %v3037, 6
          %v3144 = vsel %vm1787, %v3142, %v3143
          %v3145 = vrot.slane %v3042, 6
          %v3146 = vrot.slane %v3045, 6
          %v3147 = vsel %vm1787, %v3145, %v3146
          %v3148 = vrot.slane %v3050, 6
          %v3149 = vrot.slane %v3053, 6
          %v3150 = vsel %vm1787, %v3148, %v3149
          %v3151 = vrot.slane %v3058, 6
          %v3152 = vrot.slane %v3061, 6
          %v3153 = vsel %vm1787, %v3151, %v3152
          %v3154 = vrot.slane %v3066, 6
          %v3155 = vrot.slane %v3069, 6
          %v3156 = vsel %vm1787, %v3154, %v3155
          %v3157 = vrot.slane %v3074, 6
          %v3158 = vrot.slane %v3077, 6
          %v3159 = vsel %vm1787, %v3157, %v3158
          %v3160 = vrot.slane %v3082, 6
          %v3161 = vrot.slane %v3085, 6
          %v3162 = vsel %vm1787, %v3160, %v3161
          %v3163 = vrot.slane %v3090, 6
          %v3164 = vrot.slane %v3093, 6
          %v3165 = vsel %vm1787, %v3163, %v3164
          %v3186 = vadd.f32 %v3096, %v3138
          %v3187 = vadd.f32 %v3097, %v3137
          %v3188 = vadd.f32 %v3098, %v3141
          %v3189 = vadd.f32 %v3099, %v3140
          %v3190 = vadd.f32 %v3100, %v3144
          %v3191 = vadd.f32 %v3101, %v3143
          %v3192 = vadd.f32 %v3102, %v3147
          %v3193 = vadd.f32 %v3103, %v3146
          %v3194 = vadd.f32 %v3104, %v3150
          %v3195 = vadd.f32 %v3105, %v3149
          %v3196 = vadd.f32 %v3106, %v3153
          %v3197 = vadd.f32 %v3107, %v3152
          %v3198 = vadd.f32 %v3108, %v3156
          %v3199 = vadd.f32 %v3109, %v3155
          %v3200 = vadd.f32 %v3110, %v3159
          %v3201 = vadd.f32 %v3111, %v3158
          %v3202 = vadd.f32 %v3112, %v3162
          %v3203 = vadd.f32 %v3113, %v3161
          %v3204 = vadd.f32 %v3114, %v3165
          %v3205 = vadd.f32 %v3115, %v3164
          %3206 = vst [vmem:[#allocation2] sm:$0xff] %v3186
          %3207 = vst [vmem:[#allocation2 + $0x8] sm:$0x3] %v3187
          %3208 = vst [vmem:[#allocation2 + $0x10] sm:$0xff] %v3188
          %3209 = vst [vmem:[#allocation2 + $0x18] sm:$0x3] %v3189
          %3210 = vst [vmem:[#allocation2 + $0x20] sm:$0xff] %v3190
          %3211 = vst [vmem:[#allocation2 + $0x28] sm:$0x3] %v3191
          %3212 = vst [vmem:[#allocation2 + $0x30] sm:$0xff] %v3192
          %3213 = vst [vmem:[#allocation2 + $0x38] sm:$0x3] %v3193
          %3214 = vst [vmem:[#allocation2 + $0x40] sm:$0xff] %v3194
          %3215 = vst [vmem:[#allocation2 + $0x48] sm:$0x3] %v3195
          %3216 = vst [vmem:[#allocation2 + $0x50] sm:$0xff] %v3196
          %3217 = vst [vmem:[#allocation2 + $0x58] sm:$0x3] %v3197
          %3218 = vst [vmem:[#allocation2 + $0x60] sm:$0xff] %v3198
          %3219 = vst [vmem:[#allocation2 + $0x68] sm:$0x3] %v3199
          %3220 = vst [vmem:[#allocation2 + $0x70] sm:$0xff] %v3200
          %3221 = vst [vmem:[#allocation2 + $0x78] sm:$0x3] %v3201
          %3222 = vst [vmem:[#allocation2 + $0x80] sm:$0xff] %v3202
          %3223 = vst [vmem:[#allocation2 + $0x88] sm:$0x3] %v3203
          %3224 = vst [vmem:[#allocation2 + $0x90] sm:$0xff] %v3204
          %3225 = vst [vmem:[#allocation2 + $0x98] sm:$0x3] %v3205
        $region72: #{tpu_custom_call.1} parent=39 // pred_fallthru
          _
        %p3226 = scmp.eq.s32.totalorder %s28, 3
        // Predicated region
        $region73: #{tpu_custom_call.1} parent=39 // pred_check
          %p3227 = pneg %p3226
        $region74: #{tpu_custom_call.1} parent=39 // pred_check_branch
          %3229 = sbr.rel (%p3227) target = $region76
        $region75: #{tpu_custom_call.1} parent=39 // pred_region
          %v3230 = vld [vmem:[%s319] sm:$0xf]
          %v3231 = vld [vmem:[%s319 + $0x4] sm:$0xf]
          %v3232 = vld [vmem:[%s319 + $0x8] sm:$0xf]
          %v3233 = vld [vmem:[%s319 + $0xc] sm:$0xf]
          %v3242 = vunpack.c.l.b16 %v416
          %v3243 = vunpack.c.l.b16 %v417
          %v3244 = vunpack.c.l.b16 %v418
          %v3245 = vunpack.c.l.b16 %v419
          %v3246 = vunpack.c.l.b16 %v420
          %v3247 = vunpack.c.l.b16 %v421
          %v3248 = vunpack.c.l.b16 %v422
          %v3249 = vunpack.c.l.b16 %v423
          %v3250 = vpack.c.b16 %v3243, %v3242
          %v3251 = vpack.c.b16 %v3245, %v3244
          %v3252 = vpack.c.b16 %v3247, %v3246
          %v3253 = vpack.c.b16 %v3249, %v3248
          %v3258 = vunpack.c.l.b16 %v3230
          %v3259 = vunpack.c.l.b16 %v3231
          %v3260 = vunpack.c.l.b16 %v3232
          %v3261 = vunpack.c.l.b16 %v3233
          %v3262 = vpack.c.b16 %v3259, %v3258
          %v3263 = vpack.c.b16 %v3261, %v3260
          %vm3266 = vcmask 261120
          %v3268 = vsel %vm3266, %v3250, 0
          %v3271 = vsel %vm3266, %v3251, 0
          %v3274 = vsel %vm3266, %v3252, 0
          %v3277 = vsel %vm3266, %v3253, 0
          %3279 = vmatprep.subr.bf16.mxu0 0
          %3280 = vmatpush1.bf16.msra.mxu0 0
          %3281 = vmatprep.subr.bf16.mxu0 0
          %3282 = vmatpush1.bf16.msra.mxu0 0
          %3283 = vmatprep.subr.bf16.mxu0 0
          %3284 = vmatpush1.bf16.msra.mxu0 0
          %3285 = vmatprep.subr.bf16.mxu0 0
          %3286 = vmatpush1.bf16.msra.mxu0 0
          %3287 = vmatprep.subr.bf16.mxu0 0
          %3288 = vmatpush1.bf16.msra.mxu0 0
          %3289 = vmatprep.subr.bf16.mxu0 0
          %3290 = vmatpush1.bf16.msra.mxu0 0
          %3291 = vmatprep.subr.bf16.mxu0 0
          %3292 = vmatpush1.bf16.msra.mxu0 %v3263
          %3293 = vmatprep.subr.bf16.mxu0 0
          %3294 = vmatpush1.bf16.msra.mxu0 %v3262
          %3295 = vmatprep.subr.bf16.mxu0 0
          %3296 = vmatpush2.bf16.msra.mxu0 0
          %3297 = vmatprep.subr.bf16.mxu0 0
          %3298 = vmatpush2.bf16.msra.mxu0 0
          %3299 = vmatprep.subr.bf16.mxu0 0
          %3300 = vmatpush2.bf16.msra.mxu0 0
          %3301 = vmatprep.subr.bf16.mxu0 0
          %3302 = vmatpush2.bf16.msra.mxu0 0
          %3303 = vmatprep.subr.bf16.mxu0 0
          %3304 = vmatpush2.bf16.msra.mxu0 0
          %3305 = vmatprep.subr.bf16.mxu0 0
          %3306 = vmatpush2.bf16.msra.mxu0 0
          %3307 = vmatprep.subr.bf16.mxu0 0
          %3308 = vmatpush2.bf16.msra.mxu0 0
          %3309 = vmatprep.subr.bf16.mxu0 0
          %3310 = vmatpush2.bf16.msra.mxu0 0
          %3311 = vmatprep.mubr.bf16.mxu0 0
          %3312 = vmatmul.mubr.bf16.gmra.mxu0 %v3268
          %v3313 = vpop.f32.mrf.mxu0
          %v3314 = vadd.f32 0.0, %v3313
          %v3315 = vpop.f32.mrf.mxu0
          %v3316 = vpop.f32.mrf.mxu0
          %v3317 = vpop.f32.mrf.mxu0
          %3318 = vmatprep.mubr.bf16.mxu0 0
          %3319 = vmatmul.mubr.bf16.gmra.mxu0 %v3271
          %v3320 = vpop.f32.mrf.mxu0
          %v3321 = vadd.f32 0.0, %v3320
          %v3322 = vpop.f32.mrf.mxu0
          %v3323 = vpop.f32.mrf.mxu0
          %v3324 = vpop.f32.mrf.mxu0
          %3325 = vmatprep.mubr.bf16.mxu0 0
          %3326 = vmatmul.mubr.bf16.gmra.mxu0 %v3274
          %v3327 = vpop.f32.mrf.mxu0
          %v3328 = vadd.f32 0.0, %v3327
          %v3329 = vpop.f32.mrf.mxu0
          %v3330 = vpop.f32.mrf.mxu0
          %v3331 = vpop.f32.mrf.mxu0
          %3332 = vmatprep.mubr.bf16.mxu0 0
          %3333 = vmatmul.mubr.bf16.gmra.mxu0 %v3277
          %v3334 = vpop.f32.mrf.mxu0
          %v3335 = vadd.f32 0.0, %v3334
          %v3336 = vpop.f32.mrf.mxu0
          %v3337 = vpop.f32.mrf.mxu0
          %v3338 = vpop.f32.mrf.mxu0
          %3339 = vdwg.mxu0
          %s3340 = scalar_lea.vmem [#allocation2], 192
          %v3341 = vld [vmem:[%s3340 + $0xc] sm:$0xf]
          %v3342 = vld [vmem:[%s3340 + $0x1c] sm:$0xf]
          %v3343 = vld [vmem:[%s3340 + $0x2c] sm:$0xf]
          %v3344 = vld [vmem:[%s3340 + $0x3c] sm:$0xf]
          %v3345 = vadd.f32 %v3341, %v3314
          %v3346 = vadd.f32 %v3342, %v3321
          %v3347 = vadd.f32 %v3343, %v3328
          %v3348 = vadd.f32 %v3344, %v3335
          %3349 = vst [vmem:[%s3340 + $0xc] sm:$0xf] %v3345
          %3350 = vst [vmem:[%s3340 + $0x1c] sm:$0xf] %v3346
          %3351 = vst [vmem:[%s3340 + $0x2c] sm:$0xf] %v3347
          %3352 = vst [vmem:[%s3340 + $0x3c] sm:$0xf] %v3348
          %s3353 = scalar_lea.vmem %s319, 16 [#allocation4]
          %v3354 = vld [vmem:[%s3353] sm:$0xf]
          %v3355 = vld [vmem:[%s3353 + $0x4] sm:$0xf]
          %v3356 = vld [vmem:[%s3353 + $0x8] sm:$0xf]
          %v3357 = vld [vmem:[%s3353 + $0xc] sm:$0xf]
          %v3362 = vunpack.c.l.b16 %v3354
          %v3363 = vunpack.c.l.b16 %v3355
          %v3364 = vunpack.c.l.b16 %v3356
          %v3365 = vunpack.c.l.b16 %v3357
          %v3366 = vpack.c.b16 %v3363, %v3362
          %v3367 = vpack.c.b16 %v3365, %v3364
          %3370 = vmatprep.subr.bf16.mxu0 0
          %3371 = vmatpush1.bf16.msra.mxu0 0
          %3372 = vmatprep.subr.bf16.mxu0 0
          %3373 = vmatpush1.bf16.msra.mxu0 0
          %3374 = vmatprep.subr.bf16.mxu0 0
          %3375 = vmatpush1.bf16.msra.mxu0 0
          %3376 = vmatprep.subr.bf16.mxu0 0
          %3377 = vmatpush1.bf16.msra.mxu0 0
          %3378 = vmatprep.subr.bf16.mxu0 0
          %3379 = vmatpush1.bf16.msra.mxu0 0
          %3380 = vmatprep.subr.bf16.mxu0 0
          %3381 = vmatpush1.bf16.msra.mxu0 0
          %3382 = vmatprep.subr.bf16.mxu0 0
          %3383 = vmatpush1.bf16.msra.mxu0 %v3367
          %3384 = vmatprep.subr.bf16.mxu0 0
          %3385 = vmatpush1.bf16.msra.mxu0 %v3366
          %3386 = vmatprep.subr.bf16.mxu0 0
          %3387 = vmatpush2.bf16.msra.mxu0 0
          %3388 = vmatprep.subr.bf16.mxu0 0
          %3389 = vmatpush2.bf16.msra.mxu0 0
          %3390 = vmatprep.subr.bf16.mxu0 0
          %3391 = vmatpush2.bf16.msra.mxu0 0
          %3392 = vmatprep.subr.bf16.mxu0 0
          %3393 = vmatpush2.bf16.msra.mxu0 0
          %3394 = vmatprep.subr.bf16.mxu0 0
          %3395 = vmatpush2.bf16.msra.mxu0 0
          %3396 = vmatprep.subr.bf16.mxu0 0
          %3397 = vmatpush2.bf16.msra.mxu0 0
          %3398 = vmatprep.subr.bf16.mxu0 0
          %3399 = vmatpush2.bf16.msra.mxu0 0
          %3400 = vmatprep.subr.bf16.mxu0 0
          %3401 = vmatpush2.bf16.msra.mxu0 0
          %3402 = vmatprep.mubr.bf16.mxu0 0
          %3403 = vmatmul.mubr.bf16.gmra.mxu0 %v3268
          %v3404 = vpop.f32.mrf.mxu0
          %v3405 = vadd.f32 0.0, %v3404
          %v3406 = vpop.f32.mrf.mxu0
          %v3407 = vpop.f32.mrf.mxu0
          %v3408 = vadd.f32 0.0, %v3407
          %v3409 = vpop.f32.mrf.mxu0
          %3410 = vmatprep.mubr.bf16.mxu0 0
          %3411 = vmatmul.mubr.bf16.gmra.mxu0 %v3271
          %v3412 = vpop.f32.mrf.mxu0
          %v3413 = vadd.f32 0.0, %v3412
          %v3414 = vpop.f32.mrf.mxu0
          %v3415 = vpop.f32.mrf.mxu0
          %v3416 = vadd.f32 0.0, %v3415
          %v3417 = vpop.f32.mrf.mxu0
          %3418 = vmatprep.mubr.bf16.mxu0 0
          %3419 = vmatmul.mubr.bf16.gmra.mxu0 %v3274
          %v3420 = vpop.f32.mrf.mxu0
          %v3421 = vadd.f32 0.0, %v3420
          %v3422 = vpop.f32.mrf.mxu0
          %v3423 = vpop.f32.mrf.mxu0
          %v3424 = vadd.f32 0.0, %v3423
          %v3425 = vpop.f32.mrf.mxu0
          %3426 = vmatprep.mubr.bf16.mxu0 0
          %3427 = vmatmul.mubr.bf16.gmra.mxu0 %v3277
          %v3428 = vpop.f32.mrf.mxu0
          %v3429 = vadd.f32 0.0, %v3428
          %v3430 = vpop.f32.mrf.mxu0
          %v3431 = vpop.f32.mrf.mxu0
          %v3432 = vadd.f32 0.0, %v3431
          %v3433 = vpop.f32.mrf.mxu0
          %3434 = vdwg.mxu0
          %v3435 = vld [vmem:[%s3340] sm:$0xff]
          %v3436 = vld [vmem:[%s3340 + $0x8] sm:$0xff]
          %v3437 = vld [vmem:[%s3340 + $0x10] sm:$0xff]
          %v3438 = vld [vmem:[%s3340 + $0x18] sm:$0xff]
          %v3439 = vld [vmem:[%s3340 + $0x20] sm:$0xff]
          %v3440 = vld [vmem:[%s3340 + $0x28] sm:$0xff]
          %v3441 = vld [vmem:[%s3340 + $0x30] sm:$0xff]
          %v3442 = vld [vmem:[%s3340 + $0x38] sm:$0xff]
          %v3443 = vadd.f32 %v3435, %v3405
          %v3444 = vadd.f32 %v3436, %v3408
          %v3445 = vadd.f32 %v3437, %v3413
          %v3446 = vadd.f32 %v3438, %v3416
          %v3447 = vadd.f32 %v3439, %v3421
          %v3448 = vadd.f32 %v3440, %v3424
          %v3449 = vadd.f32 %v3441, %v3429
          %v3450 = vadd.f32 %v3442, %v3432
          %3451 = vst [vmem:[%s3340] sm:$0xff] %v3443
          %3452 = vst [vmem:[%s3340 + $0x8] sm:$0xff] %v3444
          %3453 = vst [vmem:[%s3340 + $0x10] sm:$0xff] %v3445
          %3454 = vst [vmem:[%s3340 + $0x18] sm:$0xff] %v3446
          %3455 = vst [vmem:[%s3340 + $0x20] sm:$0xff] %v3447
          %3456 = vst [vmem:[%s3340 + $0x28] sm:$0xff] %v3448
          %3457 = vst [vmem:[%s3340 + $0x30] sm:$0xff] %v3449
          %3458 = vst [vmem:[%s3340 + $0x38] sm:$0xff] %v3450
          %s3459 = scalar_lea.vmem %s319, 32 [#allocation4]
          %v3460 = vld [vmem:[%s3459] sm:$0xf]
          %v3461 = vld [vmem:[%s3459 + $0x4] sm:$0xf]
          %v3462 = vld [vmem:[%s3459 + $0x8] sm:$0xf]
          %v3463 = vld [vmem:[%s3459 + $0xc] sm:$0xf]
          %v3468 = vunpack.c.l.b16 %v3460
          %v3469 = vunpack.c.l.b16 %v3461
          %v3470 = vunpack.c.l.b16 %v3462
          %v3471 = vunpack.c.l.b16 %v3463
          %v3472 = vpack.c.b16 %v3469, %v3468
          %v3473 = vpack.c.b16 %v3471, %v3470
          %3476 = vmatprep.subr.bf16.mxu0 0
          %3477 = vmatpush1.bf16.msra.mxu0 0
          %3478 = vmatprep.subr.bf16.mxu0 0
          %3479 = vmatpush1.bf16.msra.mxu0 0
          %3480 = vmatprep.subr.bf16.mxu0 0
          %3481 = vmatpush1.bf16.msra.mxu0 0
          %3482 = vmatprep.subr.bf16.mxu0 0
          %3483 = vmatpush1.bf16.msra.mxu0 0
          %3484 = vmatprep.subr.bf16.mxu0 0
          %3485 = vmatpush1.bf16.msra.mxu0 0
          %3486 = vmatprep.subr.bf16.mxu0 0
          %3487 = vmatpush1.bf16.msra.mxu0 0
          %3488 = vmatprep.subr.bf16.mxu0 0
          %3489 = vmatpush1.bf16.msra.mxu0 %v3473
          %3490 = vmatprep.subr.bf16.mxu0 0
          %3491 = vmatpush1.bf16.msra.mxu0 %v3472
          %3492 = vmatprep.subr.bf16.mxu0 0
          %3493 = vmatpush2.bf16.msra.mxu0 0
          %3494 = vmatprep.subr.bf16.mxu0 0
          %3495 = vmatpush2.bf16.msra.mxu0 0
          %3496 = vmatprep.subr.bf16.mxu0 0
          %3497 = vmatpush2.bf16.msra.mxu0 0
          %3498 = vmatprep.subr.bf16.mxu0 0
          %3499 = vmatpush2.bf16.msra.mxu0 0
          %3500 = vmatprep.subr.bf16.mxu0 0
          %3501 = vmatpush2.bf16.msra.mxu0 0
          %3502 = vmatprep.subr.bf16.mxu0 0
          %3503 = vmatpush2.bf16.msra.mxu0 0
          %3504 = vmatprep.subr.bf16.mxu0 0
          %3505 = vmatpush2.bf16.msra.mxu0 0
          %3506 = vmatprep.subr.bf16.mxu0 0
          %3507 = vmatpush2.bf16.msra.mxu0 0
          %3508 = vmatprep.mubr.bf16.mxu0 0
          %3509 = vmatmul.mubr.bf16.gmra.mxu0 %v3268
          %v3510 = vpop.f32.mrf.mxu0
          %v3511 = vpop.f32.mrf.mxu0
          %v3512 = vpop.f32.mrf.mxu0
          %v3513 = vadd.f32 0.0, %v3512
          %v3514 = vpop.f32.mrf.mxu0
          %3515 = vmatprep.mubr.bf16.mxu0 0
          %3516 = vmatmul.mubr.bf16.gmra.mxu0 %v3271
          %v3517 = vpop.f32.mrf.mxu0
          %v3518 = vpop.f32.mrf.mxu0
          %v3519 = vpop.f32.mrf.mxu0
          %v3520 = vadd.f32 0.0, %v3519
          %v3521 = vpop.f32.mrf.mxu0
          %3522 = vmatprep.mubr.bf16.mxu0 0
          %3523 = vmatmul.mubr.bf16.gmra.mxu0 %v3274
          %v3524 = vpop.f32.mrf.mxu0
          %v3525 = vpop.f32.mrf.mxu0
          %v3526 = vpop.f32.mrf.mxu0
          %v3527 = vadd.f32 0.0, %v3526
          %v3528 = vpop.f32.mrf.mxu0
          %3529 = vmatprep.mubr.bf16.mxu0 0
          %3530 = vmatmul.mubr.bf16.gmra.mxu0 %v3277
          %v3531 = vpop.f32.mrf.mxu0
          %v3532 = vpop.f32.mrf.mxu0
          %v3533 = vpop.f32.mrf.mxu0
          %v3534 = vadd.f32 0.0, %v3533
          %v3535 = vpop.f32.mrf.mxu0
          %3536 = vdwg.mxu0
          %v3537 = vld [vmem:[%s3340] sm:$0xf]
          %v3538 = vld [vmem:[%s3340 + $0x10] sm:$0xf]
          %v3539 = vld [vmem:[%s3340 + $0x20] sm:$0xf]
          %v3540 = vld [vmem:[%s3340 + $0x30] sm:$0xf]
          %v3545 = vrot.slane %v3513, 4
          %v3546 = vrot.slane %v3520, 4
          %v3547 = vrot.slane %v3527, 4
          %v3548 = vrot.slane %v3534, 4
          %v3553 = vadd.f32 %v3537, %v3545
          %v3554 = vadd.f32 %v3538, %v3546
          %v3555 = vadd.f32 %v3539, %v3547
          %v3556 = vadd.f32 %v3540, %v3548
          %3557 = vst [vmem:[%s3340] sm:$0xf] %v3553
          %3558 = vst [vmem:[%s3340 + $0x10] sm:$0xf] %v3554
          %3559 = vst [vmem:[%s3340 + $0x20] sm:$0xf] %v3555
          %3560 = vst [vmem:[%s3340 + $0x30] sm:$0xf] %v3556
          %s3561 = scalar_lea.vmem %s319, 48 [#allocation4]
          %v3562 = vld [vmem:[%s3561] sm:$0xf]
          %v3563 = vld [vmem:[%s3561 + $0x4] sm:$0xf]
          %v3564 = vld [vmem:[%s3561 + $0x8] sm:$0xf]
          %v3565 = vld [vmem:[%s3561 + $0xc] sm:$0xf]
          %v3590 = vunpack.c.l.b16 %v424
          %v3591 = vunpack.c.l.b16 %v425
          %v3592 = vunpack.c.l.b16 %v426
          %v3593 = vunpack.c.l.b16 %v427
          %v3594 = vunpack.c.l.b16 %v428
          %v3595 = vunpack.c.l.b16 %v429
          %v3596 = vunpack.c.l.b16 %v430
          %v3597 = vunpack.c.l.b16 %v431
          %v3598 = vunpack.c.l.b16 %v432
          %v3599 = vunpack.c.l.b16 %v433
          %v3600 = vunpack.c.l.b16 %v434
          %v3601 = vunpack.c.l.b16 %v435
          %v3602 = vunpack.c.l.b16 %v436
          %v3603 = vunpack.c.l.b16 %v437
          %v3604 = vunpack.c.l.b16 %v438
          %v3605 = vunpack.c.l.b16 %v439
          %v3606 = vunpack.c.l.b16 %v440
          %v3607 = vunpack.c.l.b16 %v441
          %v3608 = vunpack.c.l.b16 %v442
          %v3609 = vunpack.c.l.b16 %v443
          %v3610 = vunpack.c.l.b16 %v444
          %v3611 = vunpack.c.l.b16 %v445
          %v3612 = vunpack.c.l.b16 %v446
          %v3613 = vunpack.c.l.b16 %v447
          %v3614 = vpack.c.b16 %v3591, %v3590
          %v3615 = vpack.c.b16 %v3593, %v3592
          %v3616 = vpack.c.b16 %v3595, %v3594
          %v3617 = vpack.c.b16 %v3597, %v3596
          %v3618 = vpack.c.b16 %v3599, %v3598
          %v3619 = vpack.c.b16 %v3601, %v3600
          %v3620 = vpack.c.b16 %v3603, %v3602
          %v3621 = vpack.c.b16 %v3605, %v3604
          %v3622 = vpack.c.b16 %v3607, %v3606
          %v3623 = vpack.c.b16 %v3609, %v3608
          %v3624 = vpack.c.b16 %v3611, %v3610
          %v3625 = vpack.c.b16 %v3613, %v3612
          %v3630 = vunpack.c.l.b16 %v3562
          %v3631 = vunpack.c.l.b16 %v3563
          %v3632 = vunpack.c.l.b16 %v3564
          %v3633 = vunpack.c.l.b16 %v3565
          %v3634 = vpack.c.b16 %v3631, %v3630
          %v3635 = vpack.c.b16 %v3633, %v3632
          %v3639 = vsel %vm3266, %v3614, 0
          %v3642 = vsel %vm3266, %v3615, 0
          %v3645 = vsel %vm3266, %v3616, 0
          %v3648 = vsel %vm3266, %v3617, 0
          %v3651 = vsel %vm3266, %v3618, 0
          %v3654 = vsel %vm3266, %v3619, 0
          %v3657 = vsel %vm3266, %v3620, 0
          %v3660 = vsel %vm3266, %v3621, 0
          %v3663 = vsel %vm3266, %v3622, 0
          %v3666 = vsel %vm3266, %v3623, 0
          %v3669 = vsel %vm3266, %v3624, 0
          %v3672 = vsel %vm3266, %v3625, 0
          %3674 = vmatprep.subr.bf16.mxu0 0
          %3675 = vmatpush1.bf16.msra.mxu0 0
          %3676 = vmatprep.subr.bf16.mxu0 0
          %3677 = vmatpush1.bf16.msra.mxu0 0
          %3678 = vmatprep.subr.bf16.mxu0 0
          %3679 = vmatpush1.bf16.msra.mxu0 0
          %3680 = vmatprep.subr.bf16.mxu0 0
          %3681 = vmatpush1.bf16.msra.mxu0 0
          %3682 = vmatprep.subr.bf16.mxu0 0
          %3683 = vmatpush1.bf16.msra.mxu0 0
          %3684 = vmatprep.subr.bf16.mxu0 0
          %3685 = vmatpush1.bf16.msra.mxu0 0
          %3686 = vmatprep.subr.bf16.mxu0 0
          %3687 = vmatpush1.bf16.msra.mxu0 %v3635
          %3688 = vmatprep.subr.bf16.mxu0 0
          %3689 = vmatpush1.bf16.msra.mxu0 %v3634
          %3690 = vmatprep.subr.bf16.mxu0 0
          %3691 = vmatpush2.bf16.msra.mxu0 0
          %3692 = vmatprep.subr.bf16.mxu0 0
          %3693 = vmatpush2.bf16.msra.mxu0 0
          %3694 = vmatprep.subr.bf16.mxu0 0
          %3695 = vmatpush2.bf16.msra.mxu0 0
          %3696 = vmatprep.subr.bf16.mxu0 0
          %3697 = vmatpush2.bf16.msra.mxu0 0
          %3698 = vmatprep.subr.bf16.mxu0 0
          %3699 = vmatpush2.bf16.msra.mxu0 0
          %3700 = vmatprep.subr.bf16.mxu0 0
          %3701 = vmatpush2.bf16.msra.mxu0 0
          %3702 = vmatprep.subr.bf16.mxu0 0
          %3703 = vmatpush2.bf16.msra.mxu0 0
          %3704 = vmatprep.subr.bf16.mxu0 0
          %3705 = vmatpush2.bf16.msra.mxu0 0
          %3706 = vmatprep.mubr.bf16.mxu0 0
          %3707 = vmatmul.mubr.bf16.gmra.mxu0 %v3268
          %v3708 = vpop.f32.mrf.mxu0
          %v3709 = vadd.f32 0.0, %v3708
          %v3710 = vpop.f32.mrf.mxu0
          %v3711 = vpop.f32.mrf.mxu0
          %v3712 = vpop.f32.mrf.mxu0
          %3713 = vmatprep.mubr.bf16.mxu0 0
          %3714 = vmatmul.mubr.bf16.gmra.mxu0 %v3271
          %v3715 = vpop.f32.mrf.mxu0
          %v3716 = vadd.f32 0.0, %v3715
          %v3717 = vpop.f32.mrf.mxu0
          %v3718 = vpop.f32.mrf.mxu0
          %v3719 = vpop.f32.mrf.mxu0
          %3720 = vmatprep.mubr.bf16.mxu0 0
          %3721 = vmatmul.mubr.bf16.gmra.mxu0 %v3274
          %v3722 = vpop.f32.mrf.mxu0
          %v3723 = vadd.f32 0.0, %v3722
          %v3724 = vpop.f32.mrf.mxu0
          %v3725 = vpop.f32.mrf.mxu0
          %v3726 = vpop.f32.mrf.mxu0
          %3727 = vmatprep.mubr.bf16.mxu0 0
          %3728 = vmatmul.mubr.bf16.gmra.mxu0 %v3277
          %v3729 = vpop.f32.mrf.mxu0
          %v3730 = vadd.f32 0.0, %v3729
          %v3731 = vpop.f32.mrf.mxu0
          %v3732 = vpop.f32.mrf.mxu0
          %v3733 = vpop.f32.mrf.mxu0
          %3734 = vmatprep.mubr.bf16.mxu0 0
          %3735 = vmatmul.mubr.bf16.gmra.mxu0 %v3639
          %v3736 = vpop.f32.mrf.mxu0
          %v3737 = vadd.f32 0.0, %v3736
          %v3738 = vpop.f32.mrf.mxu0
          %v3739 = vpop.f32.mrf.mxu0
          %v3740 = vpop.f32.mrf.mxu0
          %3741 = vmatprep.mubr.bf16.mxu0 0
          %3742 = vmatmul.mubr.bf16.gmra.mxu0 %v3642
          %v3743 = vpop.f32.mrf.mxu0
          %v3744 = vadd.f32 0.0, %v3743
          %v3745 = vpop.f32.mrf.mxu0
          %v3746 = vpop.f32.mrf.mxu0
          %v3747 = vpop.f32.mrf.mxu0
          %3748 = vmatprep.mubr.bf16.mxu0 0
          %3749 = vmatmul.mubr.bf16.gmra.mxu0 %v3645
          %v3750 = vpop.f32.mrf.mxu0
          %v3751 = vadd.f32 0.0, %v3750
          %v3752 = vpop.f32.mrf.mxu0
          %v3753 = vpop.f32.mrf.mxu0
          %v3754 = vpop.f32.mrf.mxu0
          %3755 = vmatprep.mubr.bf16.mxu0 0
          %3756 = vmatmul.mubr.bf16.gmra.mxu0 %v3648
          %v3757 = vpop.f32.mrf.mxu0
          %v3758 = vadd.f32 0.0, %v3757
          %v3759 = vpop.f32.mrf.mxu0
          %v3760 = vpop.f32.mrf.mxu0
          %v3761 = vpop.f32.mrf.mxu0
          %3762 = vmatprep.mubr.bf16.mxu0 0
          %3763 = vmatmul.mubr.bf16.gmra.mxu0 %v3651
          %v3764 = vpop.f32.mrf.mxu0
          %v3765 = vadd.f32 0.0, %v3764
          %v3766 = vpop.f32.mrf.mxu0
          %v3767 = vpop.f32.mrf.mxu0
          %v3768 = vpop.f32.mrf.mxu0
          %3769 = vmatprep.mubr.bf16.mxu0 0
          %3770 = vmatmul.mubr.bf16.gmra.mxu0 %v3654
          %v3771 = vpop.f32.mrf.mxu0
          %v3772 = vadd.f32 0.0, %v3771
          %v3773 = vpop.f32.mrf.mxu0
          %v3774 = vpop.f32.mrf.mxu0
          %v3775 = vpop.f32.mrf.mxu0
          %3776 = vmatprep.mubr.bf16.mxu0 0
          %3777 = vmatmul.mubr.bf16.gmra.mxu0 %v3657
          %v3778 = vpop.f32.mrf.mxu0
          %v3779 = vadd.f32 0.0, %v3778
          %v3780 = vpop.f32.mrf.mxu0
          %v3781 = vpop.f32.mrf.mxu0
          %v3782 = vpop.f32.mrf.mxu0
          %3783 = vmatprep.mubr.bf16.mxu0 0
          %3784 = vmatmul.mubr.bf16.gmra.mxu0 %v3660
          %v3785 = vpop.f32.mrf.mxu0
          %v3786 = vadd.f32 0.0, %v3785
          %v3787 = vpop.f32.mrf.mxu0
          %v3788 = vpop.f32.mrf.mxu0
          %v3789 = vpop.f32.mrf.mxu0
          %3790 = vmatprep.mubr.bf16.mxu0 0
          %3791 = vmatmul.mubr.bf16.gmra.mxu0 %v3663
          %v3792 = vpop.f32.mrf.mxu0
          %v3793 = vadd.f32 0.0, %v3792
          %v3794 = vpop.f32.mrf.mxu0
          %v3795 = vpop.f32.mrf.mxu0
          %v3796 = vpop.f32.mrf.mxu0
          %3797 = vmatprep.mubr.bf16.mxu0 0
          %3798 = vmatmul.mubr.bf16.gmra.mxu0 %v3666
          %v3799 = vpop.f32.mrf.mxu0
          %v3800 = vadd.f32 0.0, %v3799
          %v3801 = vpop.f32.mrf.mxu0
          %v3802 = vpop.f32.mrf.mxu0
          %v3803 = vpop.f32.mrf.mxu0
          %3804 = vmatprep.mubr.bf16.mxu0 0
          %3805 = vmatmul.mubr.bf16.gmra.mxu0 %v3669
          %v3806 = vpop.f32.mrf.mxu0
          %v3807 = vadd.f32 0.0, %v3806
          %v3808 = vpop.f32.mrf.mxu0
          %v3809 = vpop.f32.mrf.mxu0
          %v3810 = vpop.f32.mrf.mxu0
          %3811 = vmatprep.mubr.bf16.mxu0 0
          %3812 = vmatmul.mubr.bf16.gmra.mxu0 %v3672
          %v3813 = vpop.f32.mrf.mxu0
          %v3814 = vadd.f32 0.0, %v3813
          %v3815 = vpop.f32.mrf.mxu0
          %v3816 = vpop.f32.mrf.mxu0
          %v3817 = vpop.f32.mrf.mxu0
          %3818 = vdwg.mxu0
          %v3819 = vld [vmem:[#allocation2 + $0xc] sm:$0xf]
          %v3820 = vld [vmem:[#allocation2 + $0x1c] sm:$0xf]
          %v3821 = vld [vmem:[#allocation2 + $0x2c] sm:$0xf]
          %v3822 = vld [vmem:[#allocation2 + $0x3c] sm:$0xf]
          %v3823 = vld [vmem:[#allocation2 + $0x4c] sm:$0xf]
          %v3824 = vld [vmem:[#allocation2 + $0x5c] sm:$0xf]
          %v3825 = vld [vmem:[#allocation2 + $0x6c] sm:$0xf]
          %v3826 = vld [vmem:[#allocation2 + $0x7c] sm:$0xf]
          %v3827 = vld [vmem:[#allocation2 + $0x8c] sm:$0xf]
          %v3828 = vld [vmem:[#allocation2 + $0x9c] sm:$0xf]
          %v3829 = vld [vmem:[#allocation2 + $0xac] sm:$0xf]
          %v3830 = vld [vmem:[#allocation2 + $0xbc] sm:$0xf]
          %v3831 = vld [vmem:[#allocation2 + $0xcc] sm:$0xf]
          %v3832 = vld [vmem:[#allocation2 + $0xdc] sm:$0xf]
          %v3833 = vld [vmem:[#allocation2 + $0xec] sm:$0xf]
          %v3834 = vld [vmem:[#allocation2 + $0xfc] sm:$0xf]
          %v3835 = vadd.f32 %v3819, %v3709
          %v3836 = vadd.f32 %v3820, %v3716
          %v3837 = vadd.f32 %v3821, %v3723
          %v3838 = vadd.f32 %v3822, %v3730
          %v3839 = vadd.f32 %v3823, %v3737
          %v3840 = vadd.f32 %v3824, %v3744
          %v3841 = vadd.f32 %v3825, %v3751
          %v3842 = vadd.f32 %v3826, %v3758
          %v3843 = vadd.f32 %v3827, %v3765
          %v3844 = vadd.f32 %v3828, %v3772
          %v3845 = vadd.f32 %v3829, %v3779
          %v3846 = vadd.f32 %v3830, %v3786
          %v3847 = vadd.f32 %v3831, %v3793
          %v3848 = vadd.f32 %v3832, %v3800
          %v3849 = vadd.f32 %v3833, %v3807
          %v3850 = vadd.f32 %v3834, %v3814
          %3851 = vst [vmem:[#allocation2 + $0xc] sm:$0xf] %v3835
          %3852 = vst [vmem:[#allocation2 + $0x1c] sm:$0xf] %v3836
          %3853 = vst [vmem:[#allocation2 + $0x2c] sm:$0xf] %v3837
          %3854 = vst [vmem:[#allocation2 + $0x3c] sm:$0xf] %v3838
          %3855 = vst [vmem:[#allocation2 + $0x4c] sm:$0xf] %v3839
          %3856 = vst [vmem:[#allocation2 + $0x5c] sm:$0xf] %v3840
          %3857 = vst [vmem:[#allocation2 + $0x6c] sm:$0xf] %v3841
          %3858 = vst [vmem:[#allocation2 + $0x7c] sm:$0xf] %v3842
          %3859 = vst [vmem:[#allocation2 + $0x8c] sm:$0xf] %v3843
          %3860 = vst [vmem:[#allocation2 + $0x9c] sm:$0xf] %v3844
          %3861 = vst [vmem:[#allocation2 + $0xac] sm:$0xf] %v3845
          %3862 = vst [vmem:[#allocation2 + $0xbc] sm:$0xf] %v3846
          %3863 = vst [vmem:[#allocation2 + $0xcc] sm:$0xf] %v3847
          %3864 = vst [vmem:[#allocation2 + $0xdc] sm:$0xf] %v3848
          %3865 = vst [vmem:[#allocation2 + $0xec] sm:$0xf] %v3849
          %3866 = vst [vmem:[#allocation2 + $0xfc] sm:$0xf] %v3850
          %s3867 = scalar_lea.vmem %s319, 64 [#allocation4]
          %v3868 = vld [vmem:[%s3867] sm:$0xf]
          %v3869 = vld [vmem:[%s3867 + $0x4] sm:$0xf]
          %v3870 = vld [vmem:[%s3867 + $0x8] sm:$0xf]
          %v3871 = vld [vmem:[%s3867 + $0xc] sm:$0xf]
          %v3876 = vunpack.c.l.b16 %v3868
          %v3877 = vunpack.c.l.b16 %v3869
          %v3878 = vunpack.c.l.b16 %v3870
          %v3879 = vunpack.c.l.b16 %v3871
          %v3880 = vpack.c.b16 %v3877, %v3876
          %v3881 = vpack.c.b16 %v3879, %v3878
          %3884 = vmatprep.subr.bf16.mxu0 0
          %3885 = vmatpush1.bf16.msra.mxu0 0
          %3886 = vmatprep.subr.bf16.mxu0 0
          %3887 = vmatpush1.bf16.msra.mxu0 0
          %3888 = vmatprep.subr.bf16.mxu0 0
          %3889 = vmatpush1.bf16.msra.mxu0 0
          %3890 = vmatprep.subr.bf16.mxu0 0
          %3891 = vmatpush1.bf16.msra.mxu0 0
          %3892 = vmatprep.subr.bf16.mxu0 0
          %3893 = vmatpush1.bf16.msra.mxu0 0
          %3894 = vmatprep.subr.bf16.mxu0 0
          %3895 = vmatpush1.bf16.msra.mxu0 0
          %3896 = vmatprep.subr.bf16.mxu0 0
          %3897 = vmatpush1.bf16.msra.mxu0 %v3881
          %3898 = vmatprep.subr.bf16.mxu0 0
          %3899 = vmatpush1.bf16.msra.mxu0 %v3880
          %3900 = vmatprep.subr.bf16.mxu0 0
          %3901 = vmatpush2.bf16.msra.mxu0 0
          %3902 = vmatprep.subr.bf16.mxu0 0
          %3903 = vmatpush2.bf16.msra.mxu0 0
          %3904 = vmatprep.subr.bf16.mxu0 0
          %3905 = vmatpush2.bf16.msra.mxu0 0
          %3906 = vmatprep.subr.bf16.mxu0 0
          %3907 = vmatpush2.bf16.msra.mxu0 0
          %3908 = vmatprep.subr.bf16.mxu0 0
          %3909 = vmatpush2.bf16.msra.mxu0 0
          %3910 = vmatprep.subr.bf16.mxu0 0
          %3911 = vmatpush2.bf16.msra.mxu0 0
          %3912 = vmatprep.subr.bf16.mxu0 0
          %3913 = vmatpush2.bf16.msra.mxu0 0
          %3914 = vmatprep.subr.bf16.mxu0 0
          %3915 = vmatpush2.bf16.msra.mxu0 0
          %3916 = vmatprep.mubr.bf16.mxu0 0
          %3917 = vmatmul.mubr.bf16.gmra.mxu0 %v3268
          %v3918 = vpop.f32.mrf.mxu0
          %v3919 = vpop.f32.mrf.mxu0
          %v3920 = vpop.f32.mrf.mxu0
          %v3921 = vadd.f32 0.0, %v3920
          %v3922 = vpop.f32.mrf.mxu0
          %3923 = vmatprep.mubr.bf16.mxu0 0
          %3924 = vmatmul.mubr.bf16.gmra.mxu0 %v3271
          %v3925 = vpop.f32.mrf.mxu0
          %v3926 = vpop.f32.mrf.mxu0
          %v3927 = vpop.f32.mrf.mxu0
          %v3928 = vadd.f32 0.0, %v3927
          %v3929 = vpop.f32.mrf.mxu0
          %3930 = vmatprep.mubr.bf16.mxu0 0
          %3931 = vmatmul.mubr.bf16.gmra.mxu0 %v3274
          %v3932 = vpop.f32.mrf.mxu0
          %v3933 = vpop.f32.mrf.mxu0
          %v3934 = vpop.f32.mrf.mxu0
          %v3935 = vadd.f32 0.0, %v3934
          %v3936 = vpop.f32.mrf.mxu0
          %3937 = vmatprep.mubr.bf16.mxu0 0
          %3938 = vmatmul.mubr.bf16.gmra.mxu0 %v3277
          %v3939 = vpop.f32.mrf.mxu0
          %v3940 = vpop.f32.mrf.mxu0
          %v3941 = vpop.f32.mrf.mxu0
          %v3942 = vadd.f32 0.0, %v3941
          %v3943 = vpop.f32.mrf.mxu0
          %3944 = vmatprep.mubr.bf16.mxu0 0
          %3945 = vmatmul.mubr.bf16.gmra.mxu0 %v3639
          %v3946 = vpop.f32.mrf.mxu0
          %v3947 = vpop.f32.mrf.mxu0
          %v3948 = vpop.f32.mrf.mxu0
          %v3949 = vadd.f32 0.0, %v3948
          %v3950 = vpop.f32.mrf.mxu0
          %3951 = vmatprep.mubr.bf16.mxu0 0
          %3952 = vmatmul.mubr.bf16.gmra.mxu0 %v3642
          %v3953 = vpop.f32.mrf.mxu0
          %v3954 = vpop.f32.mrf.mxu0
          %v3955 = vpop.f32.mrf.mxu0
          %v3956 = vadd.f32 0.0, %v3955
          %v3957 = vpop.f32.mrf.mxu0
          %3958 = vmatprep.mubr.bf16.mxu0 0
          %3959 = vmatmul.mubr.bf16.gmra.mxu0 %v3645
          %v3960 = vpop.f32.mrf.mxu0
          %v3961 = vpop.f32.mrf.mxu0
          %v3962 = vpop.f32.mrf.mxu0
          %v3963 = vadd.f32 0.0, %v3962
          %v3964 = vpop.f32.mrf.mxu0
          %3965 = vmatprep.mubr.bf16.mxu0 0
          %3966 = vmatmul.mubr.bf16.gmra.mxu0 %v3648
          %v3967 = vpop.f32.mrf.mxu0
          %v3968 = vpop.f32.mrf.mxu0
          %v3969 = vpop.f32.mrf.mxu0
          %v3970 = vadd.f32 0.0, %v3969
          %v3971 = vpop.f32.mrf.mxu0
          %3972 = vmatprep.mubr.bf16.mxu0 0
          %3973 = vmatmul.mubr.bf16.gmra.mxu0 %v3651
          %v3974 = vpop.f32.mrf.mxu0
          %v3975 = vpop.f32.mrf.mxu0
          %v3976 = vpop.f32.mrf.mxu0
          %v3977 = vadd.f32 0.0, %v3976
          %v3978 = vpop.f32.mrf.mxu0
          %3979 = vmatprep.mubr.bf16.mxu0 0
          %3980 = vmatmul.mubr.bf16.gmra.mxu0 %v3654
          %v3981 = vpop.f32.mrf.mxu0
          %v3982 = vpop.f32.mrf.mxu0
          %v3983 = vpop.f32.mrf.mxu0
          %v3984 = vadd.f32 0.0, %v3983
          %v3985 = vpop.f32.mrf.mxu0
          %3986 = vmatprep.mubr.bf16.mxu0 0
          %3987 = vmatmul.mubr.bf16.gmra.mxu0 %v3657
          %v3988 = vpop.f32.mrf.mxu0
          %v3989 = vpop.f32.mrf.mxu0
          %v3990 = vpop.f32.mrf.mxu0
          %v3991 = vadd.f32 0.0, %v3990
          %v3992 = vpop.f32.mrf.mxu0
          %3993 = vmatprep.mubr.bf16.mxu0 0
          %3994 = vmatmul.mubr.bf16.gmra.mxu0 %v3660
          %v3995 = vpop.f32.mrf.mxu0
          %v3996 = vpop.f32.mrf.mxu0
          %v3997 = vpop.f32.mrf.mxu0
          %v3998 = vadd.f32 0.0, %v3997
          %v3999 = vpop.f32.mrf.mxu0
          %4000 = vmatprep.mubr.bf16.mxu0 0
          %4001 = vmatmul.mubr.bf16.gmra.mxu0 %v3663
          %v4002 = vpop.f32.mrf.mxu0
          %v4003 = vpop.f32.mrf.mxu0
          %v4004 = vpop.f32.mrf.mxu0
          %v4005 = vadd.f32 0.0, %v4004
          %v4006 = vpop.f32.mrf.mxu0
          %4007 = vmatprep.mubr.bf16.mxu0 0
          %4008 = vmatmul.mubr.bf16.gmra.mxu0 %v3666
          %v4009 = vpop.f32.mrf.mxu0
          %v4010 = vpop.f32.mrf.mxu0
          %v4011 = vpop.f32.mrf.mxu0
          %v4012 = vadd.f32 0.0, %v4011
          %v4013 = vpop.f32.mrf.mxu0
          %4014 = vmatprep.mubr.bf16.mxu0 0
          %4015 = vmatmul.mubr.bf16.gmra.mxu0 %v3669
          %v4016 = vpop.f32.mrf.mxu0
          %v4017 = vpop.f32.mrf.mxu0
          %v4018 = vpop.f32.mrf.mxu0
          %v4019 = vadd.f32 0.0, %v4018
          %v4020 = vpop.f32.mrf.mxu0
          %4021 = vmatprep.mubr.bf16.mxu0 0
          %4022 = vmatmul.mubr.bf16.gmra.mxu0 %v3672
          %v4023 = vpop.f32.mrf.mxu0
          %v4024 = vpop.f32.mrf.mxu0
          %v4025 = vpop.f32.mrf.mxu0
          %v4026 = vadd.f32 0.0, %v4025
          %v4027 = vpop.f32.mrf.mxu0
          %4028 = vdwg.mxu0
          %v4029 = vld [vmem:[#allocation2] sm:$0xf]
          %v4030 = vld [vmem:[#allocation2 + $0x10] sm:$0xf]
          %v4031 = vld [vmem:[#allocation2 + $0x20] sm:$0xf]
          %v4032 = vld [vmem:[#allocation2 + $0x30] sm:$0xf]
          %v4033 = vld [vmem:[#allocation2 + $0x40] sm:$0xf]
          %v4034 = vld [vmem:[#allocation2 + $0x50] sm:$0xf]
          %v4035 = vld [vmem:[#allocation2 + $0x60] sm:$0xf]
          %v4036 = vld [vmem:[#allocation2 + $0x70] sm:$0xf]
          %v4037 = vld [vmem:[#allocation2 + $0x80] sm:$0xf]
          %v4038 = vld [vmem:[#allocation2 + $0x90] sm:$0xf]
          %v4039 = vld [vmem:[#allocation2 + $0xa0] sm:$0xf]
          %v4040 = vld [vmem:[#allocation2 + $0xb0] sm:$0xf]
          %v4041 = vld [vmem:[#allocation2 + $0xc0] sm:$0xf]
          %v4042 = vld [vmem:[#allocation2 + $0xd0] sm:$0xf]
          %v4043 = vld [vmem:[#allocation2 + $0xe0] sm:$0xf]
          %v4044 = vld [vmem:[#allocation2 + $0xf0] sm:$0xf]
          %v4061 = vrot.slane %v3921, 4
          %v4062 = vrot.slane %v3928, 4
          %v4063 = vrot.slane %v3935, 4
          %v4064 = vrot.slane %v3942, 4
          %v4065 = vrot.slane %v3949, 4
          %v4066 = vrot.slane %v3956, 4
          %v4067 = vrot.slane %v3963, 4
          %v4068 = vrot.slane %v3970, 4
          %v4069 = vrot.slane %v3977, 4
          %v4070 = vrot.slane %v3984, 4
          %v4071 = vrot.slane %v3991, 4
          %v4072 = vrot.slane %v3998, 4
          %v4073 = vrot.slane %v4005, 4
          %v4074 = vrot.slane %v4012, 4
          %v4075 = vrot.slane %v4019, 4
          %v4076 = vrot.slane %v4026, 4
          %v4093 = vadd.f32 %v4029, %v4061
          %v4094 = vadd.f32 %v4030, %v4062
          %v4095 = vadd.f32 %v4031, %v4063
          %v4096 = vadd.f32 %v4032, %v4064
          %v4097 = vadd.f32 %v4033, %v4065
          %v4098 = vadd.f32 %v4034, %v4066
          %v4099 = vadd.f32 %v4035, %v4067
          %v4100 = vadd.f32 %v4036, %v4068
          %v4101 = vadd.f32 %v4037, %v4069
          %v4102 = vadd.f32 %v4038, %v4070
          %v4103 = vadd.f32 %v4039, %v4071
          %v4104 = vadd.f32 %v4040, %v4072
          %v4105 = vadd.f32 %v4041, %v4073
          %v4106 = vadd.f32 %v4042, %v4074
          %v4107 = vadd.f32 %v4043, %v4075
          %v4108 = vadd.f32 %v4044, %v4076
          %4109 = vst [vmem:[#allocation2] sm:$0xf] %v4093
          %4110 = vst [vmem:[#allocation2 + $0x10] sm:$0xf] %v4094
          %4111 = vst [vmem:[#allocation2 + $0x20] sm:$0xf] %v4095
          %4112 = vst [vmem:[#allocation2 + $0x30] sm:$0xf] %v4096
          %4113 = vst [vmem:[#allocation2 + $0x40] sm:$0xf] %v4097
          %4114 = vst [vmem:[#allocation2 + $0x50] sm:$0xf] %v4098
          %4115 = vst [vmem:[#allocation2 + $0x60] sm:$0xf] %v4099
          %4116 = vst [vmem:[#allocation2 + $0x70] sm:$0xf] %v4100
          %4117 = vst [vmem:[#allocation2 + $0x80] sm:$0xf] %v4101
          %4118 = vst [vmem:[#allocation2 + $0x90] sm:$0xf] %v4102
          %4119 = vst [vmem:[#allocation2 + $0xa0] sm:$0xf] %v4103
          %4120 = vst [vmem:[#allocation2 + $0xb0] sm:$0xf] %v4104
          %4121 = vst [vmem:[#allocation2 + $0xc0] sm:$0xf] %v4105
          %4122 = vst [vmem:[#allocation2 + $0xd0] sm:$0xf] %v4106
          %4123 = vst [vmem:[#allocation2 + $0xe0] sm:$0xf] %v4107
          %4124 = vst [vmem:[#allocation2 + $0xf0] sm:$0xf] %v4108
          %s4125 = scalar_lea.vmem %s319, 80 [#allocation4]
          %v4126 = vld [vmem:[%s4125] sm:$0xf]
          %v4127 = vld [vmem:[%s4125 + $0x4] sm:$0xf]
          %v4128 = vld [vmem:[%s4125 + $0x8] sm:$0xf]
          %v4129 = vld [vmem:[%s4125 + $0xc] sm:$0xf]
          %v4134 = vunpack.c.l.b16 %v4126
          %v4135 = vunpack.c.l.b16 %v4127
          %v4136 = vunpack.c.l.b16 %v4128
          %v4137 = vunpack.c.l.b16 %v4129
          %v4138 = vpack.c.b16 %v4135, %v4134
          %v4139 = vpack.c.b16 %v4137, %v4136
          %4142 = vmatprep.subr.bf16.mxu0 0
          %4143 = vmatpush1.bf16.msra.mxu0 0
          %4144 = vmatprep.subr.bf16.mxu0 0
          %4145 = vmatpush1.bf16.msra.mxu0 0
          %4146 = vmatprep.subr.bf16.mxu0 0
          %4147 = vmatpush1.bf16.msra.mxu0 0
          %4148 = vmatprep.subr.bf16.mxu0 0
          %4149 = vmatpush1.bf16.msra.mxu0 0
          %4150 = vmatprep.subr.bf16.mxu0 0
          %4151 = vmatpush1.bf16.msra.mxu0 0
          %4152 = vmatprep.subr.bf16.mxu0 0
          %4153 = vmatpush1.bf16.msra.mxu0 0
          %4154 = vmatprep.subr.bf16.mxu0 0
          %4155 = vmatpush1.bf16.msra.mxu0 %v4139
          %4156 = vmatprep.subr.bf16.mxu0 0
          %4157 = vmatpush1.bf16.msra.mxu0 %v4138
          %4158 = vmatprep.subr.bf16.mxu0 0
          %4159 = vmatpush2.bf16.msra.mxu0 0
          %4160 = vmatprep.subr.bf16.mxu0 0
          %4161 = vmatpush2.bf16.msra.mxu0 0
          %4162 = vmatprep.subr.bf16.mxu0 0
          %4163 = vmatpush2.bf16.msra.mxu0 0
          %4164 = vmatprep.subr.bf16.mxu0 0
          %4165 = vmatpush2.bf16.msra.mxu0 0
          %4166 = vmatprep.subr.bf16.mxu0 0
          %4167 = vmatpush2.bf16.msra.mxu0 0
          %4168 = vmatprep.subr.bf16.mxu0 0
          %4169 = vmatpush2.bf16.msra.mxu0 0
          %4170 = vmatprep.subr.bf16.mxu0 0
          %4171 = vmatpush2.bf16.msra.mxu0 0
          %4172 = vmatprep.subr.bf16.mxu0 0
          %4173 = vmatpush2.bf16.msra.mxu0 0
          %4174 = vmatprep.mubr.bf16.mxu0 0
          %4175 = vmatmul.mubr.bf16.gmra.mxu0 %v3663
          %v4176 = vpop.f32.mrf.mxu0
          %v4177 = vadd.f32 0.0, %v4176
          %v4178 = vpop.f32.mrf.mxu0
          %v4179 = vpop.f32.mrf.mxu0
          %v4180 = vpop.f32.mrf.mxu0
          %4181 = vmatprep.mubr.bf16.mxu0 0
          %4182 = vmatmul.mubr.bf16.gmra.mxu0 %v3666
          %v4183 = vpop.f32.mrf.mxu0
          %v4184 = vadd.f32 0.0, %v4183
          %v4185 = vpop.f32.mrf.mxu0
          %v4186 = vpop.f32.mrf.mxu0
          %v4187 = vpop.f32.mrf.mxu0
          %4188 = vmatprep.mubr.bf16.mxu0 0
          %4189 = vmatmul.mubr.bf16.gmra.mxu0 %v3669
          %v4190 = vpop.f32.mrf.mxu0
          %v4191 = vadd.f32 0.0, %v4190
          %v4192 = vpop.f32.mrf.mxu0
          %v4193 = vpop.f32.mrf.mxu0
          %v4194 = vpop.f32.mrf.mxu0
          %4195 = vmatprep.mubr.bf16.mxu0 0
          %4196 = vmatmul.mubr.bf16.gmra.mxu0 %v3672
          %v4197 = vpop.f32.mrf.mxu0
          %v4198 = vadd.f32 0.0, %v4197
          %v4199 = vpop.f32.mrf.mxu0
          %v4200 = vpop.f32.mrf.mxu0
          %v4201 = vpop.f32.mrf.mxu0
          %4202 = vdwg.mxu0
          %v4203 = vld [vmem:[#allocation2 + $0xc] sm:$0xf]
          %v4204 = vld [vmem:[#allocation2 + $0x1c] sm:$0xf]
          %v4205 = vld [vmem:[#allocation2 + $0x2c] sm:$0xf]
          %v4206 = vld [vmem:[#allocation2 + $0x3c] sm:$0xf]
          %v4207 = vadd.f32 %v4203, %v4177
          %v4208 = vadd.f32 %v4204, %v4184
          %v4209 = vadd.f32 %v4205, %v4191
          %v4210 = vadd.f32 %v4206, %v4198
          %4211 = vst [vmem:[#allocation2 + $0xc] sm:$0xf] %v4207
          %4212 = vst [vmem:[#allocation2 + $0x1c] sm:$0xf] %v4208
          %4213 = vst [vmem:[#allocation2 + $0x2c] sm:$0xf] %v4209
          %4214 = vst [vmem:[#allocation2 + $0x3c] sm:$0xf] %v4210
          %s4215 = scalar_lea.vmem %s319, 96 [#allocation4]
          %v4216 = vld [vmem:[%s4215] sm:$0xf]
          %v4217 = vld [vmem:[%s4215 + $0x4] sm:$0xf]
          %v4218 = vld [vmem:[%s4215 + $0x8] sm:$0xf]
          %v4219 = vld [vmem:[%s4215 + $0xc] sm:$0xf]
          %v4224 = vunpack.c.l.b16 %v4216
          %v4225 = vunpack.c.l.b16 %v4217
          %v4226 = vunpack.c.l.b16 %v4218
          %v4227 = vunpack.c.l.b16 %v4219
          %v4228 = vpack.c.b16 %v4225, %v4224
          %v4229 = vpack.c.b16 %v4227, %v4226
          %4232 = vmatprep.subr.bf16.mxu0 0
          %4233 = vmatpush1.bf16.msra.mxu0 0
          %4234 = vmatprep.subr.bf16.mxu0 0
          %4235 = vmatpush1.bf16.msra.mxu0 0
          %4236 = vmatprep.subr.bf16.mxu0 0
          %4237 = vmatpush1.bf16.msra.mxu0 0
          %4238 = vmatprep.subr.bf16.mxu0 0
          %4239 = vmatpush1.bf16.msra.mxu0 0
          %4240 = vmatprep.subr.bf16.mxu0 0
          %4241 = vmatpush1.bf16.msra.mxu0 0
          %4242 = vmatprep.subr.bf16.mxu0 0
          %4243 = vmatpush1.bf16.msra.mxu0 0
          %4244 = vmatprep.subr.bf16.mxu0 0
          %4245 = vmatpush1.bf16.msra.mxu0 %v4229
          %4246 = vmatprep.subr.bf16.mxu0 0
          %4247 = vmatpush1.bf16.msra.mxu0 %v4228
          %4248 = vmatprep.subr.bf16.mxu0 0
          %4249 = vmatpush2.bf16.msra.mxu0 0
          %4250 = vmatprep.subr.bf16.mxu0 0
          %4251 = vmatpush2.bf16.msra.mxu0 0
          %4252 = vmatprep.subr.bf16.mxu0 0
          %4253 = vmatpush2.bf16.msra.mxu0 0
          %4254 = vmatprep.subr.bf16.mxu0 0
          %4255 = vmatpush2.bf16.msra.mxu0 0
          %4256 = vmatprep.subr.bf16.mxu0 0
          %4257 = vmatpush2.bf16.msra.mxu0 0
          %4258 = vmatprep.subr.bf16.mxu0 0
          %4259 = vmatpush2.bf16.msra.mxu0 0
          %4260 = vmatprep.subr.bf16.mxu0 0
          %4261 = vmatpush2.bf16.msra.mxu0 0
          %4262 = vmatprep.subr.bf16.mxu0 0
          %4263 = vmatpush2.bf16.msra.mxu0 0
          %4264 = vmatprep.mubr.bf16.mxu0 0
          %4265 = vmatmul.mubr.bf16.gmra.mxu0 %v3663
          %v4266 = vpop.f32.mrf.mxu0
          %v4267 = vadd.f32 0.0, %v4266
          %v4268 = vpop.f32.mrf.mxu0
          %v4269 = vpop.f32.mrf.mxu0
          %v4270 = vadd.f32 0.0, %v4269
          %v4271 = vpop.f32.mrf.mxu0
          %4272 = vmatprep.mubr.bf16.mxu0 0
          %4273 = vmatmul.mubr.bf16.gmra.mxu0 %v3666
          %v4274 = vpop.f32.mrf.mxu0
          %v4275 = vadd.f32 0.0, %v4274
          %v4276 = vpop.f32.mrf.mxu0
          %v4277 = vpop.f32.mrf.mxu0
          %v4278 = vadd.f32 0.0, %v4277
          %v4279 = vpop.f32.mrf.mxu0
          %4280 = vmatprep.mubr.bf16.mxu0 0
          %4281 = vmatmul.mubr.bf16.gmra.mxu0 %v3669
          %v4282 = vpop.f32.mrf.mxu0
          %v4283 = vadd.f32 0.0, %v4282
          %v4284 = vpop.f32.mrf.mxu0
          %v4285 = vpop.f32.mrf.mxu0
          %v4286 = vadd.f32 0.0, %v4285
          %v4287 = vpop.f32.mrf.mxu0
          %4288 = vmatprep.mubr.bf16.mxu0 0
          %4289 = vmatmul.mubr.bf16.gmra.mxu0 %v3672
          %v4290 = vpop.f32.mrf.mxu0
          %v4291 = vadd.f32 0.0, %v4290
          %v4292 = vpop.f32.mrf.mxu0
          %v4293 = vpop.f32.mrf.mxu0
          %v4294 = vadd.f32 0.0, %v4293
          %v4295 = vpop.f32.mrf.mxu0
          %4296 = vdwg.mxu0
          %v4297 = vld [vmem:[#allocation2] sm:$0xff]
          %v4298 = vld [vmem:[#allocation2 + $0x8] sm:$0xff]
          %v4299 = vld [vmem:[#allocation2 + $0x10] sm:$0xff]
          %v4300 = vld [vmem:[#allocation2 + $0x18] sm:$0xff]
          %v4301 = vld [vmem:[#allocation2 + $0x20] sm:$0xff]
          %v4302 = vld [vmem:[#allocation2 + $0x28] sm:$0xff]
          %v4303 = vld [vmem:[#allocation2 + $0x30] sm:$0xff]
          %v4304 = vld [vmem:[#allocation2 + $0x38] sm:$0xff]
          %v4305 = vadd.f32 %v4297, %v4267
          %v4306 = vadd.f32 %v4298, %v4270
          %v4307 = vadd.f32 %v4299, %v4275
          %v4308 = vadd.f32 %v4300, %v4278
          %v4309 = vadd.f32 %v4301, %v4283
          %v4310 = vadd.f32 %v4302, %v4286
          %v4311 = vadd.f32 %v4303, %v4291
          %v4312 = vadd.f32 %v4304, %v4294
          %4313 = vst [vmem:[#allocation2] sm:$0xff] %v4305
          %4314 = vst [vmem:[#allocation2 + $0x8] sm:$0xff] %v4306
          %4315 = vst [vmem:[#allocation2 + $0x10] sm:$0xff] %v4307
          %4316 = vst [vmem:[#allocation2 + $0x18] sm:$0xff] %v4308
          %4317 = vst [vmem:[#allocation2 + $0x20] sm:$0xff] %v4309
          %4318 = vst [vmem:[#allocation2 + $0x28] sm:$0xff] %v4310
          %4319 = vst [vmem:[#allocation2 + $0x30] sm:$0xff] %v4311
          %4320 = vst [vmem:[#allocation2 + $0x38] sm:$0xff] %v4312
          %s4321 = scalar_lea.vmem %s319, 112 [#allocation4]
          %v4322 = vld [vmem:[%s4321] sm:$0xf]
          %v4323 = vld [vmem:[%s4321 + $0x4] sm:$0xf]
          %v4324 = vld [vmem:[%s4321 + $0x8] sm:$0xf]
          %v4325 = vld [vmem:[%s4321 + $0xc] sm:$0xf]
          %v4330 = vunpack.c.l.b16 %v4322
          %v4331 = vunpack.c.l.b16 %v4323
          %v4332 = vunpack.c.l.b16 %v4324
          %v4333 = vunpack.c.l.b16 %v4325
          %v4334 = vpack.c.b16 %v4331, %v4330
          %v4335 = vpack.c.b16 %v4333, %v4332
          %4338 = vmatprep.subr.bf16.mxu0 0
          %4339 = vmatpush1.bf16.msra.mxu0 0
          %4340 = vmatprep.subr.bf16.mxu0 0
          %4341 = vmatpush1.bf16.msra.mxu0 0
          %4342 = vmatprep.subr.bf16.mxu0 0
          %4343 = vmatpush1.bf16.msra.mxu0 0
          %4344 = vmatprep.subr.bf16.mxu0 0
          %4345 = vmatpush1.bf16.msra.mxu0 0
          %4346 = vmatprep.subr.bf16.mxu0 0
          %4347 = vmatpush1.bf16.msra.mxu0 0
          %4348 = vmatprep.subr.bf16.mxu0 0
          %4349 = vmatpush1.bf16.msra.mxu0 0
          %4350 = vmatprep.subr.bf16.mxu0 0
          %4351 = vmatpush1.bf16.msra.mxu0 %v4335
          %4352 = vmatprep.subr.bf16.mxu0 0
          %4353 = vmatpush1.bf16.msra.mxu0 %v4334
          %4354 = vmatprep.subr.bf16.mxu0 0
          %4355 = vmatpush2.bf16.msra.mxu0 0
          %4356 = vmatprep.subr.bf16.mxu0 0
          %4357 = vmatpush2.bf16.msra.mxu0 0
          %4358 = vmatprep.subr.bf16.mxu0 0
          %4359 = vmatpush2.bf16.msra.mxu0 0
          %4360 = vmatprep.subr.bf16.mxu0 0
          %4361 = vmatpush2.bf16.msra.mxu0 0
          %4362 = vmatprep.subr.bf16.mxu0 0
          %4363 = vmatpush2.bf16.msra.mxu0 0
          %4364 = vmatprep.subr.bf16.mxu0 0
          %4365 = vmatpush2.bf16.msra.mxu0 0
          %4366 = vmatprep.subr.bf16.mxu0 0
          %4367 = vmatpush2.bf16.msra.mxu0 0
          %4368 = vmatprep.subr.bf16.mxu0 0
          %4369 = vmatpush2.bf16.msra.mxu0 0
          %4370 = vmatprep.mubr.bf16.mxu0 0
          %4371 = vmatmul.mubr.bf16.gmra.mxu0 %v3663
          %v4372 = vpop.f32.mrf.mxu0
          %v4373 = vpop.f32.mrf.mxu0
          %v4374 = vpop.f32.mrf.mxu0
          %v4375 = vadd.f32 0.0, %v4374
          %v4376 = vpop.f32.mrf.mxu0
          %4377 = vmatprep.mubr.bf16.mxu0 0
          %4378 = vmatmul.mubr.bf16.gmra.mxu0 %v3666
          %v4379 = vpop.f32.mrf.mxu0
          %v4380 = vpop.f32.mrf.mxu0
          %v4381 = vpop.f32.mrf.mxu0
          %v4382 = vadd.f32 0.0, %v4381
          %v4383 = vpop.f32.mrf.mxu0
          %4384 = vmatprep.mubr.bf16.mxu0 0
          %4385 = vmatmul.mubr.bf16.gmra.mxu0 %v3669
          %v4386 = vpop.f32.mrf.mxu0
          %v4387 = vpop.f32.mrf.mxu0
          %v4388 = vpop.f32.mrf.mxu0
          %v4389 = vadd.f32 0.0, %v4388
          %v4390 = vpop.f32.mrf.mxu0
          %4391 = vmatprep.mubr.bf16.mxu0 0
          %4392 = vmatmul.mubr.bf16.gmra.mxu0 %v3672
          %v4393 = vpop.f32.mrf.mxu0
          %v4394 = vpop.f32.mrf.mxu0
          %v4395 = vpop.f32.mrf.mxu0
          %v4396 = vadd.f32 0.0, %v4395
          %v4397 = vpop.f32.mrf.mxu0
          %4398 = vdwg.mxu0
          %v4399 = vld [vmem:[#allocation2] sm:$0xf]
          %v4400 = vld [vmem:[#allocation2 + $0x10] sm:$0xf]
          %v4401 = vld [vmem:[#allocation2 + $0x20] sm:$0xf]
          %v4402 = vld [vmem:[#allocation2 + $0x30] sm:$0xf]
          %v4407 = vrot.slane %v4375, 4
          %v4408 = vrot.slane %v4382, 4
          %v4409 = vrot.slane %v4389, 4
          %v4410 = vrot.slane %v4396, 4
          %v4415 = vadd.f32 %v4399, %v4407
          %v4416 = vadd.f32 %v4400, %v4408
          %v4417 = vadd.f32 %v4401, %v4409
          %v4418 = vadd.f32 %v4402, %v4410
          %4419 = vst [vmem:[#allocation2] sm:$0xf] %v4415
          %4420 = vst [vmem:[#allocation2 + $0x10] sm:$0xf] %v4416
          %4421 = vst [vmem:[#allocation2 + $0x20] sm:$0xf] %v4417
          %4422 = vst [vmem:[#allocation2 + $0x30] sm:$0xf] %v4418
        $region76: #{tpu_custom_call.1} parent=39 // pred_fallthru
          _
        %p4423 = pnand %p707, %p415
        %p4424 = pneg %p4423
        // Predicated region
        $region77: #{tpu_custom_call.1} parent=39 // pred_check
          _
        $region78: #{tpu_custom_call.1} parent=39 // pred_check_branch
          %4426 = sbr.rel (%p4423) target = $region80
        $region79: #{tpu_custom_call.1} parent=39 // pred_region
          %v4427 = vld [vmem:[#allocation2] sm:$0xff]
          %v4428 = vld [vmem:[#allocation2 + $0x8] sm:$0xff]
          %v4429 = vld [vmem:[#allocation2 + $0x10] sm:$0xff]
          %v4430 = vld [vmem:[#allocation2 + $0x18] sm:$0xff]
          %v4431 = vld [vmem:[#allocation2 + $0x20] sm:$0xff]
          %v4432 = vld [vmem:[#allocation2 + $0x28] sm:$0xff]
          %v4433 = vld [vmem:[#allocation2 + $0x30] sm:$0xff]
          %v4434 = vld [vmem:[#allocation2 + $0x38] sm:$0xff]
          %v4435 = vld [vmem:[#allocation2 + $0x40] sm:$0xff]
          %v4436 = vld [vmem:[#allocation2 + $0x48] sm:$0xff]
          %v4437 = vld [vmem:[#allocation2 + $0x50] sm:$0xff]
          %v4438 = vld [vmem:[#allocation2 + $0x58] sm:$0xff]
          %v4439 = vld [vmem:[#allocation2 + $0x60] sm:$0xff]
          %v4440 = vld [vmem:[#allocation2 + $0x68] sm:$0xff]
          %v4441 = vld [vmem:[#allocation2 + $0x70] sm:$0xff]
          %v4442 = vld [vmem:[#allocation2 + $0x78] sm:$0xff]
          %v4443 = vld [vmem:[#allocation2 + $0x80] sm:$0xff]
          %v4444 = vld [vmem:[#allocation2 + $0x88] sm:$0xff]
          %v4445 = vld [vmem:[#allocation2 + $0x90] sm:$0xff]
          %v4446 = vld [vmem:[#allocation2 + $0x98] sm:$0xff]
          %v4447 = vld [vmem:[#allocation2 + $0xa0] sm:$0xff]
          %v4448 = vld [vmem:[#allocation2 + $0xa8] sm:$0xff]
          %v4449 = vld [vmem:[#allocation2 + $0xb0] sm:$0xff]
          %v4450 = vld [vmem:[#allocation2 + $0xb8] sm:$0xff]
          %v4451 = vld [vmem:[#allocation2 + $0xc0] sm:$0xff]
          %v4452 = vld [vmem:[#allocation2 + $0xc8] sm:$0xff]
          %v4453 = vld [vmem:[#allocation2 + $0xd0] sm:$0xff]
          %v4454 = vld [vmem:[#allocation2 + $0xd8] sm:$0xff]
          %v4455 = vld [vmem:[#allocation2 + $0xe0] sm:$0xff]
          %v4456 = vld [vmem:[#allocation2 + $0xe8] sm:$0xff]
          %v4457 = vld [vmem:[#allocation2 + $0xf0] sm:$0xff]
          %v4458 = vld [vmem:[#allocation2 + $0xf8] sm:$0xff]
          %v4459 = vld [vmem:[%s412] sm:$0x1]
          %v4461 = vlaneseq
          %v4462 = vshrl.u32 %v4461, 7
          %v4463 = vsub.s32 0, %v4462
          %v4464 = vrot.slane %v4459, %v4463
          %v4466 = vadd.f32 %v4427, %v4464
          %v4467 = vadd.f32 %v4428, %v4464
          %v4468 = vadd.f32 %v4429, %v4464
          %v4469 = vadd.f32 %v4430, %v4464
          %v4470 = vadd.f32 %v4431, %v4464
          %v4471 = vadd.f32 %v4432, %v4464
          %v4472 = vadd.f32 %v4433, %v4464
          %v4473 = vadd.f32 %v4434, %v4464
          %v4474 = vadd.f32 %v4435, %v4464
          %v4475 = vadd.f32 %v4436, %v4464
          %v4476 = vadd.f32 %v4437, %v4464
          %v4477 = vadd.f32 %v4438, %v4464
          %v4478 = vadd.f32 %v4439, %v4464
          %v4479 = vadd.f32 %v4440, %v4464
          %v4480 = vadd.f32 %v4441, %v4464
          %v4481 = vadd.f32 %v4442, %v4464
          %v4482 = vadd.f32 %v4443, %v4464
          %v4483 = vadd.f32 %v4444, %v4464
          %v4484 = vadd.f32 %v4445, %v4464
          %v4485 = vadd.f32 %v4446, %v4464
          %v4486 = vadd.f32 %v4447, %v4464
          %v4487 = vadd.f32 %v4448, %v4464
          %v4488 = vadd.f32 %v4449, %v4464
          %v4489 = vadd.f32 %v4450, %v4464
          %v4490 = vadd.f32 %v4451, %v4464
          %v4491 = vadd.f32 %v4452, %v4464
          %v4492 = vadd.f32 %v4453, %v4464
          %v4493 = vadd.f32 %v4454, %v4464
          %v4494 = vadd.f32 %v4455, %v4464
          %v4495 = vadd.f32 %v4456, %v4464
          %v4496 = vadd.f32 %v4457, %v4464
          %v4497 = vadd.f32 %v4458, %v4464
          %v4498 = vmax.f32 %v4466, 0.0
          %v4499 = vmax.f32 %v4467, 0.0
          %v4500 = vmax.f32 %v4468, 0.0
          %v4501 = vmax.f32 %v4469, 0.0
          %v4502 = vmax.f32 %v4470, 0.0
          %v4503 = vmax.f32 %v4471, 0.0
          %v4504 = vmax.f32 %v4472, 0.0
          %v4505 = vmax.f32 %v4473, 0.0
          %v4506 = vmax.f32 %v4474, 0.0
          %v4507 = vmax.f32 %v4475, 0.0
          %v4508 = vmax.f32 %v4476, 0.0
          %v4509 = vmax.f32 %v4477, 0.0
          %v4510 = vmax.f32 %v4478, 0.0
          %v4511 = vmax.f32 %v4479, 0.0
          %v4512 = vmax.f32 %v4480, 0.0
          %v4513 = vmax.f32 %v4481, 0.0
          %v4514 = vmax.f32 %v4482, 0.0
          %v4515 = vmax.f32 %v4483, 0.0
          %v4516 = vmax.f32 %v4484, 0.0
          %v4517 = vmax.f32 %v4485, 0.0
          %v4518 = vmax.f32 %v4486, 0.0
          %v4519 = vmax.f32 %v4487, 0.0
          %v4520 = vmax.f32 %v4488, 0.0
          %v4521 = vmax.f32 %v4489, 0.0
          %v4522 = vmax.f32 %v4490, 0.0
          %v4523 = vmax.f32 %v4491, 0.0
          %v4524 = vmax.f32 %v4492, 0.0
          %v4525 = vmax.f32 %v4493, 0.0
          %v4526 = vmax.f32 %v4494, 0.0
          %v4527 = vmax.f32 %v4495, 0.0
          %v4528 = vmax.f32 %v4496, 0.0
          %v4529 = vmax.f32 %v4497, 0.0
          %v4530 = vpack.c.bf16 %v4499, %v4498
          %v4531 = vpack.c.bf16 %v4501, %v4500
          %v4532 = vpack.c.bf16 %v4503, %v4502
          %v4533 = vpack.c.bf16 %v4505, %v4504
          %v4534 = vpack.c.bf16 %v4507, %v4506
          %v4535 = vpack.c.bf16 %v4509, %v4508
          %v4536 = vpack.c.bf16 %v4511, %v4510
          %v4537 = vpack.c.bf16 %v4513, %v4512
          %v4538 = vpack.c.bf16 %v4515, %v4514
          %v4539 = vpack.c.bf16 %v4517, %v4516
          %v4540 = vpack.c.bf16 %v4519, %v4518
          %v4541 = vpack.c.bf16 %v4521, %v4520
          %v4542 = vpack.c.bf16 %v4523, %v4522
          %v4543 = vpack.c.bf16 %v4525, %v4524
          %v4544 = vpack.c.bf16 %v4527, %v4526
          %v4545 = vpack.c.bf16 %v4529, %v4528
          %v4562 = vunpack.c.l.b16 %v4530
          %v4563 = vunpack.c.h.b16 %v4530
          %v4564 = vunpack.c.l.b16 %v4531
          %v4565 = vunpack.c.h.b16 %v4531
          %v4566 = vunpack.c.l.b16 %v4532
          %v4567 = vunpack.c.h.b16 %v4532
          %v4568 = vunpack.c.l.b16 %v4533
          %v4569 = vunpack.c.h.b16 %v4533
          %v4570 = vunpack.c.l.b16 %v4534
          %v4571 = vunpack.c.h.b16 %v4534
          %v4572 = vunpack.c.l.b16 %v4535
          %v4573 = vunpack.c.h.b16 %v4535
          %v4574 = vunpack.c.l.b16 %v4536
          %v4575 = vunpack.c.h.b16 %v4536
          %v4576 = vunpack.c.l.b16 %v4537
          %v4577 = vunpack.c.h.b16 %v4537
          %v4578 = vunpack.c.l.b16 %v4538
          %v4579 = vunpack.c.h.b16 %v4538
          %v4580 = vunpack.c.l.b16 %v4539
          %v4581 = vunpack.c.h.b16 %v4539
          %v4582 = vunpack.c.l.b16 %v4540
          %v4583 = vunpack.c.h.b16 %v4540
          %v4584 = vunpack.c.l.b16 %v4541
          %v4585 = vunpack.c.h.b16 %v4541
          %v4586 = vunpack.c.l.b16 %v4542
          %v4587 = vunpack.c.h.b16 %v4542
          %v4588 = vunpack.c.l.b16 %v4543
          %v4589 = vunpack.c.h.b16 %v4543
          %v4590 = vunpack.c.l.b16 %v4544
          %v4591 = vunpack.c.h.b16 %v4544
          %v4592 = vunpack.c.l.b16 %v4545
          %v4593 = vunpack.c.h.b16 %v4545
          %v4594 = vpack.c.b16 %v4562, %v4562
          %v4595 = vpack.c.b16 %v4563, %v4563
          %v4596 = vpack.c.b16 %v4564, %v4564
          %v4597 = vpack.c.b16 %v4565, %v4565
          %v4598 = vpack.c.b16 %v4566, %v4566
          %v4599 = vpack.c.b16 %v4567, %v4567
          %v4600 = vpack.c.b16 %v4568, %v4568
          %v4601 = vpack.c.b16 %v4569, %v4569
          %v4602 = vpack.c.b16 %v4570, %v4570
          %v4603 = vpack.c.b16 %v4571, %v4571
          %v4604 = vpack.c.b16 %v4572, %v4572
          %v4605 = vpack.c.b16 %v4573, %v4573
          %v4606 = vpack.c.b16 %v4574, %v4574
          %v4607 = vpack.c.b16 %v4575, %v4575
          %v4608 = vpack.c.b16 %v4576, %v4576
          %v4609 = vpack.c.b16 %v4577, %v4577
          %v4610 = vpack.c.b16 %v4578, %v4578
          %v4611 = vpack.c.b16 %v4579, %v4579
          %v4612 = vpack.c.b16 %v4580, %v4580
          %v4613 = vpack.c.b16 %v4581, %v4581
          %v4614 = vpack.c.b16 %v4582, %v4582
          %v4615 = vpack.c.b16 %v4583, %v4583
          %v4616 = vpack.c.b16 %v4584, %v4584
          %v4617 = vpack.c.b16 %v4585, %v4585
          %v4618 = vpack.c.b16 %v4586, %v4586
          %v4619 = vpack.c.b16 %v4587, %v4587
          %v4620 = vpack.c.b16 %v4588, %v4588
          %v4621 = vpack.c.b16 %v4589, %v4589
          %v4622 = vpack.c.b16 %v4590, %v4590
          %v4623 = vpack.c.b16 %v4591, %v4591
          %v4624 = vpack.c.b16 %v4592, %v4592
          %v4625 = vpack.c.b16 %v4593, %v4593
          %4658 = vst [vmem:[%s373] sm:$0xf] %v4594
          %4659 = vst [vmem:[%s373 + $0x4] sm:$0xf] %v4595
          %4660 = vst [vmem:[%s373 + $0x8] sm:$0xf] %v4596
          %4661 = vst [vmem:[%s373 + $0xc] sm:$0xf] %v4597
          %4662 = vst [vmem:[%s373 + $0x10] sm:$0xf] %v4598
          %4663 = vst [vmem:[%s373 + $0x14] sm:$0xf] %v4599
          %4664 = vst [vmem:[%s373 + $0x18] sm:$0xf] %v4600
          %4665 = vst [vmem:[%s373 + $0x1c] sm:$0xf] %v4601
          %4666 = vst [vmem:[%s373 + $0x20] sm:$0xf] %v4602
          %4667 = vst [vmem:[%s373 + $0x24] sm:$0xf] %v4603
          %4668 = vst [vmem:[%s373 + $0x28] sm:$0xf] %v4604
          %4669 = vst [vmem:[%s373 + $0x2c] sm:$0xf] %v4605
          %4670 = vst [vmem:[%s373 + $0x30] sm:$0xf] %v4606
          %4671 = vst [vmem:[%s373 + $0x34] sm:$0xf] %v4607
          %4672 = vst [vmem:[%s373 + $0x38] sm:$0xf] %v4608
          %4673 = vst [vmem:[%s373 + $0x3c] sm:$0xf] %v4609
          %4674 = vst [vmem:[%s373 + $0x40] sm:$0xf] %v4610
          %4675 = vst [vmem:[%s373 + $0x44] sm:$0xf] %v4611
          %4676 = vst [vmem:[%s373 + $0x48] sm:$0xf] %v4612
          %4677 = vst [vmem:[%s373 + $0x4c] sm:$0xf] %v4613
          %4678 = vst [vmem:[%s373 + $0x50] sm:$0xf] %v4614
          %4679 = vst [vmem:[%s373 + $0x54] sm:$0xf] %v4615
          %4680 = vst [vmem:[%s373 + $0x58] sm:$0xf] %v4616
          %4681 = vst [vmem:[%s373 + $0x5c] sm:$0xf] %v4617
          %4682 = vst [vmem:[%s373 + $0x60] sm:$0xf] %v4618
          %4683 = vst [vmem:[%s373 + $0x64] sm:$0xf] %v4619
          %4684 = vst [vmem:[%s373 + $0x68] sm:$0xf] %v4620
          %4685 = vst [vmem:[%s373 + $0x6c] sm:$0xf] %v4621
          %4686 = vst [vmem:[%s373 + $0x70] sm:$0xf] %v4622
          %4687 = vst [vmem:[%s373 + $0x74] sm:$0xf] %v4623
          %4688 = vst [vmem:[%s373 + $0x78] sm:$0xf] %v4624
          %4689 = vst [vmem:[%s373 + $0x7c] sm:$0xf] %v4625
        $region80: #{tpu_custom_call.1} parent=39 // pred_fallthru
          _
        %s4690 = sand.u32 %s203, 1
        %s4691 = scalar_lea.sflag [#allocation6], %s4690
        %s4692 = sand.u32 %s203, 1
        %s4693 = smul.addr %s4692, 128
        %s4694 = scalar_lea.vmem [#allocation7], %s4693
        // Predicated region
        $region81: #{tpu_custom_call.1} parent=39 // pred_check
          %p4695 = pneg %p213
        $region82: #{tpu_custom_call.1} parent=39 // pred_check_branch
          %4697 = sbr.rel (%p4695) target = $region84
        $region83: #{tpu_custom_call.1} parent=39 // pred_region
          %s4699 = ssub.s32 2048, 2048
          %4700 = vsyncadd %s4691, %s4699
          %s4701 = smul.addr %s27, 160
          %s4702 = sadd.s32 %s28, %s4701
          %s4703 = smul.addr %s4702, 64
          %s4704 = scalar_lea.hbm %s5, %s4703
          %s4705 = sshll.u32 %s4694, 4
          %s4706 = int_to_ptr.vmem [resolvable:$true] %s4705
          %4711 = dma.vmem_to_hbm [thread:$0]  %s4706, 2048, %s4704, %s4691, 64, 320, 4
        $region84: #{tpu_custom_call.1} parent=39 // pred_fallthru
          _
      $region40: #{tpu_custom_call.1} parent=5 // pred_fallthru
        _
      %p4712 = scmp.le.s32.totalorder 2, %s17
      // Predicated region
      $region85: #{tpu_custom_call.1} parent=5 // pred_check
        %p4713 = pneg %p4712
      $region86: #{tpu_custom_call.1} parent=5 // pred_check_branch
        %4715 = sbr.rel (%p4713) target = $region88
      $region87: #{tpu_custom_call.1} parent=5 // pred_region
        %s4716 = ssub.s32 %s17, 2
        // Predicated region
        $region89: #{tpu_custom_call.1} parent=87 // pred_check
          %p4717 = pneg %p219
        $region90: #{tpu_custom_call.1} parent=87 // pred_check_branch
          %4719 = sbr.rel (%p4717) target = $region92
        $region91: #{tpu_custom_call.1} parent=87 // pred_region
          %s4720 = sand.u32 %s204, 1
          %s4721 = scalar_lea.sflag [#allocation6], %s4720
          %s4722 = sand.u32 %s204, 1
          %s4723 = smul.addr %s4722, 128
          %s4724 = scalar_lea.vmem [#allocation7], %s4723
          %4725 = dma.done %s4721, 2048
        $region92: #{tpu_custom_call.1} parent=87 // pred_fallthru
          _
      $region88: #{tpu_custom_call.1} parent=5 // pred_fallthru
        _
    $region6: #{tpu_custom_call.1} parent=1 // loop_footer
      %s21 = sadd.s32 1, %s17
    $region7: #{tpu_custom_call.1} parent=1 // loop_footer_branch
      %16 = sbr.rel target = $region3
    $region8: #{tpu_custom_call.1} parent=1 // loop_exit
      _
    %4726 = vsyncpa [#allocation5], 1
    %s4727 = scalar_lea.sflag [#allocation5], 1
    %4728 = vsyncpa %s4727, 1
    %4729 = vsyncpa [#allocation6], 1
    %s4730 = scalar_lea.sflag [#allocation6], 1
    %4731 = vsyncpa %s4730, 1

</llo_original>
